<compile_context>
chip_gen: v6e
topology: v6e:2x2x1
jax: 0.10.0
libtpu: 0.0.40
codegen_flags: <defaults>
</compile_context>

<pallas_src>
import functools

import jax
import jax.numpy as jnp
from jax.experimental import pallas as pl
from jax.experimental.pallas import tpu as pltpu


def _round_up(v, m):
    return ((v + m - 1) // m) * m


# ----------------------------------------------------------------------------
# Pallas kernel: tiled dense linear operator (stand-in for Radon op / adjoint)
# ----------------------------------------------------------------------------
def _matmul_kernel(x_ref, a_ref, o_ref, acc_ref):
    @pl.when(pl.program_id(2) == 0)
    def _():
        acc_ref[...] = jnp.zeros_like(acc_ref)

    acc_ref[...] += jnp.dot(x_ref[...], a_ref[...],
                            preferred_element_type=jnp.float32)

    @pl.when(pl.program_id(2) == pl.num_programs(2) - 1)
    def _():
        o_ref[...] = acc_ref[...].astype(o_ref.dtype)


def apply_linear(x, a_pad, n_out):
    """x: (B, K) f32;  a_pad: (Kp, Np) bf16, pre-scaled by 1/||A|| and zero padded.

    Returns (B, n_out) bf16 (kept bf16 until it is consumed inside the CNN kernel)."""
    B, K = x.shape
    Kp, Np = a_pad.shape
    # TODO(synk): tm is tiny only because B is tiny; stack independent matmuls onto the
    #             M axis when the workload allows it.
    tm = _round_up(min(B, 256), 8)
    tn = 512 if Np % 512 == 0 else (256 if Np % 256 == 0 else 128)
    tk = 512 if Kp % 512 == 0 else (256 if Kp % 256 == 0 else 128)
    Mp = _round_up(B, tm)
    xb = x.astype(jnp.bfloat16)
    if (Mp != B) or (Kp != K):
        xp = jnp.zeros((Mp, Kp), jnp.bfloat16).at[:B, :K].set(xb)
    else:
        xp = xb
    grid = (Mp // tm, Np // tn, Kp // tk)
    out = pl.pallas_call(
        _matmul_kernel,
        out_shape=jax.ShapeDtypeStruct((Mp, Np), jnp.bfloat16),
        grid_spec=pltpu.PrefetchScalarGridSpec(
            num_scalar_prefetch=0,
            grid=grid,
            in_specs=[pl.BlockSpec((tm, tk), lambda i, j, k: (i, k)),
                      pl.BlockSpec((tk, tn), lambda i, j, k: (k, j))],
            out_specs=pl.BlockSpec((tm, tn), lambda i, j, k: (i, j)),
            scratch_shapes=[pltpu.VMEM((tm, tn), jnp.float32)]),
        compiler_params=pltpu.CompilerParams(
            dimension_semantics=("parallel", "parallel", "arbitrary")),
    )(xp, a_pad)
    return out[:B, :n_out]


# ----------------------------------------------------------------------------
# Fused CnnBlock kernel: residual + conv3x3 -> PReLU -> conv3x3 -> PReLU -> conv3x3
# ----------------------------------------------------------------------------
_TAPS = ((-1, -1), (-1, 0), (-1, 1),
         (0, -1), (0, 0), (0, 1),
         (1, -1), (1, 0), (1, 1))


def _fused_block_kernel(*args, W, PV, P_pad, c_in, n_f, padl):
    chan_refs = args[:c_in]                       # (1, 1, P_pad) each; chan 0 = residual base
    mask_ref = args[c_in]                         # (2, P_pad) edge masks
    w1_ref = args[c_in + 1]                       # (n_f, 9*c_in)  bf16
    w2_ref = args[c_in + 2]                       # (n_f, 9*n_f)   bf16
    w3_ref = args[c_in + 3]                       # (16, n_f)      bf16 (rows >= 9 zero)
    bvec_ref = args[c_in + 4]                     # (n_f, 8) f32: b1, a1, b2, a2, b3
    out_ref = args[c_in + 5]                      # (1, 1, P_pad)
    act_ref, patch1_ref, patchf_ref = args[c_in + 6:c_in + 9]

    f32 = jnp.float32

    # Zero the lane halos + lane-padding tail every grid step (scratch persists across
    # grid steps / cores; intentionally NOT gated on program_id so "parallel" is safe).
    act_ref[:, 0:padl] = jnp.zeros((n_f, padl), f32)
    tail = padl + (P_pad - PV)
    act_ref[:, padl + PV:padl + PV + tail] = jnp.zeros((n_f, tail), f32)

    not_left = mask_ref[0:1, :]    # 0.0 where x == 0      (kills row wrap for ox = -1)
    not_right = mask_ref[1:2, :]   # 0.0 where x == W - 1  (kills row wrap for ox = +1)

    b1 = bvec_ref[:, 0:1]
    a1 = bvec_ref[:, 1:2]
    b2 = bvec_ref[:, 2:3]
    a2 = bvec_ref[:, 3:4]
    b3 = bvec_ref[0:1, 4:5]

    def extract_patch(patch_ref, C):
        # patch row t*C + c  <-  channel c shifted by tap t (lane shift on flat pixels).
        for t, (oy, ox) in enumerate(_TAPS):
            s = oy * W + ox
            blk = act_ref[0:C, padl + s:padl + s + P_pad]
            if ox == -1:
                blk = blk * not_left
            elif ox == 1:
                blk = blk * not_right
            patch_ref[t * C:(t + 1) * C, :] = blk.astype(patch_ref.dtype)

    # ---- layer 1: conv(c_in -> n_f) + PReLU  (channel "concat" fused here) ----------
    # Only the PV valid pixels are written; lane-padding tail stays zero so bottom-edge
    # taps of later layers read zeros (= torch zero padding).
    for c in range(c_in):
        act_ref[c:c + 1, padl:padl + PV] = chan_refs[c][0][:, :PV].astype(f32)
    extract_patch(patch1_ref, c_in)
    y = jnp.dot(w1_ref[...], patch1_ref[...], preferred_element_type=f32) + b1
    y = jnp.where(y >= 0.0, y, y * a1)

    # ---- layer 2: conv(n_f -> n_f) + PReLU  (bf16 MXU, f32 accumulate, K = 9*n_f) ----
    act_ref[0:n_f, padl:padl + PV] = y[:, :PV]
    extract_patch(patchf_ref, n_f)
    y = jnp.dot(w2_ref[...], patchf_ref[...], preferred_element_type=f32) + b2
    y = jnp.where(y >= 0.0, y, y * a2)

    # ---- layer 3: conv(n_f -> 1) restructured: z = W3 @ y2 (tiny matmul), then 9
    #      masked lane-shifted single-row adds.  No second 9*n_f patch materialization.
    z = jnp.dot(w3_ref[...], y.astype(jnp.bfloat16), preferred_element_type=f32)
    act_ref[0:9, padl:padl + PV] = z[0:9, :PV]
    acc = None
    for t, (oy, ox) in enumerate(_TAPS):
        s = oy * W + ox
        row = act_ref[t:t + 1, padl + s:padl + s + P_pad]
        if ox == -1:
            row = row * not_left
        elif ox == 1:
            row = row * not_right
        acc = row if acc is None else acc + row
    y3 = acc + b3

    # residual update fused in-kernel; output block is lane-dense (multiple of 128)
    out_ref[0] = chan_refs[0][0].astype(f32) + y3


def cnn_block_fused(chans, mask, block_params, H, W):
    """chans: tuple of (B, P_pad) arrays (chans[0] f32 residual base, others f32/bf16).
    Returns chans[0] + CnnBlock(channel-concat(chans)) as (B, P_pad) f32."""
    B, P_pad = chans[0].shape
    PV = H * W
    c_in = len(chans)
    w1, w2, w3, bvec = block_params
    n_f = w1.shape[0]
    padl = _round_up(W + 1, 128)

    kernel = functools.partial(_fused_block_kernel,
                               W=W, PV=PV, P_pad=P_pad, c_in=c_in, n_f=n_f, padl=padl)

    chans3 = [c.reshape(B, 1, P_pad) for c in chans]
    chan_specs = [pl.BlockSpec((1, 1, P_pad), lambda b: (b, 0, 0)) for _ in chans3]

    def full2d(arr):
        return pl.BlockSpec(arr.shape, lambda b: (0, 0))

    # Explicit VMEM budget: scratch + (double-buffered) IO/param blocks, with margin.
    est = (n_f * (P_pad + 2 * padl) * 4            # activation scratch (f32)
           + 9 * c_in * P_pad * 2                  # layer-1 patches (bf16)
           + 9 * n_f * P_pad * 2                   # layer-2 patches (bf16)
           + 2 * (c_in + 1) * P_pad * 4            # channel/out blocks, double-buffered
           + 2 * (w1.size + w2.size + w3.size) * 2
           + 2 * (mask.size + bvec.size) * 4)
    vmem_limit = int(min(max(2 * est, 16 << 20), 100 << 20))

    out = pl.pallas_call(
        kernel,
        out_shape=jax.ShapeDtypeStruct((B, 1, P_pad), jnp.float32),
        grid_spec=pltpu.PrefetchScalarGridSpec(
            num_scalar_prefetch=0,
            grid=(B,),
            in_specs=chan_specs + [full2d(mask), full2d(w1), full2d(w2),
                                   full2d(w3), full2d(bvec)],
            out_specs=pl.BlockSpec((1, 1, P_pad), lambda b: (b, 0, 0)),
            scratch_shapes=[pltpu.VMEM((n_f, P_pad + 2 * padl), jnp.float32),  # halo act
                            pltpu.VMEM((9 * c_in, P_pad), jnp.bfloat16),       # L1 patches
                            pltpu.VMEM((9 * n_f, P_pad), jnp.bfloat16)],       # L2 patches
        ),
        compiler_params=pltpu.CompilerParams(
            dimension_semantics=("parallel",),
            vmem_limit_bytes=vmem_limit),
    )(*chans3, mask, w1, w2, w3, bvec)
    return out.reshape(B, P_pad)


# ----------------------------------------------------------------------------
# Deterministic parameter construction (mirrors CnnBlock.__init__ + weights_init)
# ----------------------------------------------------------------------------
def init_cnn_block_params(key, c_in, n_f):
    k1, k2, k3 = jax.random.split(key, 3)

    def conv_w(k, ci, co):
        # weights_init: lim = sqrt(6 / (out + in) / kh / kw), bias = 0
        lim = (6.0 / (co + ci) / 9.0) ** 0.5
        return jax.random.uniform(k, (3, 3, ci, co), jnp.float32, -lim, lim)

    w1 = conv_w(k1, c_in, n_f)
    w2 = conv_w(k2, n_f, n_f)
    w3 = conv_w(k3, n_f, 1)

    # host-side reshape to im2col layout: row index = (dy*3 + dx)*c_in + c  (tap-major).
    w1mat = jnp.transpose(w1, (3, 0, 1, 2)).reshape(n_f, 9 * c_in).astype(jnp.bfloat16)
    w2mat = jnp.transpose(w2, (3, 0, 1, 2)).reshape(n_f, 9 * n_f).astype(jnp.bfloat16)
    # layer-3 weights as (tap, in_channel), padded to 16 rows for sublane alignment.
    w3mat = jnp.zeros((16, n_f), jnp.float32).at[:9, :].set(w3.reshape(9, n_f))
    w3mat = w3mat.astype(jnp.bfloat16)

    # packed per-filter scalars: cols = [b1, a1, b2, a2, b3, 0, 0, 0]
    # (biases zero per weights_init; PReLU slopes zero per nn.PReLU(init=0.0))
    bvec = jnp.zeros((n_f, 8), jnp.float32)
    return (w1mat, w2mat, w3mat, bvec)


def make_edge_mask(H, W, P_pad):
    p = jnp.arange(P_pad, dtype=jnp.int32)
    x = p % W
    valid = p < (H * W)
    not_left = jnp.where(valid & (x != 0), 1.0, 0.0).astype(jnp.float32)
    not_right = jnp.where(valid & (x != W - 1), 1.0, 0.0).astype(jnp.float32)
    return jnp.stack([not_left, not_right], axis=0)     # (2, P_pad)


def spectral_norm(mat, iters=30):
    v = jnp.ones((mat.shape[1],), jnp.float32) / jnp.sqrt(float(mat.shape[1]))
    for _ in range(iters):
        u = mat @ v
        v = mat.T @ u
        v = v / jnp.linalg.norm(v)
    return jnp.linalg.norm(mat @ v)


# ----------------------------------------------------------------------------
# Jitted forward: learned primal-dual iterations
# ----------------------------------------------------------------------------
def _pad_lanes(x, p_pad):
    b, p = x.shape
    if p == p_pad:
        return x
    return jnp.pad(x, ((0, 0), (0, p_pad - p)))


def _forward_impl(params, x, *, img_shape, sino_shape):
    H, W = img_shape
    Hs, Ws = sino_shape
    n_img, n_sino = H * W, Hs * Ws
    Pi, Ps = _round_up(n_img, 128), _round_up(n_sino, 128)
    B = x.shape[0]

    sino = x.astype(jnp.float32).reshape(B, n_sino)
    sino_scaled = _pad_lanes(sino * params["inv_norm"], Ps)

    # primal/dual state kept in lane-padded layout across iterations
    primal = jnp.zeros((B, Pi), jnp.float32)
    dual = jnp.zeros((B, Ps), jnp.float32)

    for primal_params, dual_params in params["iters"]:
        # dual update: dual += dual_block([dual, A(primal)/||A||, sino/||A||])
        evalop = apply_linear(primal[:, :n_img], params["A_op"], n_sino)
        dual = cnn_block_fused((dual, _pad_lanes(evalop, Ps), sino_scaled),
                               params["mask_sino"], dual_params, Hs, Ws)

        # primal update: primal += primal_block([primal, A^T(dual)/||A||])
        evalop = apply_linear(dual[:, :n_sino], params["A_adj"], n_img)
        primal = cnn_block_fused((primal, _pad_lanes(evalop, Pi)),
                                 params["mask_img"], primal_params, H, W)

    # primal[:, 0:1, :] in NCHW (primal has a single channel)
    return primal[:, :n_img].reshape(B, 1, H, W)


class IterativeNetworkPallas:
    def __init__(self, key, img_shape, sino_shape, n_iterations=3, n_filters=32):
        self.img_shape = tuple(img_shape)        # primal (image) domain (H, W)
        self.sino_shape = tuple(sino_shape)      # dual (sinogram) domain (Hs, Ws)
        self.n_iterations = n_iterations

        H, W = self.img_shape
        Hs, Ws = self.sino_shape
        n_img, n_sino = H * W, Hs * Ws
        keys = jax.random.split(key, 1 + 2 * n_iterations)

        # Deterministic synthetic forward operator A: image -> sinogram (dense stand-in).
        # TODO(synk): replace with a real Radon forward/adjoint operator.
        A = jax.random.normal(keys[0], (n_img, n_sino), jnp.float32) / jnp.sqrt(float(n_img))
        norm = spectral_norm(A)
        A_s = A / norm

        # Fold 1/||A|| into the operator, store in bf16, zero-pad to tile multiples.
        Kp = _round_up(n_img, 256)
        Np = _round_up(n_sino, 256)
        A_op = (jnp.zeros((Kp, Np), jnp.bfloat16)
                .at[:n_img, :n_sino].set(A_s.astype(jnp.bfloat16)))
        A_adj = (jnp.zeros((Np, Kp), jnp.bfloat16)
                 .at[:n_sino, :n_img].set(A_s.T.astype(jnp.bfloat16)))

        Pi, Ps = _round_up(n_img, 128), _round_up(n_sino, 128)

        iters = []
        for i in range(n_iterations):
            primal_params = init_cnn_block_params(keys[1 + 2 * i], 2, n_filters)
            dual_params = init_cnn_block_params(keys[2 + 2 * i], 3, n_filters)
            iters.append((primal_params, dual_params))

        self.params = {
            "A_op": A_op,
            "A_adj": A_adj,
            "inv_norm": jnp.asarray(1.0 / norm, jnp.float32),
            "mask_img": make_edge_mask(H, W, Pi),
            "mask_sino": make_edge_mask(Hs, Ws, Ps),
            "iters": iters,
        }

        self._fwd = jax.jit(functools.partial(
            _forward_impl, img_shape=self.img_shape, sino_shape=self.sino_shape))

    def forward(self, input_sinogram_nchw):
        return self._fwd(self.params, input_sinogram_nchw)


if __name__ == "__main__":
    key = jax.random.PRNGKey(0)
    k_net, k_in = jax.random.split(key)

    B = 2
    IMG = (16, 16)      # primal / image domain
    SINO = (12, 16)     # dual / sinogram domain

    net = IterativeNetworkPallas(k_net, IMG, SINO, n_iterations=3, n_filters=32)

    input_sinogram = jax.random.normal(k_in, (B, 1, SINO[0], SINO[1]), jnp.float32)

    out = net.forward(input_sinogram)
    out = jax.block_until_ready(out)

    assert out.shape == (B, 1, IMG[0], IMG[1]), out.shape
    assert bool(jnp.all(jnp.isfinite(out)))
    print("KERNEL_OK")
</pallas_src>

<mosaic_0001>
module attributes {stable_mosaic.version = 11 : i64} {
  func.func @_matmul_kernel(%arg0: i32, %arg1: i32, %arg2: i32, %arg3: memref<8x256xbf16, #tpu.memory_space<vmem>>, %arg4: memref<256x256xbf16, #tpu.memory_space<vmem>>, %arg5: memref<8x256xbf16, #tpu.memory_space<vmem>>, %arg6: memref<8x256xf32, #tpu.memory_space<vmem>>) attributes {dimension_semantics = [#tpu.dimension_semantics<parallel>, #tpu.dimension_semantics<parallel>, #tpu.dimension_semantics<arbitrary>], iteration_bounds = array<i64: 1, 1, 1>, scalar_prefetch = 0 : i64, scratch_operands = 1 : i64, tpu.core_type = #tpu.core_type<tc>, window_params = [{transform_indices = @transform_0, window_bounds = array<i64: 8, 256>}, {transform_indices = @transform_1, window_bounds = array<i64: 256, 256>}, {transform_indices = @transform_2, window_bounds = array<i64: 8, 256>}]} {
    %c0_i32 = arith.constant 0 : i32
    %0 = arith.cmpi eq, %arg2, %c0_i32 : i32
    %1 = arith.extui %0 : i1 to i32
    %c0_i32_0 = arith.constant 0 : i32
    %2 = arith.cmpi ne, %1, %c0_i32_0 : i32
    scf.if %2 {
      %cst_10 = arith.constant 0.000000e+00 : f32
      %12 = vector.broadcast %cst_10 : f32 to vector<8x256xf32>
      %c0_11 = arith.constant 0 : index
      %c0_12 = arith.constant 0 : index
      %13 = vector.load %arg6[%c0_11, %c0_12] : memref<8x256xf32, #tpu.memory_space<vmem>>, vector<8x256xf32>
      tpu.vector_store %arg6[%c0_11, %c0_12], %12 {strides = array<i32>} : memref<8x256xf32, #tpu.memory_space<vmem>>, vector<8x256xf32>,
    } else {
    }
    %c0 = arith.constant 0 : index
    %c0_1 = arith.constant 0 : index
    %3 = vector.load %arg6[%c0, %c0_1] : memref<8x256xf32, #tpu.memory_space<vmem>>, vector<8x256xf32>
    %c0_2 = arith.constant 0 : index
    %c0_3 = arith.constant 0 : index
    %4 = vector.load %arg3[%c0_2, %c0_3] : memref<8x256xbf16, #tpu.memory_space<vmem>>, vector<8x256xbf16>
    %c0_4 = arith.constant 0 : index
    %c0_5 = arith.constant 0 : index
    %5 = vector.load %arg4[%c0_4, %c0_5] : memref<256x256xbf16, #tpu.memory_space<vmem>>, vector<256x256xbf16>
    %cst = arith.constant dense<0.000000e+00> : vector<8x256xf32>
    %6 = tpu.matmul %4, %5, %cst {dimension_numbers = #tpu.dot_dimension_numbers<[1], [0], [0], [1], [0, 0, 1, 1], [], []>} : vector<8x256xbf16>, vector<256x256xbf16>, vector<8x256xf32> -> vector<8x256xf32>
    %7 = arith.addf %3, %6 : vector<8x256xf32>
    %c0_6 = arith.constant 0 : index
    %c0_7 = arith.constant 0 : index
    %8 = vector.load %arg6[%c0_6, %c0_7] : memref<8x256xf32, #tpu.memory_space<vmem>>, vector<8x256xf32>
    tpu.vector_store %arg6[%c0_6, %c0_7], %7 {strides = array<i32>} : memref<8x256xf32, #tpu.memory_space<vmem>>, vector<8x256xf32>,
    %c0_i32_8 = arith.constant 0 : i32
    %9 = arith.cmpi eq, %arg2, %c0_i32_8 : i32
    %10 = arith.extui %9 : i1 to i32
    %c0_i32_9 = arith.constant 0 : i32
    %11 = arith.cmpi ne, %10, %c0_i32_9 : i32
    scf.if %11 {
      %c0_10 = arith.constant 0 : index
      %c0_11 = arith.constant 0 : index
      %12 = vector.load %arg6[%c0_10, %c0_11] : memref<8x256xf32, #tpu.memory_space<vmem>>, vector<8x256xf32>
      %13 = arith.truncf %12 : vector<8x256xf32> to vector<8x256xbf16>
      %c0_12 = arith.constant 0 : index
      %c0_13 = arith.constant 0 : index
      %14 = vector.load %arg5[%c0_12, %c0_13] : memref<8x256xbf16, #tpu.memory_space<vmem>>, vector<8x256xbf16>
      tpu.vector_store %arg5[%c0_12, %c0_13], %13 {strides = array<i32>} : memref<8x256xbf16, #tpu.memory_space<vmem>>, vector<8x256xbf16>,
    } else {
    }
    return
  }
  func.func @transform_0(%arg0: i32, %arg1: i32, %arg2: i32) -> (i32, i32) {
    %c0_i32 = arith.constant 0 : i32
    return %arg0, %arg2 : i32, i32
  }
  func.func @transform_1(%arg0: i32, %arg1: i32, %arg2: i32) -> (i32, i32) {
    %c0_i32 = arith.constant 0 : i32
    return %arg2, %arg1 : i32, i32
  }
  func.func @transform_2(%arg0: i32, %arg1: i32, %arg2: i32) -> (i32, i32) {
    %c0_i32 = arith.constant 0 : i32
    return %arg0, %arg1 : i32, i32
  }
}

module attributes {stable_mosaic.version = 11 : i64} {
  func.func @_matmul_kernel(%arg0: i32, %arg1: i32, %arg2: i32, %arg3: memref<8x256xbf16, #tpu.memory_space<vmem>>, %arg4: memref<256x256xbf16, #tpu.memory_space<vmem>>, %arg5: memref<8x256xbf16, #tpu.memory_space<vmem>>, %arg6: memref<8x256xf32, #tpu.memory_space<vmem>>) attributes {dimension_semantics = [#tpu.dimension_semantics<parallel>, #tpu.dimension_semantics<parallel>, #tpu.dimension_semantics<arbitrary>], iteration_bounds = array<i64: 1, 1, 1>, scalar_prefetch = 0 : i64, scratch_operands = 1 : i64, tpu.core_type = #tpu.core_type<tc>, window_params = [{transform_indices = @transform_0, window_bounds = array<i64: 8, 256>}, {transform_indices = @transform_1, window_bounds = array<i64: 256, 256>}, {transform_indices = @transform_2, window_bounds = array<i64: 8, 256>}]} {
    %c0_i32 = arith.constant 0 : i32
    %0 = arith.cmpi eq, %arg2, %c0_i32 : i32
    %1 = arith.extui %0 : i1 to i32
    %c0_i32_0 = arith.constant 0 : i32
    %2 = arith.cmpi ne, %1, %c0_i32_0 : i32
    scf.if %2 {
      %cst_10 = arith.constant 0.000000e+00 : f32
      %12 = vector.broadcast %cst_10 : f32 to vector<8x256xf32>
      %c0_11 = arith.constant 0 : index
      %c0_12 = arith.constant 0 : index
      %13 = vector.load %arg6[%c0_11, %c0_12] : memref<8x256xf32, #tpu.memory_space<vmem>>, vector<8x256xf32>
      tpu.vector_store %arg6[%c0_11, %c0_12], %12 {strides = array<i32>} : memref<8x256xf32, #tpu.memory_space<vmem>>, vector<8x256xf32>,
    } else {
    }
    %c0 = arith.constant 0 : index
    %c0_1 = arith.constant 0 : index
    %3 = vector.load %arg6[%c0, %c0_1] : memref<8x256xf32, #tpu.memory_space<vmem>>, vector<8x256xf32>
    %c0_2 = arith.constant 0 : index
    %c0_3 = arith.constant 0 : index
    %4 = vector.load %arg3[%c0_2, %c0_3] : memref<8x256xbf16, #tpu.memory_space<vmem>>, vector<8x256xbf16>
    %c0_4 = arith.constant 0 : index
    %c0_5 = arith.constant 0 : index
    %5 = vector.load %arg4[%c0_4, %c0_5] : memref<256x256xbf16, #tpu.memory_space<vmem>>, vector<256x256xbf16>
    %cst = arith.constant dense<0.000000e+00> : vector<8x256xf32>
    %6 = tpu.matmul %4, %5, %cst {dimension_numbers = #tpu.dot_dimension_numbers<[1], [0], [0], [1], [0, 0, 1, 1], [], []>} : vector<8x256xbf16>, vector<256x256xbf16>, vector<8x256xf32> -> vector<8x256xf32>
    %7 = arith.addf %3, %6 : vector<8x256xf32>
    %c0_6 = arith.constant 0 : index
    %c0_7 = arith.constant 0 : index
    %8 = vector.load %arg6[%c0_6, %c0_7] : memref<8x256xf32, #tpu.memory_space<vmem>>, vector<8x256xf32>
    tpu.vector_store %arg6[%c0_6, %c0_7], %7 {strides = array<i32>} : memref<8x256xf32, #tpu.memory_space<vmem>>, vector<8x256xf32>,
    %c0_i32_8 = arith.constant 0 : i32
    %9 = arith.cmpi eq, %arg2, %c0_i32_8 : i32
    %10 = arith.extui %9 : i1 to i32
    %c0_i32_9 = arith.constant 0 : i32
    %11 = arith.cmpi ne, %10, %c0_i32_9 : i32
    scf.if %11 {
      %c0_10 = arith.constant 0 : index
      %c0_11 = arith.constant 0 : index
      %12 = vector.load %arg6[%c0_10, %c0_11] : memref<8x256xf32, #tpu.memory_space<vmem>>, vector<8x256xf32>
      %13 = arith.truncf %12 : vector<8x256xf32> to vector<8x256xbf16>
      %c0_12 = arith.constant 0 : index
      %c0_13 = arith.constant 0 : index
      %14 = vector.load %arg5[%c0_12, %c0_13] : memref<8x256xbf16, #tpu.memory_space<vmem>>, vector<8x256xbf16>
      tpu.vector_store %arg5[%c0_12, %c0_13], %13 {strides = array<i32>} : memref<8x256xbf16, #tpu.memory_space<vmem>>, vector<8x256xbf16>,
    } else {
    }
    return
  }
  func.func @transform_0(%arg0: i32, %arg1: i32, %arg2: i32) -> (i32, i32) {
    %c0_i32 = arith.constant 0 : i32
    return %arg0, %arg2 : i32, i32
  }
  func.func @transform_1(%arg0: i32, %arg1: i32, %arg2: i32) -> (i32, i32) {
    %c0_i32 = arith.constant 0 : i32
    return %arg2, %arg1 : i32, i32
  }
  func.func @transform_2(%arg0: i32, %arg1: i32, %arg2: i32) -> (i32, i32) {
    %c0_i32 = arith.constant 0 : i32
    return %arg0, %arg1 : i32, i32
  }
}

module attributes {stable_mosaic.version = 11 : i64} {
  func.func @_fused_block_kernel(%arg0: i32, %arg1: memref<1x1x256xf32, #tpu.memory_space<vmem>>, %arg2: memref<1x1x256xbf16, #tpu.memory_space<vmem>>, %arg3: memref<1x1x256xf32, #tpu.memory_space<vmem>>, %arg4: memref<2x256xf32, #tpu.memory_space<vmem>>, %arg5: memref<32x27xbf16, #tpu.memory_space<vmem>>, %arg6: memref<32x288xbf16, #tpu.memory_space<vmem>>, %arg7: memref<16x32xbf16, #tpu.memory_space<vmem>>, %arg8: memref<32x8xf32, #tpu.memory_space<vmem>>, %arg9: memref<1x1x256xf32, #tpu.memory_space<vmem>>, %arg10: memref<32x512xf32, #tpu.memory_space<vmem>>, %arg11: memref<27x256xbf16, #tpu.memory_space<vmem>>, %arg12: memref<288x256xbf16, #tpu.memory_space<vmem>>) attributes {dimension_semantics = [#tpu.dimension_semantics<parallel>], iteration_bounds = array<i64: 2>, scalar_prefetch = 0 : i64, scratch_operands = 3 : i64, tpu.core_type = #tpu.core_type<tc>, window_params = [{transform_indices = @transform_0, window_bounds = array<i64: 1, 1, 256>}, {transform_indices = @transform_1, window_bounds = array<i64: 1, 1, 256>}, {transform_indices = @transform_2, window_bounds = array<i64: 1, 1, 256>}, {pipeline_mode = #tpu.pipeline_mode<synchronous>, transform_indices = @transform_3, window_bounds = array<i64: 2, 256>}, {pipeline_mode = #tpu.pipeline_mode<synchronous>, transform_indices = @transform_4, window_bounds = array<i64: 32, 27>}, {pipeline_mode = #tpu.pipeline_mode<synchronous>, transform_indices = @transform_5, window_bounds = array<i64: 32, 288>}, {pipeline_mode = #tpu.pipeline_mode<synchronous>, transform_indices = @transform_6, window_bounds = array<i64: 16, 32>}, {pipeline_mode = #tpu.pipeline_mode<synchronous>, transform_indices = @transform_7, window_bounds = array<i64: 32, 8>}, {transform_indices = @transform_8, window_bounds = array<i64: 1, 1, 256>}]} {
    %cst = arith.constant 0.000000e+00 : f32
    %0 = vector.broadcast %cst : f32 to vector<32x128xf32>
    %c0 = arith.constant 0 : index
    %c0_0 = arith.constant 0 : index
    %1 = vector.load %arg10[%c0, %c0_0] : memref<32x512xf32, #tpu.memory_space<vmem>>, vector<32x128xf32>
    tpu.vector_store %arg10[%c0, %c0_0], %0 {strides = array<i32>} : memref<32x512xf32, #tpu.memory_space<vmem>>, vector<32x128xf32>,
    %cst_1 = arith.constant 0.000000e+00 : f32
    %2 = vector.broadcast %cst_1 : f32 to vector<32x192xf32>
    %c0_2 = arith.constant 0 : index
    %c320 = arith.constant 320 : index
    %3 = vector.load %arg10[%c0_2, %c320] : memref<32x512xf32, #tpu.memory_space<vmem>>, vector<32x192xf32>
    tpu.vector_store %arg10[%c0_2, %c320], %2 {strides = array<i32>} : memref<32x512xf32, #tpu.memory_space<vmem>>, vector<32x192xf32>,
    %c0_3 = arith.constant 0 : index
    %c0_4 = arith.constant 0 : index
    %4 = vector.load %arg4[%c0_3, %c0_4] : memref<2x256xf32, #tpu.memory_space<vmem>>, vector<1x256xf32>
    %c1 = arith.constant 1 : index
    %c0_5 = arith.constant 0 : index
    %5 = vector.load %arg4[%c1, %c0_5] : memref<2x256xf32, #tpu.memory_space<vmem>>, vector<1x256xf32>
    %c0_6 = arith.constant 0 : index
    %c0_7 = arith.constant 0 : index
    %6 = vector.load %arg8[%c0_6, %c0_7] : memref<32x8xf32, #tpu.memory_space<vmem>>, vector<32x1xf32>
    %c0_8 = arith.constant 0 : index
    %c1_9 = arith.constant 1 : index
    %7 = vector.load %arg8[%c0_8, %c1_9] : memref<32x8xf32, #tpu.memory_space<vmem>>, vector<32x1xf32>
    %c0_10 = arith.constant 0 : index
    %c2 = arith.constant 2 : index
    %8 = vector.load %arg8[%c0_10, %c2] : memref<32x8xf32, #tpu.memory_space<vmem>>, vector<32x1xf32>
    %c0_11 = arith.constant 0 : index
    %c3 = arith.constant 3 : index
    %9 = vector.load %arg8[%c0_11, %c3] : memref<32x8xf32, #tpu.memory_space<vmem>>, vector<32x1xf32>
    %c0_12 = arith.constant 0 : index
    %c4 = arith.constant 4 : index
    %10 = vector.load %arg8[%c0_12, %c4] : memref<32x8xf32, #tpu.memory_space<vmem>>, vector<1x1xf32>
    %c0_13 = arith.constant 0 : index
    %c0_14 = arith.constant 0 : index
    %c0_15 = arith.constant 0 : index
    %11 = vector.load %arg1[%c0_13, %c0_14, %c0_15] : memref<1x1x256xf32, #tpu.memory_space<vmem>>, vector<1x1x256xf32>
    %12 = vector.shape_cast %11 : vector<1x1x256xf32> to vector<1x256xf32>
    %13 = vector.extract_strided_slice %12 {offsets = [0, 0], sizes = [1, 192], strides = [1, 1]} : vector<1x256xf32> to vector<1x192xf32>
    %c0_16 = arith.constant 0 : index
    %c128 = arith.constant 128 : index
    %14 = vector.load %arg10[%c0_16, %c128] : memref<32x512xf32, #tpu.memory_space<vmem>>, vector<1x192xf32>
    tpu.vector_store %arg10[%c0_16, %c128], %13 {strides = array<i32>} : memref<32x512xf32, #tpu.memory_space<vmem>>, vector<1x192xf32>,
    %c0_17 = arith.constant 0 : index
    %c0_18 = arith.constant 0 : index
    %c0_19 = arith.constant 0 : index
    %15 = vector.load %arg2[%c0_17, %c0_18, %c0_19] : memref<1x1x256xbf16, #tpu.memory_space<vmem>>, vector<1x1x256xbf16>
    %16 = vector.shape_cast %15 : vector<1x1x256xbf16> to vector<1x256xbf16>
    %17 = vector.extract_strided_slice %16 {offsets = [0, 0], sizes = [1, 192], strides = [1, 1]} : vector<1x256xbf16> to vector<1x192xbf16>
    %18 = arith.extf %17 : vector<1x192xbf16> to vector<1x192xf32>
    %c1_20 = arith.constant 1 : index
    %c128_21 = arith.constant 128 : index
    %19 = vector.load %arg10[%c1_20, %c128_21] : memref<32x512xf32, #tpu.memory_space<vmem>>, vector<1x192xf32>
    tpu.vector_store %arg10[%c1_20, %c128_21], %18 {strides = array<i32>} : memref<32x512xf32, #tpu.memory_space<vmem>>, vector<1x192xf32>,
    %c0_22 = arith.constant 0 : index
    %c0_23 = arith.constant 0 : index
    %c0_24 = arith.constant 0 : index
    %20 = vector.load %arg3[%c0_22, %c0_23, %c0_24] : memref<1x1x256xf32, #tpu.memory_space<vmem>>, vector<1x1x256xf32>
    %21 = vector.shape_cast %20 : vector<1x1x256xf32> to vector<1x256xf32>
    %22 = vector.extract_strided_slice %21 {offsets = [0, 0], sizes = [1, 192], strides = [1, 1]} : vector<1x256xf32> to vector<1x192xf32>
    %c2_25 = arith.constant 2 : index
    %c128_26 = arith.constant 128 : index
    %23 = vector.load %arg10[%c2_25, %c128_26] : memref<32x512xf32, #tpu.memory_space<vmem>>, vector<1x192xf32>
    tpu.vector_store %arg10[%c2_25, %c128_26], %22 {strides = array<i32>} : memref<32x512xf32, #tpu.memory_space<vmem>>, vector<1x192xf32>,
    %c0_27 = arith.constant 0 : index
    %c111 = arith.constant 111 : index
    %24 = vector.load %arg10[%c0_27, %c111] : memref<32x512xf32, #tpu.memory_space<vmem>>, vector<3x256xf32>
    %25 = vector.broadcast %4 : vector<1x256xf32> to vector<3x256xf32>
    %26 = arith.mulf %24, %25 : vector<3x256xf32>
    %27 = arith.truncf %26 : vector<3x256xf32> to vector<3x256xbf16>
    %c0_28 = arith.constant 0 : index
    %c0_29 = arith.constant 0 : index
    %28 = vector.load %arg11[%c0_28, %c0_29] : memref<27x256xbf16, #tpu.memory_space<vmem>>, vector<3x256xbf16>
    tpu.vector_store %arg11[%c0_28, %c0_29], %27 {strides = array<i32>} : memref<27x256xbf16, #tpu.memory_space<vmem>>, vector<3x256xbf16>,
    %c0_30 = arith.constant 0 : index
    %c112 = arith.constant 112 : index
    %29 = vector.load %arg10[%c0_30, %c112] : memref<32x512xf32, #tpu.memory_space<vmem>>, vector<3x256xf32>
    %30 = arith.truncf %29 : vector<3x256xf32> to vector<3x256xbf16>
    %c3_31 = arith.constant 3 : index
    %c0_32 = arith.constant 0 : index
    %31 = vector.load %arg11[%c3_31, %c0_32] : memref<27x256xbf16, #tpu.memory_space<vmem>>, vector<3x256xbf16>
    tpu.vector_store %arg11[%c3_31, %c0_32], %30 {strides = array<i32>} : memref<27x256xbf16, #tpu.memory_space<vmem>>, vector<3x256xbf16>,
    %c0_33 = arith.constant 0 : index
    %c113 = arith.constant 113 : index
    %32 = vector.load %arg10[%c0_33, %c113] : memref<32x512xf32, #tpu.memory_space<vmem>>, vector<3x256xf32>
    %33 = vector.broadcast %5 : vector<1x256xf32> to vector<3x256xf32>
    %34 = arith.mulf %32, %33 : vector<3x256xf32>
    %35 = arith.truncf %34 : vector<3x256xf32> to vector<3x256xbf16>
    %c6 = arith.constant 6 : index
    %c0_34 = arith.constant 0 : index
    %36 = vector.load %arg11[%c6, %c0_34] : memref<27x256xbf16, #tpu.memory_space<vmem>>, vector<3x256xbf16>
    tpu.vector_store %arg11[%c6, %c0_34], %35 {strides = array<i32>} : memref<27x256xbf16, #tpu.memory_space<vmem>>, vector<3x256xbf16>,
    %c0_35 = arith.constant 0 : index
    %c127 = arith.constant 127 : index
    %37 = vector.load %arg10[%c0_35, %c127] : memref<32x512xf32, #tpu.memory_space<vmem>>, vector<3x256xf32>
    %38 = vector.broadcast %4 : vector<1x256xf32> to vector<3x256xf32>
    %39 = arith.mulf %37, %38 : vector<3x256xf32>
    %40 = arith.truncf %39 : vector<3x256xf32> to vector<3x256xbf16>
    %c9 = arith.constant 9 : index
    %c0_36 = arith.constant 0 : index
    %41 = vector.load %arg11[%c9, %c0_36] : memref<27x256xbf16, #tpu.memory_space<vmem>>, vector<3x256xbf16>
    tpu.vector_store %arg11[%c9, %c0_36], %40 {strides = array<i32>} : memref<27x256xbf16, #tpu.memory_space<vmem>>, vector<3x256xbf16>,
    %c0_37 = arith.constant 0 : index
    %c128_38 = arith.constant 128 : index
    %42 = vector.load %arg10[%c0_37, %c128_38] : memref<32x512xf32, #tpu.memory_space<vmem>>, vector<3x256xf32>
    %43 = arith.truncf %42 : vector<3x256xf32> to vector<3x256xbf16>
    %c12 = arith.constant 12 : index
    %c0_39 = arith.constant 0 : index
    %44 = vector.load %arg11[%c12, %c0_39] : memref<27x256xbf16, #tpu.memory_space<vmem>>, vector<3x256xbf16>
    tpu.vector_store %arg11[%c12, %c0_39], %43 {strides = array<i32>} : memref<27x256xbf16, #tpu.memory_space<vmem>>, vector<3x256xbf16>,
    %c0_40 = arith.constant 0 : index
    %c129 = arith.constant 129 : index
    %45 = vector.load %arg10[%c0_40, %c129] : memref<32x512xf32, #tpu.memory_space<vmem>>, vector<3x256xf32>
    %46 = vector.broadcast %5 : vector<1x256xf32> to vector<3x256xf32>
    %47 = arith.mulf %45, %46 : vector<3x256xf32>
    %48 = arith.truncf %47 : vector<3x256xf32> to vector<3x256xbf16>
    %c15 = arith.constant 15 : index
    %c0_41 = arith.constant 0 : index
    %49 = vector.load %arg11[%c15, %c0_41] : memref<27x256xbf16, #tpu.memory_space<vmem>>, vector<3x256xbf16>
    tpu.vector_store %arg11[%c15, %c0_41], %48 {strides = array<i32>} : memref<27x256xbf16, #tpu.memory_space<vmem>>, vector<3x256xbf16>,
    %c0_42 = arith.constant 0 : index
    %c143 = arith.constant 143 : index
    %50 = vector.load %arg10[%c0_42, %c143] : memref<32x512xf32, #tpu.memory_space<vmem>>, vector<3x256xf32>
    %51 = vector.broadcast %4 : vector<1x256xf32> to vector<3x256xf32>
    %52 = arith.mulf %50, %51 : vector<3x256xf32>
    %53 = arith.truncf %52 : vector<3x256xf32> to vector<3x256xbf16>
    %c18 = arith.constant 18 : index
    %c0_43 = arith.constant 0 : index
    %54 = vector.load %arg11[%c18, %c0_43] : memref<27x256xbf16, #tpu.memory_space<vmem>>, vector<3x256xbf16>
    tpu.vector_store %arg11[%c18, %c0_43], %53 {strides = array<i32>} : memref<27x256xbf16, #tpu.memory_space<vmem>>, vector<3x256xbf16>,
    %c0_44 = arith.constant 0 : index
    %c144 = arith.constant 144 : index
    %55 = vector.load %arg10[%c0_44, %c144] : memref<32x512xf32, #tpu.memory_space<vmem>>, vector<3x256xf32>
    %56 = arith.truncf %55 : vector<3x256xf32> to vector<3x256xbf16>
    %c21 = arith.constant 21 : index
    %c0_45 = arith.constant 0 : index
    %57 = vector.load %arg11[%c21, %c0_45] : memref<27x256xbf16, #tpu.memory_space<vmem>>, vector<3x256xbf16>
    tpu.vector_store %arg11[%c21, %c0_45], %56 {strides = array<i32>} : memref<27x256xbf16, #tpu.memory_space<vmem>>, vector<3x256xbf16>,
    %c0_46 = arith.constant 0 : index
    %c145 = arith.constant 145 : index
    %58 = vector.load %arg10[%c0_46, %c145] : memref<32x512xf32, #tpu.memory_space<vmem>>, vector<3x256xf32>
    %59 = vector.broadcast %5 : vector<1x256xf32> to vector<3x256xf32>
    %60 = arith.mulf %58, %59 : vector<3x256xf32>
    %61 = arith.truncf %60 : vector<3x256xf32> to vector<3x256xbf16>
    %c24 = arith.constant 24 : index
    %c0_47 = arith.constant 0 : index
    %62 = vector.load %arg11[%c24, %c0_47] : memref<27x256xbf16, #tpu.memory_space<vmem>>, vector<3x256xbf16>
    tpu.vector_store %arg11[%c24, %c0_47], %61 {strides = array<i32>} : memref<27x256xbf16, #tpu.memory_space<vmem>>, vector<3x256xbf16>,
    %c0_48 = arith.constant 0 : index
    %c0_49 = arith.constant 0 : index
    %63 = vector.load %arg5[%c0_48, %c0_49] : memref<32x27xbf16, #tpu.memory_space<vmem>>, vector<32x27xbf16>
    %c0_50 = arith.constant 0 : index
    %c0_51 = arith.constant 0 : index
    %64 = vector.load %arg11[%c0_50, %c0_51] : memref<27x256xbf16, #tpu.memory_space<vmem>>, vector<27x256xbf16>
    %cst_52 = arith.constant dense<0.000000e+00> : vector<32x256xf32>
    %65 = tpu.matmul %63, %64, %cst_52 {dimension_numbers = #tpu.dot_dimension_numbers<[1], [0], [0], [1], [0, 0, 1, 1], [], []>} : vector<32x27xbf16>, vector<27x256xbf16>, vector<32x256xf32> -> vector<32x256xf32>
    %66 = vector.broadcast %6 : vector<32x1xf32> to vector<32x256xf32>
    %67 = arith.addf %65, %66 : vector<32x256xf32>
    %cst_53 = arith.constant 0.000000e+00 : f32
    %68 = vector.broadcast %cst_53 : f32 to vector<32x256xf32>
    %69 = arith.cmpf oge, %67, %68 : vector<32x256xf32>
    %70 = vector.broadcast %7 : vector<32x1xf32> to vector<32x256xf32>
    %71 = arith.mulf %67, %70 : vector<32x256xf32>
    %72 = arith.select %69, %67, %71 : vector<32x256xi1>, vector<32x256xf32>
    %73 = vector.extract_strided_slice %72 {offsets = [0, 0], sizes = [32, 192], strides = [1, 1]} : vector<32x256xf32> to vector<32x192xf32>
    %c0_54 = arith.constant 0 : index
    %c128_55 = arith.constant 128 : index
    %74 = vector.load %arg10[%c0_54, %c128_55] : memref<32x512xf32, #tpu.memory_space<vmem>>, vector<32x192xf32>
    tpu.vector_store %arg10[%c0_54, %c128_55], %73 {strides = array<i32>} : memref<32x512xf32, #tpu.memory_space<vmem>>, vector<32x192xf32>,
    %c0_56 = arith.constant 0 : index
    %c111_57 = arith.constant 111 : index
    %75 = vector.load %arg10[%c0_56, %c111_57] : memref<32x512xf32, #tpu.memory_space<vmem>>, vector<32x256xf32>
    %76 = vector.broadcast %4 : vector<1x256xf32> to vector<32x256xf32>
    %77 = arith.mulf %75, %76 : vector<32x256xf32>
    %78 = arith.truncf %77 : vector<32x256xf32> to vector<32x256xbf16>
    %c0_58 = arith.constant 0 : index
    %c0_59 = arith.constant 0 : index
    %79 = vector.load %arg12[%c0_58, %c0_59] : memref<288x256xbf16, #tpu.memory_space<vmem>>, vector<32x256xbf16>
    tpu.vector_store %arg12[%c0_58, %c0_59], %78 {strides = array<i32>} : memref<288x256xbf16, #tpu.memory_space<vmem>>, vector<32x256xbf16>,
    %c0_60 = arith.constant 0 : index
    %c112_61 = arith.constant 112 : index
    %80 = vector.load %arg10[%c0_60, %c112_61] : memref<32x512xf32, #tpu.memory_space<vmem>>, vector<32x256xf32>
    %81 = arith.truncf %80 : vector<32x256xf32> to vector<32x256xbf16>
    %c32 = arith.constant 32 : index
    %c0_62 = arith.constant 0 : index
    %82 = vector.load %arg12[%c32, %c0_62] : memref<288x256xbf16, #tpu.memory_space<vmem>>, vector<32x256xbf16>
    tpu.vector_store %arg12[%c32, %c0_62], %81 {strides = array<i32>} : memref<288x256xbf16, #tpu.memory_space<vmem>>, vector<32x256xbf16>,
    %c0_63 = arith.constant 0 : index
    %c113_64 = arith.constant 113 : index
    %83 = vector.load %arg10[%c0_63, %c113_64] : memref<32x512xf32, #tpu.memory_space<vmem>>, vector<32x256xf32>
    %84 = vector.broadcast %5 : vector<1x256xf32> to vector<32x256xf32>
    %85 = arith.mulf %83, %84 : vector<32x256xf32>
    %86 = arith.truncf %85 : vector<32x256xf32> to vector<32x256xbf16>
    %c64 = arith.constant 64 : index
    %c0_65 = arith.constant 0 : index
    %87 = vector.load %arg12[%c64, %c0_65] : memref<288x256xbf16, #tpu.memory_space<vmem>>, vector<32x256xbf16>
    tpu.vector_store %arg12[%c64, %c0_65], %86 {strides = array<i32>} : memref<288x256xbf16, #tpu.memory_space<vmem>>, vector<32x256xbf16>,
    %c0_66 = arith.constant 0 : index
    %c127_67 = arith.constant 127 : index
    %88 = vector.load %arg10[%c0_66, %c127_67] : memref<32x512xf32, #tpu.memory_space<vmem>>, vector<32x256xf32>
    %89 = vector.broadcast %4 : vector<1x256xf32> to vector<32x256xf32>
    %90 = arith.mulf %88, %89 : vector<32x256xf32>
    %91 = arith.truncf %90 : vector<32x256xf32> to vector<32x256xbf16>
    %c96 = arith.constant 96 : index
    %c0_68 = arith.constant 0 : index
    %92 = vector.load %arg12[%c96, %c0_68] : memref<288x256xbf16, #tpu.memory_space<vmem>>, vector<32x256xbf16>
    tpu.vector_store %arg12[%c96, %c0_68], %91 {strides = array<i32>} : memref<288x256xbf16, #tpu.memory_space<vmem>>, vector<32x256xbf16>,
    %c0_69 = arith.constant 0 : index
    %c128_70 = arith.constant 128 : index
    %93 = vector.load %arg10[%c0_69, %c128_70] : memref<32x512xf32, #tpu.memory_space<vmem>>, vector<32x256xf32>
    %94 = arith.truncf %93 : vector<32x256xf32> to vector<32x256xbf16>
    %c128_71 = arith.constant 128 : index
    %c0_72 = arith.constant 0 : index
    %95 = vector.load %arg12[%c128_71, %c0_72] : memref<288x256xbf16, #tpu.memory_space<vmem>>, vector<32x256xbf16>
    tpu.vector_store %arg12[%c128_71, %c0_72], %94 {strides = array<i32>} : memref<288x256xbf16, #tpu.memory_space<vmem>>, vector<32x256xbf16>,
    %c0_73 = arith.constant 0 : index
    %c129_74 = arith.constant 129 : index
    %96 = vector.load %arg10[%c0_73, %c129_74] : memref<32x512xf32, #tpu.memory_space<vmem>>, vector<32x256xf32>
    %97 = vector.broadcast %5 : vector<1x256xf32> to vector<32x256xf32>
    %98 = arith.mulf %96, %97 : vector<32x256xf32>
    %99 = arith.truncf %98 : vector<32x256xf32> to vector<32x256xbf16>
    %c160 = arith.constant 160 : index
    %c0_75 = arith.constant 0 : index
    %100 = vector.load %arg12[%c160, %c0_75] : memref<288x256xbf16, #tpu.memory_space<vmem>>, vector<32x256xbf16>
    tpu.vector_store %arg12[%c160, %c0_75], %99 {strides = array<i32>} : memref<288x256xbf16, #tpu.memory_space<vmem>>, vector<32x256xbf16>,
    %c0_76 = arith.constant 0 : index
    %c143_77 = arith.constant 143 : index
    %101 = vector.load %arg10[%c0_76, %c143_77] : memref<32x512xf32, #tpu.memory_space<vmem>>, vector<32x256xf32>
    %102 = vector.broadcast %4 : vector<1x256xf32> to vector<32x256xf32>
    %103 = arith.mulf %101, %102 : vector<32x256xf32>
    %104 = arith.truncf %103 : vector<32x256xf32> to vector<32x256xbf16>
    %c192 = arith.constant 192 : index
    %c0_78 = arith.constant 0 : index
    %105 = vector.load %arg12[%c192, %c0_78] : memref<288x256xbf16, #tpu.memory_space<vmem>>, vector<32x256xbf16>
    tpu.vector_store %arg12[%c192, %c0_78], %104 {strides = array<i32>} : memref<288x256xbf16, #tpu.memory_space<vmem>>, vector<32x256xbf16>,
    %c0_79 = arith.constant 0 : index
    %c144_80 = arith.constant 144 : index
    %106 = vector.load %arg10[%c0_79, %c144_80] : memref<32x512xf32, #tpu.memory_space<vmem>>, vector<32x256xf32>
    %107 = arith.truncf %106 : vector<32x256xf32> to vector<32x256xbf16>
    %c224 = arith.constant 224 : index
    %c0_81 = arith.constant 0 : index
    %108 = vector.load %arg12[%c224, %c0_81] : memref<288x256xbf16, #tpu.memory_space<vmem>>, vector<32x256xbf16>
    tpu.vector_store %arg12[%c224, %c0_81], %107 {strides = array<i32>} : memref<288x256xbf16, #tpu.memory_space<vmem>>, vector<32x256xbf16>,
    %c0_82 = arith.constant 0 : index
    %c145_83 = arith.constant 145 : index
    %109 = vector.load %arg10[%c0_82, %c145_83] : memref<32x512xf32, #tpu.memory_space<vmem>>, vector<32x256xf32>
    %110 = vector.broadcast %5 : vector<1x256xf32> to vector<32x256xf32>
    %111 = arith.mulf %109, %110 : vector<32x256xf32>
    %112 = arith.truncf %111 : vector<32x256xf32> to vector<32x256xbf16>
    %c256 = arith.constant 256 : index
    %c0_84 = arith.constant 0 : index
    %113 = vector.load %arg12[%c256, %c0_84] : memref<288x256xbf16, #tpu.memory_space<vmem>>, vector<32x256xbf16>
    tpu.vector_store %arg12[%c256, %c0_84], %112 {strides = array<i32>} : memref<288x256xbf16, #tpu.memory_space<vmem>>, vector<32x256xbf16>,
    %c0_85 = arith.constant 0 : index
    %c0_86 = arith.constant 0 : index
    %114 = vector.load %arg6[%c0_85, %c0_86] : memref<32x288xbf16, #tpu.memory_space<vmem>>, vector<32x288xbf16>
    %c0_87 = arith.constant 0 : index
    %c0_88 = arith.constant 0 : index
    %115 = vector.load %arg12[%c0_87, %c0_88] : memref<288x256xbf16, #tpu.memory_space<vmem>>, vector<288x256xbf16>
    %cst_89 = arith.constant dense<0.000000e+00> : vector<32x256xf32>
    %116 = tpu.matmul %114, %115, %cst_89 {dimension_numbers = #tpu.dot_dimension_numbers<[1], [0], [0], [1], [0, 0, 1, 1], [], []>} : vector<32x288xbf16>, vector<288x256xbf16>, vector<32x256xf32> -> vector<32x256xf32>
    %117 = vector.broadcast %8 : vector<32x1xf32> to vector<32x256xf32>
    %118 = arith.addf %116, %117 : vector<32x256xf32>
    %cst_90 = arith.constant 0.000000e+00 : f32
    %119 = vector.broadcast %cst_90 : f32 to vector<32x256xf32>
    %120 = arith.cmpf oge, %118, %119 : vector<32x256xf32>
    %121 = vector.broadcast %9 : vector<32x1xf32> to vector<32x256xf32>
    %122 = arith.mulf %118, %121 : vector<32x256xf32>
    %123 = arith.select %120, %118, %122 : vector<32x256xi1>, vector<32x256xf32>
    %c0_91 = arith.constant 0 : index
    %c0_92 = arith.constant 0 : index
    %124 = vector.load %arg7[%c0_91, %c0_92] : memref<16x32xbf16, #tpu.memory_space<vmem>>, vector<16x32xbf16>
    %125 = arith.truncf %123 : vector<32x256xf32> to vector<32x256xbf16>
    %cst_93 = arith.constant dense<0.000000e+00> : vector<16x256xf32>
    %126 = tpu.matmul %124, %125, %cst_93 {dimension_numbers = #tpu.dot_dimension_numbers<[1], [0], [0], [1], [0, 0, 1, 1], [], []>} : vector<16x32xbf16>, vector<32x256xbf16>, vector<16x256xf32> -> vector<16x256xf32>
    %127 = vector.extract_strided_slice %126 {offsets = [0, 0], sizes = [9, 192], strides = [1, 1]} : vector<16x256xf32> to vector<9x192xf32>
    %c0_94 = arith.constant 0 : index
    %c128_95 = arith.constant 128 : index
    %128 = vector.load %arg10[%c0_94, %c128_95] : memref<32x512xf32, #tpu.memory_space<vmem>>, vector<9x192xf32>
    tpu.vector_store %arg10[%c0_94, %c128_95], %127 {strides = array<i32>} : memref<32x512xf32, #tpu.memory_space<vmem>>, vector<9x192xf32>,
    %c0_96 = arith.constant 0 : index
    %c111_97 = arith.constant 111 : index
    %129 = vector.load %arg10[%c0_96, %c111_97] : memref<32x512xf32, #tpu.memory_space<vmem>>, vector<1x256xf32>
    %130 = arith.mulf %129, %4 : vector<1x256xf32>
    %c1_98 = arith.constant 1 : index
    %c112_99 = arith.constant 112 : index
    %131 = vector.load %arg10[%c1_98, %c112_99] : memref<32x512xf32, #tpu.memory_space<vmem>>, vector<1x256xf32>
    %132 = arith.addf %130, %131 : vector<1x256xf32>
    %c2_100 = arith.constant 2 : index
    %c113_101 = arith.constant 113 : index
    %133 = vector.load %arg10[%c2_100, %c113_101] : memref<32x512xf32, #tpu.memory_space<vmem>>, vector<1x256xf32>
    %134 = arith.mulf %133, %5 : vector<1x256xf32>
    %135 = arith.addf %132, %134 : vector<1x256xf32>
    %c3_102 = arith.constant 3 : index
    %c127_103 = arith.constant 127 : index
    %136 = vector.load %arg10[%c3_102, %c127_103] : memref<32x512xf32, #tpu.memory_space<vmem>>, vector<1x256xf32>
    %137 = arith.mulf %136, %4 : vector<1x256xf32>
    %138 = arith.addf %135, %137 : vector<1x256xf32>
    %c4_104 = arith.constant 4 : index
    %c128_105 = arith.constant 128 : index
    %139 = vector.load %arg10[%c4_104, %c128_105] : memref<32x512xf32, #tpu.memory_space<vmem>>, vector<1x256xf32>
    %140 = arith.addf %138, %139 : vector<1x256xf32>
    %c5 = arith.constant 5 : index
    %c129_106 = arith.constant 129 : index
    %141 = vector.load %arg10[%c5, %c129_106] : memref<32x512xf32, #tpu.memory_space<vmem>>, vector<1x256xf32>
    %142 = arith.mulf %141, %5 : vector<1x256xf32>
    %143 = arith.addf %140, %142 : vector<1x256xf32>
    %c6_107 = arith.constant 6 : index
    %c143_108 = arith.constant 143 : index
    %144 = vector.load %arg10[%c6_107, %c143_108] : memref<32x512xf32, #tpu.memory_space<vmem>>, vector<1x256xf32>
    %145 = arith.mulf %144, %4 : vector<1x256xf32>
    %146 = arith.addf %143, %145 : vector<1x256xf32>
    %c7 = arith.constant 7 : index
    %c144_109 = arith.constant 144 : index
    %147 = vector.load %arg10[%c7, %c144_109] : memref<32x512xf32, #tpu.memory_space<vmem>>, vector<1x256xf32>
    %148 = arith.addf %146, %147 : vector<1x256xf32>
    %c8 = arith.constant 8 : index
    %c145_110 = arith.constant 145 : index
    %149 = vector.load %arg10[%c8, %c145_110] : memref<32x512xf32, #tpu.memory_space<vmem>>, vector<1x256xf32>
    %150 = arith.mulf %149, %5 : vector<1x256xf32>
    %151 = arith.addf %148, %150 : vector<1x256xf32>
    %152 = vector.broadcast %10 : vector<1x1xf32> to vector<1x256xf32>
    %153 = arith.addf %151, %152 : vector<1x256xf32>
    %c0_111 = arith.constant 0 : index
    %c0_112 = arith.constant 0 : index
    %c0_113 = arith.constant 0 : index
    %154 = vector.load %arg1[%c0_111, %c0_112, %c0_113] : memref<1x1x256xf32, #tpu.memory_space<vmem>>, vector<1x1x256xf32>
    %155 = vector.shape_cast %154 : vector<1x1x256xf32> to vector<1x256xf32>
    %156 = arith.addf %155, %153 : vector<1x256xf32>
    %c0_114 = arith.constant 0 : index
    %c0_115 = arith.constant 0 : index
    %c0_116 = arith.constant 0 : index
    %157 = vector.load %arg9[%c0_114, %c0_115, %c0_116] : memref<1x1x256xf32, #tpu.memory_space<vmem>>, vector<1x1x256xf32>
    %158 = vector.shape_cast %157 : vector<1x1x256xf32> to vector<1x256xf32>
    %159 = vector.shape_cast %156 : vector<1x256xf32> to vector<1x1x256xf32>
    tpu.vector_store %arg9[%c0_114, %c0_115, %c0_116], %159 {strides = array<i32>} : memref<1x1x256xf32, #tpu.memory_space<vmem>>, vector<1x1x256xf32>,
    return
  }
  func.func @transform_0(%arg0: i32) -> (i32, i32, i32) {
    %c0_i32 = arith.constant 0 : i32
    %c0_i32_0 = arith.constant 0 : i32
    %c0_i32_1 = arith.constant 0 : i32
    return %arg0, %c0_i32, %c0_i32_0 : i32, i32, i32
  }
  func.func @transform_1(%arg0: i32) -> (i32, i32, i32) {
    %c0_i32 = arith.constant 0 : i32
    %c0_i32_0 = arith.constant 0 : i32
    %c0_i32_1 = arith.constant 0 : i32
    return %arg0, %c0_i32, %c0_i32_0 : i32, i32, i32
  }
  func.func @transform_2(%arg0: i32) -> (i32, i32, i32) {
    %c0_i32 = arith.constant 0 : i32
    %c0_i32_0 = arith.constant 0 : i32
    %c0_i32_1 = arith.constant 0 : i32
    return %arg0, %c0_i32, %c0_i32_0 : i32, i32, i32
  }
  func.func @transform_3(%arg0: i32) -> (i32, i32) {
    %c0_i32 = arith.constant 0 : i32
    %c0_i32_0 = arith.constant 0 : i32
    %c0_i32_1 = arith.constant 0 : i32
    return %c0_i32, %c0_i32_0 : i32, i32
  }
  func.func @transform_4(%arg0: i32) -> (i32, i32) {
    %c0_i32 = arith.constant 0 : i32
    %c0_i32_0 = arith.constant 0 : i32
    %c0_i32_1 = arith.constant 0 : i32
    return %c0_i32, %c0_i32_0 : i32, i32
  }
  func.func @transform_5(%arg0: i32) -> (i32, i32) {
    %c0_i32 = arith.constant 0 : i32
    %c0_i32_0 = arith.constant 0 : i32
    %c0_i32_1 = arith.constant 0 : i32
    return %c0_i32, %c0_i32_0 : i32, i32
  }
  func.func @transform_6(%arg0: i32) -> (i32, i32) {
    %c0_i32 = arith.constant 0 : i32
    %c0_i32_0 = arith.constant 0 : i32
    %c0_i32_1 = arith.constant 0 : i32
    return %c0_i32, %c0_i32_0 : i32, i32
  }
  func.func @transform_7(%arg0: i32) -> (i32, i32) {
    %c0_i32 = arith.constant 0 : i32
    %c0_i32_0 = arith.constant 0 : i32
    %c0_i32_1 = arith.constant 0 : i32
    return %c0_i32, %c0_i32_0 : i32, i32
  }
  func.func @transform_8(%arg0: i32) -> (i32, i32, i32) {
    %c0_i32 = arith.constant 0 : i32
    %c0_i32_0 = arith.constant 0 : i32
    %c0_i32_1 = arith.constant 0 : i32
    return %arg0, %c0_i32, %c0_i32_0 : i32, i32, i32
  }
}

module attributes {stable_mosaic.version = 11 : i64} {
  func.func @_fused_block_kernel(%arg0: i32, %arg1: memref<1x1x256xf32, #tpu.memory_space<vmem>>, %arg2: memref<1x1x256xbf16, #tpu.memory_space<vmem>>, %arg3: memref<2x256xf32, #tpu.memory_space<vmem>>, %arg4: memref<32x18xbf16, #tpu.memory_space<vmem>>, %arg5: memref<32x288xbf16, #tpu.memory_space<vmem>>, %arg6: memref<16x32xbf16, #tpu.memory_space<vmem>>, %arg7: memref<32x8xf32, #tpu.memory_space<vmem>>, %arg8: memref<1x1x256xf32, #tpu.memory_space<vmem>>, %arg9: memref<32x512xf32, #tpu.memory_space<vmem>>, %arg10: memref<18x256xbf16, #tpu.memory_space<vmem>>, %arg11: memref<288x256xbf16, #tpu.memory_space<vmem>>) attributes {dimension_semantics = [#tpu.dimension_semantics<parallel>], iteration_bounds = array<i64: 2>, scalar_prefetch = 0 : i64, scratch_operands = 3 : i64, tpu.core_type = #tpu.core_type<tc>, window_params = [{transform_indices = @transform_0, window_bounds = array<i64: 1, 1, 256>}, {transform_indices = @transform_1, window_bounds = array<i64: 1, 1, 256>}, {pipeline_mode = #tpu.pipeline_mode<synchronous>, transform_indices = @transform_2, window_bounds = array<i64: 2, 256>}, {pipeline_mode = #tpu.pipeline_mode<synchronous>, transform_indices = @transform_3, window_bounds = array<i64: 32, 18>}, {pipeline_mode = #tpu.pipeline_mode<synchronous>, transform_indices = @transform_4, window_bounds = array<i64: 32, 288>}, {pipeline_mode = #tpu.pipeline_mode<synchronous>, transform_indices = @transform_5, window_bounds = array<i64: 16, 32>}, {pipeline_mode = #tpu.pipeline_mode<synchronous>, transform_indices = @transform_6, window_bounds = array<i64: 32, 8>}, {transform_indices = @transform_7, window_bounds = array<i64: 1, 1, 256>}]} {
    %cst = arith.constant 0.000000e+00 : f32
    %0 = vector.broadcast %cst : f32 to vector<32x128xf32>
    %c0 = arith.constant 0 : index
    %c0_0 = arith.constant 0 : index
    %1 = vector.load %arg9[%c0, %c0_0] : memref<32x512xf32, #tpu.memory_space<vmem>>, vector<32x128xf32>
    tpu.vector_store %arg9[%c0, %c0_0], %0 {strides = array<i32>} : memref<32x512xf32, #tpu.memory_space<vmem>>, vector<32x128xf32>,
    %cst_1 = arith.constant 0.000000e+00 : f32
    %2 = vector.broadcast %cst_1 : f32 to vector<32x128xf32>
    %c0_2 = arith.constant 0 : index
    %c384 = arith.constant 384 : index
    %3 = vector.load %arg9[%c0_2, %c384] : memref<32x512xf32, #tpu.memory_space<vmem>>, vector<32x128xf32>
    tpu.vector_store %arg9[%c0_2, %c384], %2 {strides = array<i32>} : memref<32x512xf32, #tpu.memory_space<vmem>>, vector<32x128xf32>,
    %c0_3 = arith.constant 0 : index
    %c0_4 = arith.constant 0 : index
    %4 = vector.load %arg3[%c0_3, %c0_4] : memref<2x256xf32, #tpu.memory_space<vmem>>, vector<1x256xf32>
    %c1 = arith.constant 1 : index
    %c0_5 = arith.constant 0 : index
    %5 = vector.load %arg3[%c1, %c0_5] : memref<2x256xf32, #tpu.memory_space<vmem>>, vector<1x256xf32>
    %c0_6 = arith.constant 0 : index
    %c0_7 = arith.constant 0 : index
    %6 = vector.load %arg7[%c0_6, %c0_7] : memref<32x8xf32, #tpu.memory_space<vmem>>, vector<32x1xf32>
    %c0_8 = arith.constant 0 : index
    %c1_9 = arith.constant 1 : index
    %7 = vector.load %arg7[%c0_8, %c1_9] : memref<32x8xf32, #tpu.memory_space<vmem>>, vector<32x1xf32>
    %c0_10 = arith.constant 0 : index
    %c2 = arith.constant 2 : index
    %8 = vector.load %arg7[%c0_10, %c2] : memref<32x8xf32, #tpu.memory_space<vmem>>, vector<32x1xf32>
    %c0_11 = arith.constant 0 : index
    %c3 = arith.constant 3 : index
    %9 = vector.load %arg7[%c0_11, %c3] : memref<32x8xf32, #tpu.memory_space<vmem>>, vector<32x1xf32>
    %c0_12 = arith.constant 0 : index
    %c4 = arith.constant 4 : index
    %10 = vector.load %arg7[%c0_12, %c4] : memref<32x8xf32, #tpu.memory_space<vmem>>, vector<1x1xf32>
    %c0_13 = arith.constant 0 : index
    %c0_14 = arith.constant 0 : index
    %c0_15 = arith.constant 0 : index
    %11 = vector.load %arg1[%c0_13, %c0_14, %c0_15] : memref<1x1x256xf32, #tpu.memory_space<vmem>>, vector<1x1x256xf32>
    %12 = vector.shape_cast %11 : vector<1x1x256xf32> to vector<1x256xf32>
    %c0_16 = arith.constant 0 : index
    %c128 = arith.constant 128 : index
    %13 = vector.load %arg9[%c0_16, %c128] : memref<32x512xf32, #tpu.memory_space<vmem>>, vector<1x256xf32>
    tpu.vector_store %arg9[%c0_16, %c128], %12 {strides = array<i32>} : memref<32x512xf32, #tpu.memory_space<vmem>>, vector<1x256xf32>,
    %c0_17 = arith.constant 0 : index
    %c0_18 = arith.constant 0 : index
    %c0_19 = arith.constant 0 : index
    %14 = vector.load %arg2[%c0_17, %c0_18, %c0_19] : memref<1x1x256xbf16, #tpu.memory_space<vmem>>, vector<1x1x256xbf16>
    %15 = vector.shape_cast %14 : vector<1x1x256xbf16> to vector<1x256xbf16>
    %16 = arith.extf %15 : vector<1x256xbf16> to vector<1x256xf32>
    %c1_20 = arith.constant 1 : index
    %c128_21 = arith.constant 128 : index
    %17 = vector.load %arg9[%c1_20, %c128_21] : memref<32x512xf32, #tpu.memory_space<vmem>>, vector<1x256xf32>
    tpu.vector_store %arg9[%c1_20, %c128_21], %16 {strides = array<i32>} : memref<32x512xf32, #tpu.memory_space<vmem>>, vector<1x256xf32>,
    %c0_22 = arith.constant 0 : index
    %c111 = arith.constant 111 : index
    %18 = vector.load %arg9[%c0_22, %c111] : memref<32x512xf32, #tpu.memory_space<vmem>>, vector<2x256xf32>
    %19 = vector.broadcast %4 : vector<1x256xf32> to vector<2x256xf32>
    %20 = arith.mulf %18, %19 : vector<2x256xf32>
    %21 = arith.truncf %20 : vector<2x256xf32> to vector<2x256xbf16>
    %c0_23 = arith.constant 0 : index
    %c0_24 = arith.constant 0 : index
    %22 = vector.load %arg10[%c0_23, %c0_24] : memref<18x256xbf16, #tpu.memory_space<vmem>>, vector<2x256xbf16>
    tpu.vector_store %arg10[%c0_23, %c0_24], %21 {strides = array<i32>} : memref<18x256xbf16, #tpu.memory_space<vmem>>, vector<2x256xbf16>,
    %c0_25 = arith.constant 0 : index
    %c112 = arith.constant 112 : index
    %23 = vector.load %arg9[%c0_25, %c112] : memref<32x512xf32, #tpu.memory_space<vmem>>, vector<2x256xf32>
    %24 = arith.truncf %23 : vector<2x256xf32> to vector<2x256xbf16>
    %c2_26 = arith.constant 2 : index
    %c0_27 = arith.constant 0 : index
    %25 = vector.load %arg10[%c2_26, %c0_27] : memref<18x256xbf16, #tpu.memory_space<vmem>>, vector<2x256xbf16>
    tpu.vector_store %arg10[%c2_26, %c0_27], %24 {strides = array<i32>} : memref<18x256xbf16, #tpu.memory_space<vmem>>, vector<2x256xbf16>,
    %c0_28 = arith.constant 0 : index
    %c113 = arith.constant 113 : index
    %26 = vector.load %arg9[%c0_28, %c113] : memref<32x512xf32, #tpu.memory_space<vmem>>, vector<2x256xf32>
    %27 = vector.broadcast %5 : vector<1x256xf32> to vector<2x256xf32>
    %28 = arith.mulf %26, %27 : vector<2x256xf32>
    %29 = arith.truncf %28 : vector<2x256xf32> to vector<2x256xbf16>
    %c4_29 = arith.constant 4 : index
    %c0_30 = arith.constant 0 : index
    %30 = vector.load %arg10[%c4_29, %c0_30] : memref<18x256xbf16, #tpu.memory_space<vmem>>, vector<2x256xbf16>
    tpu.vector_store %arg10[%c4_29, %c0_30], %29 {strides = array<i32>} : memref<18x256xbf16, #tpu.memory_space<vmem>>, vector<2x256xbf16>,
    %c0_31 = arith.constant 0 : index
    %c127 = arith.constant 127 : index
    %31 = vector.load %arg9[%c0_31, %c127] : memref<32x512xf32, #tpu.memory_space<vmem>>, vector<2x256xf32>
    %32 = vector.broadcast %4 : vector<1x256xf32> to vector<2x256xf32>
    %33 = arith.mulf %31, %32 : vector<2x256xf32>
    %34 = arith.truncf %33 : vector<2x256xf32> to vector<2x256xbf16>
    %c6 = arith.constant 6 : index
    %c0_32 = arith.constant 0 : index
    %35 = vector.load %arg10[%c6, %c0_32] : memref<18x256xbf16, #tpu.memory_space<vmem>>, vector<2x256xbf16>
    tpu.vector_store %arg10[%c6, %c0_32], %34 {strides = array<i32>} : memref<18x256xbf16, #tpu.memory_space<vmem>>, vector<2x256xbf16>,
    %c0_33 = arith.constant 0 : index
    %c128_34 = arith.constant 128 : index
    %36 = vector.load %arg9[%c0_33, %c128_34] : memref<32x512xf32, #tpu.memory_space<vmem>>, vector<2x256xf32>
    %37 = arith.truncf %36 : vector<2x256xf32> to vector<2x256xbf16>
    %c8 = arith.constant 8 : index
    %c0_35 = arith.constant 0 : index
    %38 = vector.load %arg10[%c8, %c0_35] : memref<18x256xbf16, #tpu.memory_space<vmem>>, vector<2x256xbf16>
    tpu.vector_store %arg10[%c8, %c0_35], %37 {strides = array<i32>} : memref<18x256xbf16, #tpu.memory_space<vmem>>, vector<2x256xbf16>,
    %c0_36 = arith.constant 0 : index
    %c129 = arith.constant 129 : index
    %39 = vector.load %arg9[%c0_36, %c129] : memref<32x512xf32, #tpu.memory_space<vmem>>, vector<2x256xf32>
    %40 = vector.broadcast %5 : vector<1x256xf32> to vector<2x256xf32>
    %41 = arith.mulf %39, %40 : vector<2x256xf32>
    %42 = arith.truncf %41 : vector<2x256xf32> to vector<2x256xbf16>
    %c10 = arith.constant 10 : index
    %c0_37 = arith.constant 0 : index
    %43 = vector.load %arg10[%c10, %c0_37] : memref<18x256xbf16, #tpu.memory_space<vmem>>, vector<2x256xbf16>
    tpu.vector_store %arg10[%c10, %c0_37], %42 {strides = array<i32>} : memref<18x256xbf16, #tpu.memory_space<vmem>>, vector<2x256xbf16>,
    %c0_38 = arith.constant 0 : index
    %c143 = arith.constant 143 : index
    %44 = vector.load %arg9[%c0_38, %c143] : memref<32x512xf32, #tpu.memory_space<vmem>>, vector<2x256xf32>
    %45 = vector.broadcast %4 : vector<1x256xf32> to vector<2x256xf32>
    %46 = arith.mulf %44, %45 : vector<2x256xf32>
    %47 = arith.truncf %46 : vector<2x256xf32> to vector<2x256xbf16>
    %c12 = arith.constant 12 : index
    %c0_39 = arith.constant 0 : index
    %48 = vector.load %arg10[%c12, %c0_39] : memref<18x256xbf16, #tpu.memory_space<vmem>>, vector<2x256xbf16>
    tpu.vector_store %arg10[%c12, %c0_39], %47 {strides = array<i32>} : memref<18x256xbf16, #tpu.memory_space<vmem>>, vector<2x256xbf16>,
    %c0_40 = arith.constant 0 : index
    %c144 = arith.constant 144 : index
    %49 = vector.load %arg9[%c0_40, %c144] : memref<32x512xf32, #tpu.memory_space<vmem>>, vector<2x256xf32>
    %50 = arith.truncf %49 : vector<2x256xf32> to vector<2x256xbf16>
    %c14 = arith.constant 14 : index
    %c0_41 = arith.constant 0 : index
    %51 = vector.load %arg10[%c14, %c0_41] : memref<18x256xbf16, #tpu.memory_space<vmem>>, vector<2x256xbf16>
    tpu.vector_store %arg10[%c14, %c0_41], %50 {strides = array<i32>} : memref<18x256xbf16, #tpu.memory_space<vmem>>, vector<2x256xbf16>,
    %c0_42 = arith.constant 0 : index
    %c145 = arith.constant 145 : index
    %52 = vector.load %arg9[%c0_42, %c145] : memref<32x512xf32, #tpu.memory_space<vmem>>, vector<2x256xf32>
    %53 = vector.broadcast %5 : vector<1x256xf32> to vector<2x256xf32>
    %54 = arith.mulf %52, %53 : vector<2x256xf32>
    %55 = arith.truncf %54 : vector<2x256xf32> to vector<2x256xbf16>
    %c16 = arith.constant 16 : index
    %c0_43 = arith.constant 0 : index
    %56 = vector.load %arg10[%c16, %c0_43] : memref<18x256xbf16, #tpu.memory_space<vmem>>, vector<2x256xbf16>
    tpu.vector_store %arg10[%c16, %c0_43], %55 {strides = array<i32>} : memref<18x256xbf16, #tpu.memory_space<vmem>>, vector<2x256xbf16>,
    %c0_44 = arith.constant 0 : index
    %c0_45 = arith.constant 0 : index
    %57 = vector.load %arg4[%c0_44, %c0_45] : memref<32x18xbf16, #tpu.memory_space<vmem>>, vector<32x18xbf16>
    %c0_46 = arith.constant 0 : index
    %c0_47 = arith.constant 0 : index
    %58 = vector.load %arg10[%c0_46, %c0_47] : memref<18x256xbf16, #tpu.memory_space<vmem>>, vector<18x256xbf16>
    %cst_48 = arith.constant dense<0.000000e+00> : vector<32x256xf32>
    %59 = tpu.matmul %57, %58, %cst_48 {dimension_numbers = #tpu.dot_dimension_numbers<[1], [0], [0], [1], [0, 0, 1, 1], [], []>} : vector<32x18xbf16>, vector<18x256xbf16>, vector<32x256xf32> -> vector<32x256xf32>
    %60 = vector.broadcast %6 : vector<32x1xf32> to vector<32x256xf32>
    %61 = arith.addf %59, %60 : vector<32x256xf32>
    %cst_49 = arith.constant 0.000000e+00 : f32
    %62 = vector.broadcast %cst_49 : f32 to vector<32x256xf32>
    %63 = arith.cmpf oge, %61, %62 : vector<32x256xf32>
    %64 = vector.broadcast %7 : vector<32x1xf32> to vector<32x256xf32>
    %65 = arith.mulf %61, %64 : vector<32x256xf32>
    %66 = arith.select %63, %61, %65 : vector<32x256xi1>, vector<32x256xf32>
    %c0_50 = arith.constant 0 : index
    %c128_51 = arith.constant 128 : index
    %67 = vector.load %arg9[%c0_50, %c128_51] : memref<32x512xf32, #tpu.memory_space<vmem>>, vector<32x256xf32>
    tpu.vector_store %arg9[%c0_50, %c128_51], %66 {strides = array<i32>} : memref<32x512xf32, #tpu.memory_space<vmem>>, vector<32x256xf32>,
    %c0_52 = arith.constant 0 : index
    %c111_53 = arith.constant 111 : index
    %68 = vector.load %arg9[%c0_52, %c111_53] : memref<32x512xf32, #tpu.memory_space<vmem>>, vector<32x256xf32>
    %69 = vector.broadcast %4 : vector<1x256xf32> to vector<32x256xf32>
    %70 = arith.mulf %68, %69 : vector<32x256xf32>
    %71 = arith.truncf %70 : vector<32x256xf32> to vector<32x256xbf16>
    %c0_54 = arith.constant 0 : index
    %c0_55 = arith.constant 0 : index
    %72 = vector.load %arg11[%c0_54, %c0_55] : memref<288x256xbf16, #tpu.memory_space<vmem>>, vector<32x256xbf16>
    tpu.vector_store %arg11[%c0_54, %c0_55], %71 {strides = array<i32>} : memref<288x256xbf16, #tpu.memory_space<vmem>>, vector<32x256xbf16>,
    %c0_56 = arith.constant 0 : index
    %c112_57 = arith.constant 112 : index
    %73 = vector.load %arg9[%c0_56, %c112_57] : memref<32x512xf32, #tpu.memory_space<vmem>>, vector<32x256xf32>
    %74 = arith.truncf %73 : vector<32x256xf32> to vector<32x256xbf16>
    %c32 = arith.constant 32 : index
    %c0_58 = arith.constant 0 : index
    %75 = vector.load %arg11[%c32, %c0_58] : memref<288x256xbf16, #tpu.memory_space<vmem>>, vector<32x256xbf16>
    tpu.vector_store %arg11[%c32, %c0_58], %74 {strides = array<i32>} : memref<288x256xbf16, #tpu.memory_space<vmem>>, vector<32x256xbf16>,
    %c0_59 = arith.constant 0 : index
    %c113_60 = arith.constant 113 : index
    %76 = vector.load %arg9[%c0_59, %c113_60] : memref<32x512xf32, #tpu.memory_space<vmem>>, vector<32x256xf32>
    %77 = vector.broadcast %5 : vector<1x256xf32> to vector<32x256xf32>
    %78 = arith.mulf %76, %77 : vector<32x256xf32>
    %79 = arith.truncf %78 : vector<32x256xf32> to vector<32x256xbf16>
    %c64 = arith.constant 64 : index
    %c0_61 = arith.constant 0 : index
    %80 = vector.load %arg11[%c64, %c0_61] : memref<288x256xbf16, #tpu.memory_space<vmem>>, vector<32x256xbf16>
    tpu.vector_store %arg11[%c64, %c0_61], %79 {strides = array<i32>} : memref<288x256xbf16, #tpu.memory_space<vmem>>, vector<32x256xbf16>,
    %c0_62 = arith.constant 0 : index
    %c127_63 = arith.constant 127 : index
    %81 = vector.load %arg9[%c0_62, %c127_63] : memref<32x512xf32, #tpu.memory_space<vmem>>, vector<32x256xf32>
    %82 = vector.broadcast %4 : vector<1x256xf32> to vector<32x256xf32>
    %83 = arith.mulf %81, %82 : vector<32x256xf32>
    %84 = arith.truncf %83 : vector<32x256xf32> to vector<32x256xbf16>
    %c96 = arith.constant 96 : index
    %c0_64 = arith.constant 0 : index
    %85 = vector.load %arg11[%c96, %c0_64] : memref<288x256xbf16, #tpu.memory_space<vmem>>, vector<32x256xbf16>
    tpu.vector_store %arg11[%c96, %c0_64], %84 {strides = array<i32>} : memref<288x256xbf16, #tpu.memory_space<vmem>>, vector<32x256xbf16>,
    %c0_65 = arith.constant 0 : index
    %c128_66 = arith.constant 128 : index
    %86 = vector.load %arg9[%c0_65, %c128_66] : memref<32x512xf32, #tpu.memory_space<vmem>>, vector<32x256xf32>
    %87 = arith.truncf %86 : vector<32x256xf32> to vector<32x256xbf16>
    %c128_67 = arith.constant 128 : index
    %c0_68 = arith.constant 0 : index
    %88 = vector.load %arg11[%c128_67, %c0_68] : memref<288x256xbf16, #tpu.memory_space<vmem>>, vector<32x256xbf16>
    tpu.vector_store %arg11[%c128_67, %c0_68], %87 {strides = array<i32>} : memref<288x256xbf16, #tpu.memory_space<vmem>>, vector<32x256xbf16>,
    %c0_69 = arith.constant 0 : index
    %c129_70 = arith.constant 129 : index
    %89 = vector.load %arg9[%c0_69, %c129_70] : memref<32x512xf32, #tpu.memory_space<vmem>>, vector<32x256xf32>
    %90 = vector.broadcast %5 : vector<1x256xf32> to vector<32x256xf32>
    %91 = arith.mulf %89, %90 : vector<32x256xf32>
    %92 = arith.truncf %91 : vector<32x256xf32> to vector<32x256xbf16>
    %c160 = arith.constant 160 : index
    %c0_71 = arith.constant 0 : index
    %93 = vector.load %arg11[%c160, %c0_71] : memref<288x256xbf16, #tpu.memory_space<vmem>>, vector<32x256xbf16>
    tpu.vector_store %arg11[%c160, %c0_71], %92 {strides = array<i32>} : memref<288x256xbf16, #tpu.memory_space<vmem>>, vector<32x256xbf16>,
    %c0_72 = arith.constant 0 : index
    %c143_73 = arith.constant 143 : index
    %94 = vector.load %arg9[%c0_72, %c143_73] : memref<32x512xf32, #tpu.memory_space<vmem>>, vector<32x256xf32>
    %95 = vector.broadcast %4 : vector<1x256xf32> to vector<32x256xf32>
    %96 = arith.mulf %94, %95 : vector<32x256xf32>
    %97 = arith.truncf %96 : vector<32x256xf32> to vector<32x256xbf16>
    %c192 = arith.constant 192 : index
    %c0_74 = arith.constant 0 : index
    %98 = vector.load %arg11[%c192, %c0_74] : memref<288x256xbf16, #tpu.memory_space<vmem>>, vector<32x256xbf16>
    tpu.vector_store %arg11[%c192, %c0_74], %97 {strides = array<i32>} : memref<288x256xbf16, #tpu.memory_space<vmem>>, vector<32x256xbf16>,
    %c0_75 = arith.constant 0 : index
    %c144_76 = arith.constant 144 : index
    %99 = vector.load %arg9[%c0_75, %c144_76] : memref<32x512xf32, #tpu.memory_space<vmem>>, vector<32x256xf32>
    %100 = arith.truncf %99 : vector<32x256xf32> to vector<32x256xbf16>
    %c224 = arith.constant 224 : index
    %c0_77 = arith.constant 0 : index
    %101 = vector.load %arg11[%c224, %c0_77] : memref<288x256xbf16, #tpu.memory_space<vmem>>, vector<32x256xbf16>
    tpu.vector_store %arg11[%c224, %c0_77], %100 {strides = array<i32>} : memref<288x256xbf16, #tpu.memory_space<vmem>>, vector<32x256xbf16>,
    %c0_78 = arith.constant 0 : index
    %c145_79 = arith.constant 145 : index
    %102 = vector.load %arg9[%c0_78, %c145_79] : memref<32x512xf32, #tpu.memory_space<vmem>>, vector<32x256xf32>
    %103 = vector.broadcast %5 : vector<1x256xf32> to vector<32x256xf32>
    %104 = arith.mulf %102, %103 : vector<32x256xf32>
    %105 = arith.truncf %104 : vector<32x256xf32> to vector<32x256xbf16>
    %c256 = arith.constant 256 : index
    %c0_80 = arith.constant 0 : index
    %106 = vector.load %arg11[%c256, %c0_80] : memref<288x256xbf16, #tpu.memory_space<vmem>>, vector<32x256xbf16>
    tpu.vector_store %arg11[%c256, %c0_80], %105 {strides = array<i32>} : memref<288x256xbf16, #tpu.memory_space<vmem>>, vector<32x256xbf16>,
    %c0_81 = arith.constant 0 : index
    %c0_82 = arith.constant 0 : index
    %107 = vector.load %arg5[%c0_81, %c0_82] : memref<32x288xbf16, #tpu.memory_space<vmem>>, vector<32x288xbf16>
    %c0_83 = arith.constant 0 : index
    %c0_84 = arith.constant 0 : index
    %108 = vector.load %arg11[%c0_83, %c0_84] : memref<288x256xbf16, #tpu.memory_space<vmem>>, vector<288x256xbf16>
    %cst_85 = arith.constant dense<0.000000e+00> : vector<32x256xf32>
    %109 = tpu.matmul %107, %108, %cst_85 {dimension_numbers = #tpu.dot_dimension_numbers<[1], [0], [0], [1], [0, 0, 1, 1], [], []>} : vector<32x288xbf16>, vector<288x256xbf16>, vector<32x256xf32> -> vector<32x256xf32>
    %110 = vector.broadcast %8 : vector<32x1xf32> to vector<32x256xf32>
    %111 = arith.addf %109, %110 : vector<32x256xf32>
    %cst_86 = arith.constant 0.000000e+00 : f32
    %112 = vector.broadcast %cst_86 : f32 to vector<32x256xf32>
    %113 = arith.cmpf oge, %111, %112 : vector<32x256xf32>
    %114 = vector.broadcast %9 : vector<32x1xf32> to vector<32x256xf32>
    %115 = arith.mulf %111, %114 : vector<32x256xf32>
    %116 = arith.select %113, %111, %115 : vector<32x256xi1>, vector<32x256xf32>
    %c0_87 = arith.constant 0 : index
    %c0_88 = arith.constant 0 : index
    %117 = vector.load %arg6[%c0_87, %c0_88] : memref<16x32xbf16, #tpu.memory_space<vmem>>, vector<16x32xbf16>
    %118 = arith.truncf %116 : vector<32x256xf32> to vector<32x256xbf16>
    %cst_89 = arith.constant dense<0.000000e+00> : vector<16x256xf32>
    %119 = tpu.matmul %117, %118, %cst_89 {dimension_numbers = #tpu.dot_dimension_numbers<[1], [0], [0], [1], [0, 0, 1, 1], [], []>} : vector<16x32xbf16>, vector<32x256xbf16>, vector<16x256xf32> -> vector<16x256xf32>
    %120 = vector.extract_strided_slice %119 {offsets = [0, 0], sizes = [9, 256], strides = [1, 1]} : vector<16x256xf32> to vector<9x256xf32>
    %c0_90 = arith.constant 0 : index
    %c128_91 = arith.constant 128 : index
    %121 = vector.load %arg9[%c0_90, %c128_91] : memref<32x512xf32, #tpu.memory_space<vmem>>, vector<9x256xf32>
    tpu.vector_store %arg9[%c0_90, %c128_91], %120 {strides = array<i32>} : memref<32x512xf32, #tpu.memory_space<vmem>>, vector<9x256xf32>,
    %c0_92 = arith.constant 0 : index
    %c111_93 = arith.constant 111 : index
    %122 = vector.load %arg9[%c0_92, %c111_93] : memref<32x512xf32, #tpu.memory_space<vmem>>, vector<1x256xf32>
    %123 = arith.mulf %122, %4 : vector<1x256xf32>
    %c1_94 = arith.constant 1 : index
    %c112_95 = arith.constant 112 : index
    %124 = vector.load %arg9[%c1_94, %c112_95] : memref<32x512xf32, #tpu.memory_space<vmem>>, vector<1x256xf32>
    %125 = arith.addf %123, %124 : vector<1x256xf32>
    %c2_96 = arith.constant 2 : index
    %c113_97 = arith.constant 113 : index
    %126 = vector.load %arg9[%c2_96, %c113_97] : memref<32x512xf32, #tpu.memory_space<vmem>>, vector<1x256xf32>
    %127 = arith.mulf %126, %5 : vector<1x256xf32>
    %128 = arith.addf %125, %127 : vector<1x256xf32>
    %c3_98 = arith.constant 3 : index
    %c127_99 = arith.constant 127 : index
    %129 = vector.load %arg9[%c3_98, %c127_99] : memref<32x512xf32, #tpu.memory_space<vmem>>, vector<1x256xf32>
    %130 = arith.mulf %129, %4 : vector<1x256xf32>
    %131 = arith.addf %128, %130 : vector<1x256xf32>
    %c4_100 = arith.constant 4 : index
    %c128_101 = arith.constant 128 : index
    %132 = vector.load %arg9[%c4_100, %c128_101] : memref<32x512xf32, #tpu.memory_space<vmem>>, vector<1x256xf32>
    %133 = arith.addf %131, %132 : vector<1x256xf32>
    %c5 = arith.constant 5 : index
    %c129_102 = arith.constant 129 : index
    %134 = vector.load %arg9[%c5, %c129_102] : memref<32x512xf32, #tpu.memory_space<vmem>>, vector<1x256xf32>
    %135 = arith.mulf %134, %5 : vector<1x256xf32>
    %136 = arith.addf %133, %135 : vector<1x256xf32>
    %c6_103 = arith.constant 6 : index
    %c143_104 = arith.constant 143 : index
    %137 = vector.load %arg9[%c6_103, %c143_104] : memref<32x512xf32, #tpu.memory_space<vmem>>, vector<1x256xf32>
    %138 = arith.mulf %137, %4 : vector<1x256xf32>
    %139 = arith.addf %136, %138 : vector<1x256xf32>
    %c7 = arith.constant 7 : index
    %c144_105 = arith.constant 144 : index
    %140 = vector.load %arg9[%c7, %c144_105] : memref<32x512xf32, #tpu.memory_space<vmem>>, vector<1x256xf32>
    %141 = arith.addf %139, %140 : vector<1x256xf32>
    %c8_106 = arith.constant 8 : index
    %c145_107 = arith.constant 145 : index
    %142 = vector.load %arg9[%c8_106, %c145_107] : memref<32x512xf32, #tpu.memory_space<vmem>>, vector<1x256xf32>
    %143 = arith.mulf %142, %5 : vector<1x256xf32>
    %144 = arith.addf %141, %143 : vector<1x256xf32>
    %145 = vector.broadcast %10 : vector<1x1xf32> to vector<1x256xf32>
    %146 = arith.addf %144, %145 : vector<1x256xf32>
    %c0_108 = arith.constant 0 : index
    %c0_109 = arith.constant 0 : index
    %c0_110 = arith.constant 0 : index
    %147 = vector.load %arg1[%c0_108, %c0_109, %c0_110] : memref<1x1x256xf32, #tpu.memory_space<vmem>>, vector<1x1x256xf32>
    %148 = vector.shape_cast %147 : vector<1x1x256xf32> to vector<1x256xf32>
    %149 = arith.addf %148, %146 : vector<1x256xf32>
    %c0_111 = arith.constant 0 : index
    %c0_112 = arith.constant 0 : index
    %c0_113 = arith.constant 0 : index
    %150 = vector.load %arg8[%c0_111, %c0_112, %c0_113] : memref<1x1x256xf32, #tpu.memory_space<vmem>>, vector<1x1x256xf32>
    %151 = vector.shape_cast %150 : vector<1x1x256xf32> to vector<1x256xf32>
    %152 = vector.shape_cast %149 : vector<1x256xf32> to vector<1x1x256xf32>
    tpu.vector_store %arg8[%c0_111, %c0_112, %c0_113], %152 {strides = array<i32>} : memref<1x1x256xf32, #tpu.memory_space<vmem>>, vector<1x1x256xf32>,
    return
  }
  func.func @transform_0(%arg0: i32) -> (i32, i32, i32) {
    %c0_i32 = arith.constant 0 : i32
    %c0_i32_0 = arith.constant 0 : i32
    %c0_i32_1 = arith.constant 0 : i32
    return %arg0, %c0_i32, %c0_i32_0 : i32, i32, i32
  }
  func.func @transform_1(%arg0: i32) -> (i32, i32, i32) {
    %c0_i32 = arith.constant 0 : i32
    %c0_i32_0 = arith.constant 0 : i32
    %c0_i32_1 = arith.constant 0 : i32
    return %arg0, %c0_i32, %c0_i32_0 : i32, i32, i32
  }
  func.func @transform_2(%arg0: i32) -> (i32, i32) {
    %c0_i32 = arith.constant 0 : i32
    %c0_i32_0 = arith.constant 0 : i32
    %c0_i32_1 = arith.constant 0 : i32
    return %c0_i32, %c0_i32_0 : i32, i32
  }
  func.func @transform_3(%arg0: i32) -> (i32, i32) {
    %c0_i32 = arith.constant 0 : i32
    %c0_i32_0 = arith.constant 0 : i32
    %c0_i32_1 = arith.constant 0 : i32
    return %c0_i32, %c0_i32_0 : i32, i32
  }
  func.func @transform_4(%arg0: i32) -> (i32, i32) {
    %c0_i32 = arith.constant 0 : i32
    %c0_i32_0 = arith.constant 0 : i32
    %c0_i32_1 = arith.constant 0 : i32
    return %c0_i32, %c0_i32_0 : i32, i32
  }
  func.func @transform_5(%arg0: i32) -> (i32, i32) {
    %c0_i32 = arith.constant 0 : i32
    %c0_i32_0 = arith.constant 0 : i32
    %c0_i32_1 = arith.constant 0 : i32
    return %c0_i32, %c0_i32_0 : i32, i32
  }
  func.func @transform_6(%arg0: i32) -> (i32, i32) {
    %c0_i32 = arith.constant 0 : i32
    %c0_i32_0 = arith.constant 0 : i32
    %c0_i32_1 = arith.constant 0 : i32
    return %c0_i32, %c0_i32_0 : i32, i32
  }
  func.func @transform_7(%arg0: i32) -> (i32, i32, i32) {
    %c0_i32 = arith.constant 0 : i32
    %c0_i32_0 = arith.constant 0 : i32
    %c0_i32_1 = arith.constant 0 : i32
    return %arg0, %c0_i32, %c0_i32_0 : i32, i32, i32
  }
}

</mosaic_0001>

<llo_original>
// kernel: _forward_impl.14
$region0: #{_forward_impl.14}
  #allocation0 [shape = 'u32[]', space=smem, size = 0x4, offset = 0x4, fixed_abs, tag = 'smem constant byte address 0x4 - core index']
  #allocation1 [shape = 'u32[144,128]{1,0:T(1,128)}', space=vmem, size = 0x12000, scoped, tag = 'internal scratch']
  #allocation2 [shape = 'f32[8,256]{1,0:T(8,128)}', space=vmem, size = 0x2000, scoped, tag = 'scratch operand']
  %s0 = inlined_call_operand.vmem [shape: bf16[8,256], index: 0, kind: input, shape index: {}]
  %s1 = inlined_call_operand.vmem [shape: bf16[256,256], index: 1, kind: input, shape index: {}]
  %s2 = inlined_call_operand.vmem [shape: bf16[8,256], index: 2, kind: output, shape index: {}]
  %s3 = sld [smem:[#allocation0]]
  $region26: #{_forward_impl.14} parent=0
    _
  %s5 = ssub.s32 1, %s3
  %s6 = scalar_select 0, %s5, %s3
  // Predicated region
  $region2: #{_forward_impl.14} parent=0 // pred_check
    _
  $region3: #{_forward_impl.14} parent=0 // pred_check_branch
    %8 = sbr.rel (0) target = $region5
  $region4: #{_forward_impl.14} parent=0 // pred_region
    _
  $region5: #{_forward_impl.14} parent=0 // pred_fallthru
    _
  // Predicated region
  $region6: #{_forward_impl.14} parent=0 // pred_check
    _
  $region7: #{_forward_impl.14} parent=0 // pred_check_branch
    %10 = sbr.rel (0) target = $region9
  $region8: #{_forward_impl.14} parent=0 // pred_region
    _
  $region9: #{_forward_impl.14} parent=0 // pred_fallthru
    _
  %p11 = scmp.eq.s32.totalorder 0, 0
  // Predicated region
  $region10: #{_forward_impl.14} parent=0 // pred_check
    %p12 = pneg %p11
  $region11: #{_forward_impl.14} parent=0 // pred_check_branch
    %14 = sbr.rel (%p12) target = $region13
  $region12: #{_forward_impl.14} parent=0 // pred_region
    %15 = vst [vmem:[#allocation2] sm:$0xff] 0.0
    %16 = vst [vmem:[#allocation2 + $0x8] sm:$0xff] 0.0
  $region13: #{_forward_impl.14} parent=0 // pred_fallthru
    _
  %v17 = vld [vmem:[#allocation2] sm:$0xff]
  %v18 = vld [vmem:[#allocation2 + $0x8] sm:$0xff]
  %v19 = vld [vmem:[%s0] sm:$0xff]
  %v20 = vld [vmem:[%s1] sm:$0xff]
  %v21 = vld [vmem:[%s1 + $0x8] sm:$0xff]
  %v22 = vld [vmem:[%s1 + $0x10] sm:$0xff]
  %v23 = vld [vmem:[%s1 + $0x18] sm:$0xff]
  %v24 = vld [vmem:[%s1 + $0x20] sm:$0xff]
  %v25 = vld [vmem:[%s1 + $0x28] sm:$0xff]
  %v26 = vld [vmem:[%s1 + $0x30] sm:$0xff]
  %v27 = vld [vmem:[%s1 + $0x38] sm:$0xff]
  %v28 = vld [vmem:[%s1 + $0x40] sm:$0xff]
  %v29 = vld [vmem:[%s1 + $0x48] sm:$0xff]
  %v30 = vld [vmem:[%s1 + $0x50] sm:$0xff]
  %v31 = vld [vmem:[%s1 + $0x58] sm:$0xff]
  %v32 = vld [vmem:[%s1 + $0x60] sm:$0xff]
  %v33 = vld [vmem:[%s1 + $0x68] sm:$0xff]
  %v34 = vld [vmem:[%s1 + $0x70] sm:$0xff]
  %v35 = vld [vmem:[%s1 + $0x78] sm:$0xff]
  %v36 = vld [vmem:[%s1 + $0x80] sm:$0xff]
  %v37 = vld [vmem:[%s1 + $0x88] sm:$0xff]
  %v38 = vld [vmem:[%s1 + $0x90] sm:$0xff]
  %v39 = vld [vmem:[%s1 + $0x98] sm:$0xff]
  %v40 = vld [vmem:[%s1 + $0xa0] sm:$0xff]
  %v41 = vld [vmem:[%s1 + $0xa8] sm:$0xff]
  %v42 = vld [vmem:[%s1 + $0xb0] sm:$0xff]
  %v43 = vld [vmem:[%s1 + $0xb8] sm:$0xff]
  %v44 = vld [vmem:[%s1 + $0xc0] sm:$0xff]
  %v45 = vld [vmem:[%s1 + $0xc8] sm:$0xff]
  %v46 = vld [vmem:[%s1 + $0xd0] sm:$0xff]
  %v47 = vld [vmem:[%s1 + $0xd8] sm:$0xff]
  %v48 = vld [vmem:[%s1 + $0xe0] sm:$0xff]
  %v49 = vld [vmem:[%s1 + $0xe8] sm:$0xff]
  %v50 = vld [vmem:[%s1 + $0xf0] sm:$0xff]
  %v51 = vld [vmem:[%s1 + $0xf8] sm:$0xff]
  %v53 = vunpack.c.l.b16 %v19
  %v54 = vunpack.c.h.b16 %v19
  %v55 = vpack.c.b16 %v53, %v53
  %v56 = vpack.c.b16 %v54, %v54
  %v91 = vunpack.c.l.b16 %v20
  %v92 = vunpack.c.h.b16 %v20
  %v93 = vunpack.c.l.b16 %v21
  %v94 = vunpack.c.h.b16 %v21
  %v95 = vunpack.c.l.b16 %v22
  %v96 = vunpack.c.h.b16 %v22
  %v97 = vunpack.c.l.b16 %v23
  %v98 = vunpack.c.h.b16 %v23
  %v99 = vunpack.c.l.b16 %v24
  %v100 = vunpack.c.h.b16 %v24
  %v101 = vunpack.c.l.b16 %v25
  %v102 = vunpack.c.h.b16 %v25
  %v103 = vunpack.c.l.b16 %v26
  %v104 = vunpack.c.h.b16 %v26
  %v105 = vunpack.c.l.b16 %v27
  %v106 = vunpack.c.h.b16 %v27
  %v107 = vunpack.c.l.b16 %v28
  %v108 = vunpack.c.h.b16 %v28
  %v109 = vunpack.c.l.b16 %v29
  %v110 = vunpack.c.h.b16 %v29
  %v111 = vunpack.c.l.b16 %v30
  %v112 = vunpack.c.h.b16 %v30
  %v113 = vunpack.c.l.b16 %v31
  %v114 = vunpack.c.h.b16 %v31
  %v115 = vunpack.c.l.b16 %v32
  %v116 = vunpack.c.h.b16 %v32
  %v117 = vunpack.c.l.b16 %v33
  %v118 = vunpack.c.h.b16 %v33
  %v119 = vunpack.c.l.b16 %v34
  %v120 = vunpack.c.h.b16 %v34
  %v121 = vunpack.c.l.b16 %v35
  %v122 = vunpack.c.h.b16 %v35
  %v123 = vunpack.c.l.b16 %v36
  %v124 = vunpack.c.h.b16 %v36
  %v125 = vunpack.c.l.b16 %v37
  %v126 = vunpack.c.h.b16 %v37
  %v127 = vunpack.c.l.b16 %v38
  %v128 = vunpack.c.h.b16 %v38
  %v129 = vunpack.c.l.b16 %v39
  %v130 = vunpack.c.h.b16 %v39
  %v131 = vunpack.c.l.b16 %v40
  %v132 = vunpack.c.h.b16 %v40
  %v133 = vunpack.c.l.b16 %v41
  %v134 = vunpack.c.h.b16 %v41
  %v135 = vunpack.c.l.b16 %v42
  %v136 = vunpack.c.h.b16 %v42
  %v137 = vunpack.c.l.b16 %v43
  %v138 = vunpack.c.h.b16 %v43
  %v139 = vunpack.c.l.b16 %v44
  %v140 = vunpack.c.h.b16 %v44
  %v141 = vunpack.c.l.b16 %v45
  %v142 = vunpack.c.h.b16 %v45
  %v143 = vunpack.c.l.b16 %v46
  %v144 = vunpack.c.h.b16 %v46
  %v145 = vunpack.c.l.b16 %v47
  %v146 = vunpack.c.h.b16 %v47
  %v147 = vunpack.c.l.b16 %v48
  %v148 = vunpack.c.h.b16 %v48
  %v149 = vunpack.c.l.b16 %v49
  %v150 = vunpack.c.h.b16 %v49
  %v151 = vunpack.c.l.b16 %v50
  %v152 = vunpack.c.h.b16 %v50
  %v153 = vunpack.c.l.b16 %v51
  %v154 = vunpack.c.h.b16 %v51
  %v155 = vpack.c.b16 %v93, %v91
  %v156 = vpack.c.b16 %v94, %v92
  %v157 = vpack.c.b16 %v97, %v95
  %v158 = vpack.c.b16 %v98, %v96
  %v159 = vpack.c.b16 %v101, %v99
  %v160 = vpack.c.b16 %v102, %v100
  %v161 = vpack.c.b16 %v105, %v103
  %v162 = vpack.c.b16 %v106, %v104
  %v163 = vpack.c.b16 %v109, %v107
  %v164 = vpack.c.b16 %v110, %v108
  %v165 = vpack.c.b16 %v113, %v111
  %v166 = vpack.c.b16 %v114, %v112
  %v167 = vpack.c.b16 %v117, %v115
  %v168 = vpack.c.b16 %v118, %v116
  %v169 = vpack.c.b16 %v121, %v119
  %v170 = vpack.c.b16 %v122, %v120
  %v171 = vpack.c.b16 %v125, %v123
  %v172 = vpack.c.b16 %v126, %v124
  %v173 = vpack.c.b16 %v129, %v127
  %v174 = vpack.c.b16 %v130, %v128
  %v175 = vpack.c.b16 %v133, %v131
  %v176 = vpack.c.b16 %v134, %v132
  %v177 = vpack.c.b16 %v137, %v135
  %v178 = vpack.c.b16 %v138, %v136
  %v179 = vpack.c.b16 %v141, %v139
  %v180 = vpack.c.b16 %v142, %v140
  %v181 = vpack.c.b16 %v145, %v143
  %v182 = vpack.c.b16 %v146, %v144
  %v183 = vpack.c.b16 %v149, %v147
  %v184 = vpack.c.b16 %v150, %v148
  %v185 = vpack.c.b16 %v153, %v151
  %v186 = vpack.c.b16 %v154, %v152
  %219 = vmatprep.subr.bf16.mxu0 %v170
  %220 = vmatpush1.bf16.msra.mxu0 %v169
  %221 = vmatprep.subr.bf16.mxu0 %v168
  %222 = vmatpush1.bf16.msra.mxu0 %v167
  %223 = vmatprep.subr.bf16.mxu0 %v166
  %224 = vmatpush1.bf16.msra.mxu0 %v165
  %225 = vmatprep.subr.bf16.mxu0 %v164
  %226 = vmatpush1.bf16.msra.mxu0 %v163
  %227 = vmatprep.subr.bf16.mxu0 %v162
  %228 = vmatpush1.bf16.msra.mxu0 %v161
  %229 = vmatprep.subr.bf16.mxu0 %v160
  %230 = vmatpush1.bf16.msra.mxu0 %v159
  %231 = vmatprep.subr.bf16.mxu0 %v158
  %232 = vmatpush1.bf16.msra.mxu0 %v157
  %233 = vmatprep.subr.bf16.mxu0 %v156
  %234 = vmatpush1.bf16.msra.mxu0 %v155
  %235 = vmatprep.subr.bf16.mxu0 %v186
  %236 = vmatpush2.bf16.msra.mxu0 %v185
  %237 = vmatprep.subr.bf16.mxu0 %v184
  %238 = vmatpush2.bf16.msra.mxu0 %v183
  %239 = vmatprep.subr.bf16.mxu0 %v182
  %240 = vmatpush2.bf16.msra.mxu0 %v181
  %241 = vmatprep.subr.bf16.mxu0 %v180
  %242 = vmatpush2.bf16.msra.mxu0 %v179
  %243 = vmatprep.subr.bf16.mxu0 %v178
  %244 = vmatpush2.bf16.msra.mxu0 %v177
  %245 = vmatprep.subr.bf16.mxu0 %v176
  %246 = vmatpush2.bf16.msra.mxu0 %v175
  %247 = vmatprep.subr.bf16.mxu0 %v174
  %248 = vmatpush2.bf16.msra.mxu0 %v173
  %249 = vmatprep.subr.bf16.mxu0 %v172
  %250 = vmatpush2.bf16.msra.mxu0 %v171
  %251 = vmatprep.mubr.bf16.mxu0 %v56
  %252 = vmatmul.mubr.bf16.gmra.mxu0 %v55
  %v253 = vpop.f32.mrf.mxu0
  %v254 = vadd.f32 0.0, %v253
  %v255 = vpop.f32.mrf.mxu0
  %v256 = vadd.f32 0.0, %v255
  %v257 = vpop.f32.mrf.mxu0
  %v258 = vpop.f32.mrf.mxu0
  %259 = vdwg.mxu0
  %v260 = vadd.f32 %v17, %v254
  %v261 = vadd.f32 %v18, %v256
  %262 = vst [vmem:[#allocation2] sm:$0xff] %v260
  %263 = vst [vmem:[#allocation2 + $0x8] sm:$0xff] %v261
  // Predicated region
  $region14: #{_forward_impl.14} parent=0 // pred_check
    %p264 = pneg %p11
  $region15: #{_forward_impl.14} parent=0 // pred_check_branch
    %266 = sbr.rel (%p264) target = $region17
  $region16: #{_forward_impl.14} parent=0 // pred_region
    %v267 = vld [vmem:[#allocation2] sm:$0xff]
    %v268 = vld [vmem:[#allocation2 + $0x8] sm:$0xff]
    %v269 = vpack.c.bf16 %v267, %v267
    %v270 = vpack.c.bf16 %v268, %v268
    %v273 = vunpack.c.l.b16 %v269
    %v274 = vunpack.c.l.b16 %v270
    %v275 = vpack.c.b16 %v274, %v273
    %277 = vst [vmem:[%s2] sm:$0xff] %v275
  $region17: #{_forward_impl.14} parent=0 // pred_fallthru
    _
  // Predicated region
  $region18: #{_forward_impl.14} parent=0 // pred_check
    _
  $region19: #{_forward_impl.14} parent=0 // pred_check_branch
    %279 = sbr.rel (0) target = $region21
  $region20: #{_forward_impl.14} parent=0 // pred_region
    _
  $region21: #{_forward_impl.14} parent=0 // pred_fallthru
    _
  // Predicated region
  $region22: #{_forward_impl.14} parent=0 // pred_check
    _
  $region23: #{_forward_impl.14} parent=0 // pred_check_branch
    %281 = sbr.rel (0) target = $region25
  $region24: #{_forward_impl.14} parent=0 // pred_region
    _
  $region25: #{_forward_impl.14} parent=0 // pred_fallthru
    _

// kernel: _forward_impl.12
$region0: #{_forward_impl.12}
  #allocation0 [shape = 'u32[]', space=smem, size = 0x4, offset = 0x4, fixed_abs, tag = 'smem constant byte address 0x4 - core index']
  #allocation1 [shape = 'u32[144,128]{1,0:T(1,128)}', space=vmem, size = 0x12000, scoped, tag = 'internal scratch']
  #allocation2 [shape = 'f32[8,256]{1,0:T(8,128)}', space=vmem, size = 0x2000, scoped, tag = 'scratch operand']
  %s0 = inlined_call_operand.vmem [shape: bf16[8,256], index: 0, kind: input, shape index: {}]
  %s1 = inlined_call_operand.hbm [shape: bf16[256,256], index: 1, kind: input, shape index: {}]
  %s2 = inlined_call_operand.vmem [shape: bf16[8,256], index: 2, kind: output, shape index: {}]
  %s3 = sld [smem:[#allocation0]]
  $region30: #{_forward_impl.12} parent=0
    _
  %s5 = ssub.s32 1, %s3
  %s6 = scalar_select 0, %s5, %s3
  $region1: #{_forward_impl.12} parent=0
    #allocation3 [shape = 'u8[131072]{0}', space=vmem, size = 0x20000, scoped, tag = 'input window, operand 1, single buffered']
    #allocation4 [shape = 's32[1]{0}', space=sflag, size = 0x4, scoped, tag = 'scoped memory for _forward_impl.12']
    %7 = vsyncpa [#allocation4], 0
    // Predicated region
    $region2: #{_forward_impl.12} parent=1 // pred_check
      _
    $region3: #{_forward_impl.12} parent=1 // pred_check_branch
      %9 = sbr.rel (0) target = $region5
    $region4: #{_forward_impl.12} parent=1 // pred_region
      _
    $region5: #{_forward_impl.12} parent=1 // pred_fallthru
      _
    // Predicated region
    $region6: #{_forward_impl.12} parent=1 // pred_check
      _
    $region7: #{_forward_impl.12} parent=1 // pred_check_branch
      %11 = sbr.rel (0) target = $region9
    $region8: #{_forward_impl.12} parent=1 // pred_region
      %s13 = ssub.s32 4096, 4096
      %14 = vsyncadd [#allocation4], %s13
      %s15 = sshll.u32 [#allocation3], 4
      %s16 = int_to_ptr.vmem [resolvable:$true] %s15
      %21 = dma.hbm_to_vmem [thread:$0]  %s1, 4096, %s16, [#allocation4], 128, 128, 8
    $region9: #{_forward_impl.12} parent=1 // pred_fallthru
      _
    // Predicated region
    $region10: #{_forward_impl.12} parent=1 // pred_check
      _
    $region11: #{_forward_impl.12} parent=1 // pred_check_branch
      %23 = sbr.rel (0) target = $region13
    $region12: #{_forward_impl.12} parent=1 // pred_region
      %24 = dma.done [#allocation4], 4096
    $region13: #{_forward_impl.12} parent=1 // pred_fallthru
      _
    %p25 = scmp.eq.s32.totalorder 0, 0
    // Predicated region
    $region14: #{_forward_impl.12} parent=1 // pred_check
      %p26 = pneg %p25
    $region15: #{_forward_impl.12} parent=1 // pred_check_branch
      %28 = sbr.rel (%p26) target = $region17
    $region16: #{_forward_impl.12} parent=1 // pred_region
      %29 = vst [vmem:[#allocation2] sm:$0xff] 0.0
      %30 = vst [vmem:[#allocation2 + $0x8] sm:$0xff] 0.0
    $region17: #{_forward_impl.12} parent=1 // pred_fallthru
      _
    %v31 = vld [vmem:[#allocation2] sm:$0xff]
    %v32 = vld [vmem:[#allocation2 + $0x8] sm:$0xff]
    %v33 = vld [vmem:[%s0] sm:$0xff]
    %v34 = vld [vmem:[#allocation3] sm:$0xff]
    %v35 = vld [vmem:[#allocation3 + $0x8] sm:$0xff]
    %v36 = vld [vmem:[#allocation3 + $0x10] sm:$0xff]
    %v37 = vld [vmem:[#allocation3 + $0x18] sm:$0xff]
    %v38 = vld [vmem:[#allocation3 + $0x20] sm:$0xff]
    %v39 = vld [vmem:[#allocation3 + $0x28] sm:$0xff]
    %v40 = vld [vmem:[#allocation3 + $0x30] sm:$0xff]
    %v41 = vld [vmem:[#allocation3 + $0x38] sm:$0xff]
    %v42 = vld [vmem:[#allocation3 + $0x40] sm:$0xff]
    %v43 = vld [vmem:[#allocation3 + $0x48] sm:$0xff]
    %v44 = vld [vmem:[#allocation3 + $0x50] sm:$0xff]
    %v45 = vld [vmem:[#allocation3 + $0x58] sm:$0xff]
    %v46 = vld [vmem:[#allocation3 + $0x60] sm:$0xff]
    %v47 = vld [vmem:[#allocation3 + $0x68] sm:$0xff]
    %v48 = vld [vmem:[#allocation3 + $0x70] sm:$0xff]
    %v49 = vld [vmem:[#allocation3 + $0x78] sm:$0xff]
    %v50 = vld [vmem:[#allocation3 + $0x80] sm:$0xff]
    %v51 = vld [vmem:[#allocation3 + $0x88] sm:$0xff]
    %v52 = vld [vmem:[#allocation3 + $0x90] sm:$0xff]
    %v53 = vld [vmem:[#allocation3 + $0x98] sm:$0xff]
    %v54 = vld [vmem:[#allocation3 + $0xa0] sm:$0xff]
    %v55 = vld [vmem:[#allocation3 + $0xa8] sm:$0xff]
    %v56 = vld [vmem:[#allocation3 + $0xb0] sm:$0xff]
    %v57 = vld [vmem:[#allocation3 + $0xb8] sm:$0xff]
    %v58 = vld [vmem:[#allocation3 + $0xc0] sm:$0xff]
    %v59 = vld [vmem:[#allocation3 + $0xc8] sm:$0xff]
    %v60 = vld [vmem:[#allocation3 + $0xd0] sm:$0xff]
    %v61 = vld [vmem:[#allocation3 + $0xd8] sm:$0xff]
    %v62 = vld [vmem:[#allocation3 + $0xe0] sm:$0xff]
    %v63 = vld [vmem:[#allocation3 + $0xe8] sm:$0xff]
    %v64 = vld [vmem:[#allocation3 + $0xf0] sm:$0xff]
    %v65 = vld [vmem:[#allocation3 + $0xf8] sm:$0xff]
    %v67 = vunpack.c.l.b16 %v33
    %v68 = vunpack.c.h.b16 %v33
    %v69 = vpack.c.b16 %v67, %v67
    %v70 = vpack.c.b16 %v68, %v68
    %v105 = vunpack.c.l.b16 %v34
    %v106 = vunpack.c.h.b16 %v34
    %v107 = vunpack.c.l.b16 %v35
    %v108 = vunpack.c.h.b16 %v35
    %v109 = vunpack.c.l.b16 %v36
    %v110 = vunpack.c.h.b16 %v36
    %v111 = vunpack.c.l.b16 %v37
    %v112 = vunpack.c.h.b16 %v37
    %v113 = vunpack.c.l.b16 %v38
    %v114 = vunpack.c.h.b16 %v38
    %v115 = vunpack.c.l.b16 %v39
    %v116 = vunpack.c.h.b16 %v39
    %v117 = vunpack.c.l.b16 %v40
    %v118 = vunpack.c.h.b16 %v40
    %v119 = vunpack.c.l.b16 %v41
    %v120 = vunpack.c.h.b16 %v41
    %v121 = vunpack.c.l.b16 %v42
    %v122 = vunpack.c.h.b16 %v42
    %v123 = vunpack.c.l.b16 %v43
    %v124 = vunpack.c.h.b16 %v43
    %v125 = vunpack.c.l.b16 %v44
    %v126 = vunpack.c.h.b16 %v44
    %v127 = vunpack.c.l.b16 %v45
    %v128 = vunpack.c.h.b16 %v45
    %v129 = vunpack.c.l.b16 %v46
    %v130 = vunpack.c.h.b16 %v46
    %v131 = vunpack.c.l.b16 %v47
    %v132 = vunpack.c.h.b16 %v47
    %v133 = vunpack.c.l.b16 %v48
    %v134 = vunpack.c.h.b16 %v48
    %v135 = vunpack.c.l.b16 %v49
    %v136 = vunpack.c.h.b16 %v49
    %v137 = vunpack.c.l.b16 %v50
    %v138 = vunpack.c.h.b16 %v50
    %v139 = vunpack.c.l.b16 %v51
    %v140 = vunpack.c.h.b16 %v51
    %v141 = vunpack.c.l.b16 %v52
    %v142 = vunpack.c.h.b16 %v52
    %v143 = vunpack.c.l.b16 %v53
    %v144 = vunpack.c.h.b16 %v53
    %v145 = vunpack.c.l.b16 %v54
    %v146 = vunpack.c.h.b16 %v54
    %v147 = vunpack.c.l.b16 %v55
    %v148 = vunpack.c.h.b16 %v55
    %v149 = vunpack.c.l.b16 %v56
    %v150 = vunpack.c.h.b16 %v56
    %v151 = vunpack.c.l.b16 %v57
    %v152 = vunpack.c.h.b16 %v57
    %v153 = vunpack.c.l.b16 %v58
    %v154 = vunpack.c.h.b16 %v58
    %v155 = vunpack.c.l.b16 %v59
    %v156 = vunpack.c.h.b16 %v59
    %v157 = vunpack.c.l.b16 %v60
    %v158 = vunpack.c.h.b16 %v60
    %v159 = vunpack.c.l.b16 %v61
    %v160 = vunpack.c.h.b16 %v61
    %v161 = vunpack.c.l.b16 %v62
    %v162 = vunpack.c.h.b16 %v62
    %v163 = vunpack.c.l.b16 %v63
    %v164 = vunpack.c.h.b16 %v63
    %v165 = vunpack.c.l.b16 %v64
    %v166 = vunpack.c.h.b16 %v64
    %v167 = vunpack.c.l.b16 %v65
    %v168 = vunpack.c.h.b16 %v65
    %v169 = vpack.c.b16 %v107, %v105
    %v170 = vpack.c.b16 %v108, %v106
    %v171 = vpack.c.b16 %v111, %v109
    %v172 = vpack.c.b16 %v112, %v110
    %v173 = vpack.c.b16 %v115, %v113
    %v174 = vpack.c.b16 %v116, %v114
    %v175 = vpack.c.b16 %v119, %v117
    %v176 = vpack.c.b16 %v120, %v118
    %v177 = vpack.c.b16 %v123, %v121
    %v178 = vpack.c.b16 %v124, %v122
    %v179 = vpack.c.b16 %v127, %v125
    %v180 = vpack.c.b16 %v128, %v126
    %v181 = vpack.c.b16 %v131, %v129
    %v182 = vpack.c.b16 %v132, %v130
    %v183 = vpack.c.b16 %v135, %v133
    %v184 = vpack.c.b16 %v136, %v134
    %v185 = vpack.c.b16 %v139, %v137
    %v186 = vpack.c.b16 %v140, %v138
    %v187 = vpack.c.b16 %v143, %v141
    %v188 = vpack.c.b16 %v144, %v142
    %v189 = vpack.c.b16 %v147, %v145
    %v190 = vpack.c.b16 %v148, %v146
    %v191 = vpack.c.b16 %v151, %v149
    %v192 = vpack.c.b16 %v152, %v150
    %v193 = vpack.c.b16 %v155, %v153
    %v194 = vpack.c.b16 %v156, %v154
    %v195 = vpack.c.b16 %v159, %v157
    %v196 = vpack.c.b16 %v160, %v158
    %v197 = vpack.c.b16 %v163, %v161
    %v198 = vpack.c.b16 %v164, %v162
    %v199 = vpack.c.b16 %v167, %v165
    %v200 = vpack.c.b16 %v168, %v166
    %233 = vmatprep.subr.bf16.mxu0 %v184
    %234 = vmatpush1.bf16.msra.mxu0 %v183
    %235 = vmatprep.subr.bf16.mxu0 %v182
    %236 = vmatpush1.bf16.msra.mxu0 %v181
    %237 = vmatprep.subr.bf16.mxu0 %v180
    %238 = vmatpush1.bf16.msra.mxu0 %v179
    %239 = vmatprep.subr.bf16.mxu0 %v178
    %240 = vmatpush1.bf16.msra.mxu0 %v177
    %241 = vmatprep.subr.bf16.mxu0 %v176
    %242 = vmatpush1.bf16.msra.mxu0 %v175
    %243 = vmatprep.subr.bf16.mxu0 %v174
    %244 = vmatpush1.bf16.msra.mxu0 %v173
    %245 = vmatprep.subr.bf16.mxu0 %v172
    %246 = vmatpush1.bf16.msra.mxu0 %v171
    %247 = vmatprep.subr.bf16.mxu0 %v170
    %248 = vmatpush1.bf16.msra.mxu0 %v169
    %249 = vmatprep.subr.bf16.mxu0 %v200
    %250 = vmatpush2.bf16.msra.mxu0 %v199
    %251 = vmatprep.subr.bf16.mxu0 %v198
    %252 = vmatpush2.bf16.msra.mxu0 %v197
    %253 = vmatprep.subr.bf16.mxu0 %v196
    %254 = vmatpush2.bf16.msra.mxu0 %v195
    %255 = vmatprep.subr.bf16.mxu0 %v194
    %256 = vmatpush2.bf16.msra.mxu0 %v193
    %257 = vmatprep.subr.bf16.mxu0 %v192
    %258 = vmatpush2.bf16.msra.mxu0 %v191
    %259 = vmatprep.subr.bf16.mxu0 %v190
    %260 = vmatpush2.bf16.msra.mxu0 %v189
    %261 = vmatprep.subr.bf16.mxu0 %v188
    %262 = vmatpush2.bf16.msra.mxu0 %v187
    %263 = vmatprep.subr.bf16.mxu0 %v186
    %264 = vmatpush2.bf16.msra.mxu0 %v185
    %265 = vmatprep.mubr.bf16.mxu0 %v70
    %266 = vmatmul.mubr.bf16.gmra.mxu0 %v69
    %v267 = vpop.f32.mrf.mxu0
    %v268 = vadd.f32 0.0, %v267
    %v269 = vpop.f32.mrf.mxu0
    %v270 = vadd.f32 0.0, %v269
    %v271 = vpop.f32.mrf.mxu0
    %v272 = vpop.f32.mrf.mxu0
    %273 = vdwg.mxu0
    %v274 = vadd.f32 %v31, %v268
    %v275 = vadd.f32 %v32, %v270
    %276 = vst [vmem:[#allocation2] sm:$0xff] %v274
    %277 = vst [vmem:[#allocation2 + $0x8] sm:$0xff] %v275
    // Predicated region
    $region18: #{_forward_impl.12} parent=1 // pred_check
      %p278 = pneg %p25
    $region19: #{_forward_impl.12} parent=1 // pred_check_branch
      %280 = sbr.rel (%p278) target = $region21
    $region20: #{_forward_impl.12} parent=1 // pred_region
      %v281 = vld [vmem:[#allocation2] sm:$0xff]
      %v282 = vld [vmem:[#allocation2 + $0x8] sm:$0xff]
      %v283 = vpack.c.bf16 %v281, %v281
      %v284 = vpack.c.bf16 %v282, %v282
      %v287 = vunpack.c.l.b16 %v283
      %v288 = vunpack.c.l.b16 %v284
      %v289 = vpack.c.b16 %v288, %v287
      %291 = vst [vmem:[%s2] sm:$0xff] %v289
    $region21: #{_forward_impl.12} parent=1 // pred_fallthru
      _
    // Predicated region
    $region22: #{_forward_impl.12} parent=1 // pred_check
      _
    $region23: #{_forward_impl.12} parent=1 // pred_check_branch
      %293 = sbr.rel (0) target = $region25
    $region24: #{_forward_impl.12} parent=1 // pred_region
      _
    $region25: #{_forward_impl.12} parent=1 // pred_fallthru
      _
    // Predicated region
    $region26: #{_forward_impl.12} parent=1 // pred_check
      _
    $region27: #{_forward_impl.12} parent=1 // pred_check_branch
      %295 = sbr.rel (0) target = $region29
    $region28: #{_forward_impl.12} parent=1 // pred_region
      _
    $region29: #{_forward_impl.12} parent=1 // pred_fallthru
      _
    %296 = vsyncpa [#allocation4], 1

// kernel: _forward_impl.13
$region0: #{_forward_impl.13}
  #allocation0 [shape = 'u32[]', space=smem, size = 0x4, offset = 0x4, fixed_abs, tag = 'smem constant byte address 0x4 - core index']
  #allocation1 [shape = 'u32[144,128]{1,0:T(1,128)}', space=vmem, size = 0x12000, scoped, tag = 'internal scratch']
  #allocation2 [shape = 'f32[32,512]{1,0:T(8,128)}', space=vmem, size = 0x10000, scoped, tag = 'scratch operand']
  #allocation3 [shape = 'bf16[27,256]{1,0:T(8,128)(2,1)}', space=vmem, size = 0x4000, scoped, tag = 'scratch operand']
  #allocation4 [shape = 'bf16[288,256]{1,0:T(8,128)(2,1)}', space=vmem, size = 0x24000, scoped, tag = 'scratch operand']
  %s0 = inlined_call_operand.vmem [shape: f32[2,1,256], index: 0, kind: input, shape index: {}]
  %s1 = inlined_call_operand.vmem [shape: bf16[2,1,256], index: 1, kind: input, shape index: {}]
  %s2 = inlined_call_operand.vmem [shape: f32[2,1,256], index: 2, kind: input, shape index: {}]
  %s3 = inlined_call_operand.vmem [shape: f32[2,256], index: 3, kind: input, shape index: {}]
  %s4 = inlined_call_operand.vmem [shape: bf16[32,27], index: 4, kind: input, shape index: {}]
  %s5 = inlined_call_operand.vmem [shape: bf16[32,288], index: 5, kind: input, shape index: {}]
  %s6 = inlined_call_operand.vmem [shape: bf16[16,32], index: 6, kind: input, shape index: {}]
  %s7 = inlined_call_operand.vmem [shape: f32[32,8], index: 7, kind: input, shape index: {}]
  %s8 = inlined_call_operand.vmem [shape: f32[2,1,256], index: 8, kind: output, shape index: {}]
  %s9 = sld [smem:[#allocation0]]
  $region65: #{_forward_impl.13} parent=0
    _
  %s11 = ssub.s32 1, %s9
  %s12 = scalar_select 0, %s11, %s9
  loop: start=0, step=1, limit=4
  $region2: #{_forward_impl.13} parent=0 // loop_pre_header
    _
  $region3: #{_forward_impl.13} parent=0 // loop_header
    %s14 = sphi 0, %s18
    %p15 = scmp.ge.s32.totalorder %s14, 4
    %s24 = sphi 0, %s26
    %s27 = sphi 0, %s24
    %s28 = sphi 0, %s27
    %s44 = sphi 0, %s28
    %s50 = sphi 0, %s52
    %s53 = sphi 0, %s50
    %s54 = sphi 0, %s53
    %s70 = sphi 0, %s54
    %s76 = sphi 0, %s78
    %s79 = sphi 0, %s76
    %s80 = sphi 0, %s79
    %s96 = sphi 0, %s80
    %s100 = sphi 0, %s100
    %s102 = sphi 0, %s100
    %s103 = sphi 0, %s102
    %s117 = sphi 0, %s103
    %s121 = sphi 0, %s121
    %s123 = sphi 0, %s121
    %s124 = sphi 0, %s123
    %s138 = sphi 0, %s124
    %s142 = sphi 0, %s142
    %s144 = sphi 0, %s142
    %s145 = sphi 0, %s144
    %s159 = sphi 0, %s145
    %s163 = sphi 0, %s163
    %s165 = sphi 0, %s163
    %s166 = sphi 0, %s165
    %s180 = sphi 0, %s166
    %s184 = sphi 0, %s184
    %s186 = sphi 0, %s184
    %s187 = sphi 0, %s186
    %s201 = sphi 0, %s187
    %s207 = sphi 0, %s209
    %s210 = sphi 0, %s207
    %s211 = sphi 0, %s210
    %s227 = sphi 0, %s211
  $region4: #{_forward_impl.13} parent=0 // loop_header_branch
    %17 = sbr.rel (%p15) target = $region8
  $region5: #{_forward_impl.13} parent=0 // loop_body
    %s19 = ssub.s32 %s14, 1
    %s20 = ssub.s32 %s14, 2
    %s21 = sadd.s32 %s14, 1
    %s22 = ssub.s32 %s14, %s21
    %p23 = scmp.eq.s32.totalorder %s22, 0
    %s25 = sadd.s32 %s24, 1
    %s26 = scalar_select %p23, %s24, %s25
    %p29 = pneg %p23
    %p30 = scmp.eq.s32.totalorder %s14, 1
    %p31 = por %p29, %p30
    %p32 = scmp.ne.s32.totalorder %s24, %s27
    %p33 = scmp.eq.s32.totalorder %s14, 0
    %p34 = por %p32, %p33
    %p35 = scmp.ne.s32.totalorder %s24, %s27
    %p36 = scmp.eq.s32.totalorder %s19, 1
    %p37 = por %p35, %p36
    %p38 = scmp.ne.s32.totalorder %s27, %s28
    %p39 = scmp.eq.s32.totalorder %s19, 0
    %p40 = por %p38, %p39
    %p41 = scmp.ne.s32.totalorder %s27, %s28
    %p42 = scmp.eq.s32.totalorder %s20, 1
    %p43 = por %p41, %p42
    %p45 = scmp.ne.s32.totalorder %s28, %s44
    %p46 = scmp.eq.s32.totalorder %s20, 0
    %p47 = por %p45, %p46
    %s48 = ssub.s32 %s14, %s21
    %p49 = scmp.eq.s32.totalorder %s48, 0
    %s51 = sadd.s32 %s50, 1
    %s52 = scalar_select %p49, %s50, %s51
    %p55 = pneg %p49
    %p56 = scmp.eq.s32.totalorder %s14, 1
    %p57 = por %p55, %p56
    %p58 = scmp.ne.s32.totalorder %s50, %s53
    %p59 = scmp.eq.s32.totalorder %s14, 0
    %p60 = por %p58, %p59
    %p61 = scmp.ne.s32.totalorder %s50, %s53
    %p62 = scmp.eq.s32.totalorder %s19, 1
    %p63 = por %p61, %p62
    %p64 = scmp.ne.s32.totalorder %s53, %s54
    %p65 = scmp.eq.s32.totalorder %s19, 0
    %p66 = por %p64, %p65
    %p67 = scmp.ne.s32.totalorder %s53, %s54
    %p68 = scmp.eq.s32.totalorder %s20, 1
    %p69 = por %p67, %p68
    %p71 = scmp.ne.s32.totalorder %s54, %s70
    %p72 = scmp.eq.s32.totalorder %s20, 0
    %p73 = por %p71, %p72
    %s74 = ssub.s32 %s14, %s21
    %p75 = scmp.eq.s32.totalorder %s74, 0
    %s77 = sadd.s32 %s76, 1
    %s78 = scalar_select %p75, %s76, %s77
    %p81 = pneg %p75
    %p82 = scmp.eq.s32.totalorder %s14, 1
    %p83 = por %p81, %p82
    %p84 = scmp.ne.s32.totalorder %s76, %s79
    %p85 = scmp.eq.s32.totalorder %s14, 0
    %p86 = por %p84, %p85
    %p87 = scmp.ne.s32.totalorder %s76, %s79
    %p88 = scmp.eq.s32.totalorder %s19, 1
    %p89 = por %p87, %p88
    %p90 = scmp.ne.s32.totalorder %s79, %s80
    %p91 = scmp.eq.s32.totalorder %s19, 0
    %p92 = por %p90, %p91
    %p93 = scmp.ne.s32.totalorder %s79, %s80
    %p94 = scmp.eq.s32.totalorder %s20, 1
    %p95 = por %p93, %p94
    %p97 = scmp.ne.s32.totalorder %s80, %s96
    %p98 = scmp.eq.s32.totalorder %s20, 0
    %p99 = por %p97, %p98
    %s101 = sadd.s32 %s100, 1
    %p104 = scmp.eq.s32.totalorder %s14, 1
    %p105 = scmp.ne.s32.totalorder %s100, %s102
    %p106 = scmp.eq.s32.totalorder %s14, 0
    %p107 = por %p105, %p106
    %p108 = scmp.ne.s32.totalorder %s100, %s102
    %p109 = scmp.eq.s32.totalorder %s19, 1
    %p110 = por %p108, %p109
    %p111 = scmp.ne.s32.totalorder %s102, %s103
    %p112 = scmp.eq.s32.totalorder %s19, 0
    %p113 = por %p111, %p112
    %p114 = scmp.ne.s32.totalorder %s102, %s103
    %p115 = scmp.eq.s32.totalorder %s20, 1
    %p116 = por %p114, %p115
    %p118 = scmp.ne.s32.totalorder %s103, %s117
    %p119 = scmp.eq.s32.totalorder %s20, 0
    %p120 = por %p118, %p119
    %s122 = sadd.s32 %s121, 1
    %p125 = scmp.eq.s32.totalorder %s14, 1
    %p126 = scmp.ne.s32.totalorder %s121, %s123
    %p127 = scmp.eq.s32.totalorder %s14, 0
    %p128 = por %p126, %p127
    %p129 = scmp.ne.s32.totalorder %s121, %s123
    %p130 = scmp.eq.s32.totalorder %s19, 1
    %p131 = por %p129, %p130
    %p132 = scmp.ne.s32.totalorder %s123, %s124
    %p133 = scmp.eq.s32.totalorder %s19, 0
    %p134 = por %p132, %p133
    %p135 = scmp.ne.s32.totalorder %s123, %s124
    %p136 = scmp.eq.s32.totalorder %s20, 1
    %p137 = por %p135, %p136
    %p139 = scmp.ne.s32.totalorder %s124, %s138
    %p140 = scmp.eq.s32.totalorder %s20, 0
    %p141 = por %p139, %p140
    %s143 = sadd.s32 %s142, 1
    %p146 = scmp.eq.s32.totalorder %s14, 1
    %p147 = scmp.ne.s32.totalorder %s142, %s144
    %p148 = scmp.eq.s32.totalorder %s14, 0
    %p149 = por %p147, %p148
    %p150 = scmp.ne.s32.totalorder %s142, %s144
    %p151 = scmp.eq.s32.totalorder %s19, 1
    %p152 = por %p150, %p151
    %p153 = scmp.ne.s32.totalorder %s144, %s145
    %p154 = scmp.eq.s32.totalorder %s19, 0
    %p155 = por %p153, %p154
    %p156 = scmp.ne.s32.totalorder %s144, %s145
    %p157 = scmp.eq.s32.totalorder %s20, 1
    %p158 = por %p156, %p157
    %p160 = scmp.ne.s32.totalorder %s145, %s159
    %p161 = scmp.eq.s32.totalorder %s20, 0
    %p162 = por %p160, %p161
    %s164 = sadd.s32 %s163, 1
    %p167 = scmp.eq.s32.totalorder %s14, 1
    %p168 = scmp.ne.s32.totalorder %s163, %s165
    %p169 = scmp.eq.s32.totalorder %s14, 0
    %p170 = por %p168, %p169
    %p171 = scmp.ne.s32.totalorder %s163, %s165
    %p172 = scmp.eq.s32.totalorder %s19, 1
    %p173 = por %p171, %p172
    %p174 = scmp.ne.s32.totalorder %s165, %s166
    %p175 = scmp.eq.s32.totalorder %s19, 0
    %p176 = por %p174, %p175
    %p177 = scmp.ne.s32.totalorder %s165, %s166
    %p178 = scmp.eq.s32.totalorder %s20, 1
    %p179 = por %p177, %p178
    %p181 = scmp.ne.s32.totalorder %s166, %s180
    %p182 = scmp.eq.s32.totalorder %s20, 0
    %p183 = por %p181, %p182
    %s185 = sadd.s32 %s184, 1
    %p188 = scmp.eq.s32.totalorder %s14, 1
    %p189 = scmp.ne.s32.totalorder %s184, %s186
    %p190 = scmp.eq.s32.totalorder %s14, 0
    %p191 = por %p189, %p190
    %p192 = scmp.ne.s32.totalorder %s184, %s186
    %p193 = scmp.eq.s32.totalorder %s19, 1
    %p194 = por %p192, %p193
    %p195 = scmp.ne.s32.totalorder %s186, %s187
    %p196 = scmp.eq.s32.totalorder %s19, 0
    %p197 = por %p195, %p196
    %p198 = scmp.ne.s32.totalorder %s186, %s187
    %p199 = scmp.eq.s32.totalorder %s20, 1
    %p200 = por %p198, %p199
    %p202 = scmp.ne.s32.totalorder %s187, %s201
    %p203 = scmp.eq.s32.totalorder %s20, 0
    %p204 = por %p202, %p203
    %s205 = ssub.s32 %s14, %s21
    %p206 = scmp.eq.s32.totalorder %s205, 0
    %s208 = sadd.s32 %s207, 1
    %s209 = scalar_select %p206, %s207, %s208
    %p212 = pneg %p206
    %p213 = scmp.eq.s32.totalorder %s14, 1
    %p214 = por %p212, %p213
    %p215 = scmp.ne.s32.totalorder %s207, %s210
    %p216 = scmp.eq.s32.totalorder %s14, 0
    %p217 = por %p215, %p216
    %p218 = scmp.ne.s32.totalorder %s207, %s210
    %p219 = scmp.eq.s32.totalorder %s19, 1
    %p220 = por %p218, %p219
    %p221 = scmp.ne.s32.totalorder %s210, %s211
    %p222 = scmp.eq.s32.totalorder %s19, 0
    %p223 = por %p221, %p222
    %p224 = scmp.ne.s32.totalorder %s210, %s211
    %p225 = scmp.eq.s32.totalorder %s20, 1
    %p226 = por %p224, %p225
    %p228 = scmp.ne.s32.totalorder %s211, %s227
    %p229 = scmp.eq.s32.totalorder %s20, 0
    %p230 = por %p228, %p229
    %p231 = scmp.le.s32.totalorder 1, %s14
    %p232 = scmp.lt.s32.totalorder %s14, 3
    %p233 = pnand %p231, %p232
    %p234 = pneg %p233
    // Predicated region
    $region9: #{_forward_impl.13} parent=5 // pred_check
      _
    $region10: #{_forward_impl.13} parent=5 // pred_check_branch
      %236 = sbr.rel (%p233) target = $region12
    $region11: #{_forward_impl.13} parent=5 // pred_region
      %s237 = ssub.s32 %s14, 1
      // Predicated region
      $region13: #{_forward_impl.13} parent=11 // pred_check
        %p238 = pneg %p113
      $region14: #{_forward_impl.13} parent=11 // pred_check_branch
        %240 = sbr.rel (%p238) target = $region16
      $region15: #{_forward_impl.13} parent=11 // pred_region
        _
      $region16: #{_forward_impl.13} parent=11 // pred_fallthru
        _
      // Predicated region
      $region17: #{_forward_impl.13} parent=11 // pred_check
        %p241 = pneg %p134
      $region18: #{_forward_impl.13} parent=11 // pred_check_branch
        %243 = sbr.rel (%p241) target = $region20
      $region19: #{_forward_impl.13} parent=11 // pred_region
        _
      $region20: #{_forward_impl.13} parent=11 // pred_fallthru
        _
      // Predicated region
      $region21: #{_forward_impl.13} parent=11 // pred_check
        %p244 = pneg %p155
      $region22: #{_forward_impl.13} parent=11 // pred_check_branch
        %246 = sbr.rel (%p244) target = $region24
      $region23: #{_forward_impl.13} parent=11 // pred_region
        _
      $region24: #{_forward_impl.13} parent=11 // pred_fallthru
        _
      // Predicated region
      $region25: #{_forward_impl.13} parent=11 // pred_check
        %p247 = pneg %p176
      $region26: #{_forward_impl.13} parent=11 // pred_check_branch
        %249 = sbr.rel (%p247) target = $region28
      $region27: #{_forward_impl.13} parent=11 // pred_region
        _
      $region28: #{_forward_impl.13} parent=11 // pred_fallthru
        _
      // Predicated region
      $region29: #{_forward_impl.13} parent=11 // pred_check
        %p250 = pneg %p197
      $region30: #{_forward_impl.13} parent=11 // pred_check_branch
        %252 = sbr.rel (%p250) target = $region32
      $region31: #{_forward_impl.13} parent=11 // pred_region
        _
      $region32: #{_forward_impl.13} parent=11 // pred_fallthru
        _
    $region12: #{_forward_impl.13} parent=5 // pred_fallthru
      _
    %p253 = scmp.lt.s32.totalorder %s14, 2
    // Predicated region
    $region33: #{_forward_impl.13} parent=5 // pred_check
      %p254 = pneg %p253
    $region34: #{_forward_impl.13} parent=5 // pred_check_branch
      %256 = sbr.rel (%p254) target = $region36
    $region35: #{_forward_impl.13} parent=5 // pred_region
      // Predicated region
      $region37: #{_forward_impl.13} parent=35 // pred_check
        %p257 = pneg %p34
      $region38: #{_forward_impl.13} parent=35 // pred_check_branch
        %259 = sbr.rel (%p257) target = $region40
      $region39: #{_forward_impl.13} parent=35 // pred_region
        %p260 = scmp.lt.s32.totalorder %s14, 1
        %s261 = scalar_select %p260, %s14, 1
        %s262 = smul.addr %s261, 2
        %s263 = scalar_lea.vmem %s0, %s262
      $region40: #{_forward_impl.13} parent=35 // pred_fallthru
        _
      // Predicated region
      $region41: #{_forward_impl.13} parent=35 // pred_check
        %p264 = pneg %p60
      $region42: #{_forward_impl.13} parent=35 // pred_check_branch
        %266 = sbr.rel (%p264) target = $region44
      $region43: #{_forward_impl.13} parent=35 // pred_region
        %p267 = scmp.lt.s32.totalorder %s14, 1
        %s268 = scalar_select %p267, %s14, 1
        %s269 = smul.addr %s268, 2
        %s270 = scalar_lea.vmem %s1, %s269
      $region44: #{_forward_impl.13} parent=35 // pred_fallthru
        _
      // Predicated region
      $region45: #{_forward_impl.13} parent=35 // pred_check
        %p271 = pneg %p86
      $region46: #{_forward_impl.13} parent=35 // pred_check_branch
        %273 = sbr.rel (%p271) target = $region48
      $region47: #{_forward_impl.13} parent=35 // pred_region
        %p274 = scmp.lt.s32.totalorder %s14, 1
        %s275 = scalar_select %p274, %s14, 1
        %s276 = smul.addr %s275, 2
        %s277 = scalar_lea.vmem %s2, %s276
      $region48: #{_forward_impl.13} parent=35 // pred_fallthru
        _
    $region36: #{_forward_impl.13} parent=5 // pred_fallthru
      _
    %p278 = scmp.le.s32.totalorder 1, %s14
    %p279 = scmp.lt.s32.totalorder %s14, 3
    %p280 = pnand %p278, %p279
    %p281 = pneg %p280
    // Predicated region
    $region49: #{_forward_impl.13} parent=5 // pred_check
      _
    $region50: #{_forward_impl.13} parent=5 // pred_check_branch
      %283 = sbr.rel (%p280) target = $region52
    $region51: #{_forward_impl.13} parent=5 // pred_region
      %s284 = ssub.s32 %s14, 1
      %p285 = scmp.lt.s32.totalorder %s19, 1
      %s286 = scalar_select %p285, %s19, 1
      %s287 = smul.addr %s286, 2
      %s288 = scalar_lea.vmem %s0, %s287
      %p289 = pneg %p40
      %p290 = pneg %p37
      %p291 = scmp.lt.s32.totalorder %s19, 1
      %s292 = scalar_select %p291, %s19, 1
      %s293 = smul.addr %s292, 2
      %s294 = scalar_lea.vmem %s1, %s293
      %p295 = pneg %p66
      %p296 = pneg %p63
      %p297 = scmp.lt.s32.totalorder %s19, 1
      %s298 = scalar_select %p297, %s19, 1
      %s299 = smul.addr %s298, 2
      %s300 = scalar_lea.vmem %s2, %s299
      %p301 = pneg %p92
      %p302 = pneg %p89
      %p303 = pneg %p113
      %p304 = pneg %p110
      %p305 = pneg %p134
      %p306 = pneg %p131
      %p307 = pneg %p155
      %p308 = pneg %p152
      %p309 = pneg %p176
      %p310 = pneg %p173
      %p311 = pneg %p197
      %p312 = pneg %p194
      %p313 = pneg %p223
      %p314 = pneg %p220
      %p315 = scmp.lt.s32.totalorder %s19, 1
      %s316 = scalar_select %p315, %s19, 1
      %s317 = smul.addr %s316, 2
      %s318 = scalar_lea.vmem %s8, %s317
      %p319 = scmp.lt.s32.totalorder %s19, 1
      %s320 = scalar_select %p319, %s19, 1
      %s321 = smul.addr %s320, 2
      %s322 = scalar_lea.vmem %s0, %s321
      %p323 = scmp.lt.s32.totalorder %s19, 1
      %s324 = scalar_select %p323, %s19, 1
      %s325 = smul.addr %s324, 2
      %s326 = scalar_lea.vmem %s1, %s325
      %p327 = scmp.lt.s32.totalorder %s19, 1
      %s328 = scalar_select %p327, %s19, 1
      %s329 = smul.addr %s328, 2
      %s330 = scalar_lea.vmem %s2, %s329
      %p331 = scmp.lt.s32.totalorder %s19, 1
      %s332 = scalar_select %p331, %s19, 1
      %s333 = smul.addr %s332, 2
      %s334 = scalar_lea.vmem %s8, %s333
      %336 = vst [vmem:[#allocation2] sm:$0xff] 0.0
      %337 = vst [vmem:[#allocation2 + $0x20] sm:$0xff] 0.0
      %338 = vst [vmem:[#allocation2 + $0x40] sm:$0xff] 0.0
      %339 = vst [vmem:[#allocation2 + $0x60] sm:$0xff] 0.0
      %vm340 = vcmask 1048064
      %341 = vst.msk [vmem:[#allocation2 + $0x10] sm:$0xff] %vm340, 0.0
      %342 = vst [vmem:[#allocation2 + $0x18] sm:$0xff] 0.0
      %343 = vst.msk [vmem:[#allocation2 + $0x30] sm:$0xff] %vm340, 0.0
      %344 = vst [vmem:[#allocation2 + $0x38] sm:$0xff] 0.0
      %345 = vst.msk [vmem:[#allocation2 + $0x50] sm:$0xff] %vm340, 0.0
      %346 = vst [vmem:[#allocation2 + $0x58] sm:$0xff] 0.0
      %347 = vst.msk [vmem:[#allocation2 + $0x70] sm:$0xff] %vm340, 0.0
      %348 = vst [vmem:[#allocation2 + $0x78] sm:$0xff] 0.0
      %v349 = vld [vmem:[%s3] ss:$2 sm:$0x3]
      %s350 = scalar_lea.vmem %s3, 1
      %v351 = vld [vmem:[%s350] ss:$2 sm:$0x3]
      %v352 = vld [vmem:[%s7] sm:$0xff]
      %v353 = vld [vmem:[%s7 + $0x8] sm:$0xff]
      %v354 = vld [vmem:[%s7 + $0x10] sm:$0xff]
      %v355 = vld [vmem:[%s7 + $0x18] sm:$0xff]
      %v356 = vld [vmem:[%s7] sm:$0x1]
      %v357 = vld [vmem:[%s322] sm:$0x3]
      %v358 = vlaneseq
      %vm359 = vcmp.ge.s32.totalorder %v358, 0
      %vm360 = vcmp.lt.s32.totalorder %v358, 192
      %vm361 = vmand %vm359, %vm360
      %s362 = scalar_lea.vmem [#allocation2], 8
      %363 = vst.msk [vmem:[%s362] ss:$8 sm:$0x3] %vm361, %v357
      %364 = vst.msk [vmem:[%s362] ss:$8 sm:$0x0] %vm361, %v357
      %v365 = vld [vmem:[%s326] sm:$0x3]
      %v366 = vunpack.c.l.bf16 %v365
      %v369 = vunpack.c.l.s4 1966171168
      %v370 = vunpack.c.0.s8 %v369
      %v371 = vlaneseq
      %v372 = vshrl.u32 %v371, 7
      %v373 = vsub.s32 %v370, %v372
      %v374 = vrot.slane %v366, %v373
      %s376 = scalar_lea.vmem [#allocation2], 9
      %377 = vst.msk [vmem:[%s376] ss:$8 sm:$0x3] %vm361, %v374
      %378 = vst.msk [vmem:[%s376] ss:$8 sm:$0x0] %vm361, %v374
      %v379 = vld [vmem:[%s330] sm:$0x3]
      %s380 = scalar_lea.vmem [#allocation2], 10
      %381 = vst.msk [vmem:[%s380] ss:$8 sm:$0x3] %vm361, %v379
      %382 = vst.msk [vmem:[%s380] ss:$8 sm:$0x0] %vm361, %v379
      %v383 = vld [vmem:[#allocation2] sm:$0x7]
      %v384 = vld [vmem:[#allocation2 + $0x8] sm:$0x7]
      %v385 = vld [vmem:[#allocation2 + $0x10] sm:$0x7]
      %v387 = vlaneseq
      %v388 = vshrl.u32 %v387, 7
      %v389 = vsub.s32 0, %v388
      %v390 = vrot.slane %v349, %v389
      %v391 = vlaneseq
      %v392 = vshrl.u32 %v391, 7
      %v393 = vsub.s32 1, %v392
      %v394 = vrot.slane %v349, %v393
      %395 = vrot.lane.b32.xlu0 %v390, 111
      %v396 = vpop.permute.xlu0 %395
      %397 = vrot.lane.b32.xlu0 %v394, 111
      %v398 = vpop.permute.xlu0 %397
      %vm399 = vcmask 908288
      %v400 = vsel %vm399, %v396, %v398
      %v404 = vmul.f32 %v383, %v396
      %v405 = vmul.f32 %v384, %v400
      %v406 = vmul.f32 %v385, %v398
      %v407 = vpack.c.bf16 %v404, %v404
      %v408 = vpack.c.bf16 %v405, %v405
      %v409 = vpack.c.bf16 %v406, %v406
      %v413 = vunpack.c.l.b16 %v407
      %v414 = vunpack.c.l.b16 %v408
      %v415 = vunpack.c.l.b16 %v409
      %v416 = vpack.c.b16 %v414, %v413
      %v417 = vpack.c.b16 %v415, %v415
      %418 = vrot.lane.b32.xlu0 %v416, 17
      %v419 = vpop.permute.xlu0 %418
      %420 = vrot.lane.b32.xlu0 %v417, 17
      %v421 = vpop.permute.xlu0 %420
      %v422 = vrot.slane %v419, 4
      %v423 = vrot.slane %v421, 4
      %vm424 = vcmask 1043456
      %v425 = vsel %vm424, %v422, %v423
      %vm426 = vcmask 138240
      %v427 = vsel %vm426, %v419, %v425
      %vm429 = vcmask 1041408
      %vm430 = vsmask.f32 1280
      %vm431 = vmand %vm429, %vm430
      %vm432 = vcmask 1045508
      %vm433 = vsmask.f32 5376
      %vm434 = vmand %vm432, %vm433
      %vm435 = vmor %vm434, %vm431
      %v436 = vld [vmem:[#allocation3] sm:$0x33]
      %v437 = vsel %vm435, %v427, %v436
      %438 = vst [vmem:[#allocation3] sm:$0x33] %v437
      %v439 = vld [vmem:[#allocation2] sm:$0x7]
      %v440 = vld [vmem:[#allocation2 + $0x8] sm:$0x7]
      %v441 = vld [vmem:[#allocation2 + $0x10] sm:$0x7]
      %v442 = vpack.c.bf16 %v439, %v439
      %v443 = vpack.c.bf16 %v440, %v440
      %v444 = vpack.c.bf16 %v441, %v441
      %v448 = vunpack.c.l.b16 %v442
      %v449 = vunpack.c.l.b16 %v443
      %v450 = vunpack.c.l.b16 %v444
      %v451 = vpack.c.b16 %v449, %v448
      %v452 = vpack.c.b16 %v450, %v450
      %v454 = vshrl.u32 %v451, 16
      %v456 = vrot.slane %v454, 6
      %v457 = vshll.u32 %v451, 16
      %v459 = vrot.slane %v457, 7
      %v460 = vor.u32 %v456, %v459
      %v462 = vshrl.u32 %v452, 16
      %v464 = vrot.slane %v462, 6
      %v465 = vshll.u32 %v452, 16
      %v467 = vrot.slane %v465, 7
      %v468 = vor.u32 %v464, %v467
      %469 = vrot.lane.b32.xlu0 %v460, 16
      %v470 = vpop.permute.xlu0 %469
      %471 = vrot.lane.b32.xlu0 %v468, 16
      %v472 = vpop.permute.xlu0 %471
      %v473 = vrot.slane %v470, 4
      %v474 = vrot.slane %v472, 4
      %v475 = vsel %vm424, %v473, %v474
      %vm476 = vcmask 130048
      %v477 = vsel %vm476, %v470, %v475
      %vm479 = vcmask 1042433
      %vm480 = vsmask.f32 7942
      %vm481 = vmand %vm479, %vm480
      %vm482 = vcmask 1046533
      %vm483 = vsmask.f32 7958
      %vm484 = vmand %vm482, %vm483
      %vm485 = vmor %vm484, %vm481
      %v486 = vld [vmem:[#allocation3] sm:$0x66]
      %v487 = vsel %vm485, %v477, %v486
      %488 = vst [vmem:[#allocation3] sm:$0x66] %v487
      %v489 = vld [vmem:[#allocation2] sm:$0x7]
      %v490 = vld [vmem:[#allocation2 + $0x8] sm:$0x7]
      %v491 = vld [vmem:[#allocation2 + $0x10] sm:$0x7]
      %v493 = vlaneseq
      %v494 = vshrl.u32 %v493, 7
      %v495 = vsub.s32 0, %v494
      %v496 = vrot.slane %v351, %v495
      %v497 = vlaneseq
      %v498 = vshrl.u32 %v497, 7
      %v499 = vsub.s32 1, %v498
      %v500 = vrot.slane %v351, %v499
      %501 = vrot.lane.b32.xlu0 %v496, 113
      %v502 = vpop.permute.xlu0 %501
      %503 = vrot.lane.b32.xlu0 %v500, 113
      %v504 = vpop.permute.xlu0 %503
      %vm505 = vcmask 924672
      %v506 = vsel %vm505, %v502, %v504
      %v510 = vmul.f32 %v489, %v502
      %v511 = vmul.f32 %v490, %v506
      %v512 = vmul.f32 %v491, %v504
      %v513 = vpack.c.bf16 %v510, %v510
      %v514 = vpack.c.bf16 %v511, %v511
      %v515 = vpack.c.bf16 %v512, %v512
      %v519 = vunpack.c.l.b16 %v513
      %v520 = vunpack.c.l.b16 %v514
      %v521 = vunpack.c.l.b16 %v515
      %v522 = vpack.c.b16 %v520, %v519
      %v523 = vpack.c.b16 %v521, %v521
      %v524 = vrot.slane %v522, 5
      %v525 = vrot.slane %v523, 5
      %v526 = vrot.slane %v524, 4
      %v527 = vrot.slane %v525, 4
      %528 = vrot.lane.b32.xlu0 %v524, 15
      %v529 = vpop.permute.xlu0 %528
      %530 = vrot.lane.b32.xlu0 %v525, 15
      %v531 = vpop.permute.xlu0 %530
      %532 = vrot.lane.b32.xlu0 %v526, 15
      %v533 = vpop.permute.xlu0 %532
      %534 = vrot.lane.b32.xlu0 %v527, 15
      %v535 = vpop.permute.xlu0 %534
      %v536 = vrot.slane %v529, 4
      %v537 = vrot.slane %v531, 4
      %v538 = vrot.slane %v533, 4
      %v539 = vrot.slane %v535, 4
      %v540 = vsel %vm424, %v536, %v537
      %vm541 = vcmask 121856
      %v542 = vsel %vm541, %v529, %v540
      %v543 = vsel %vm424, %v538, %v539
      %v544 = vsel %vm541, %v533, %v543
      %547 = vst [vmem:[#allocation3] sm:$0x88] %v542
      %vm548 = vcmask 1040384
      %vm549 = vsmask.f32 256
      %vm550 = vmand %vm548, %vm549
      %vm551 = vcmask 1044484
      %vm552 = vsmask.f32 4352
      %vm553 = vmand %vm551, %vm552
      %vm554 = vmor %vm553, %vm550
      %v555 = vld [vmem:[#allocation3 + $0x8] sm:$0x11]
      %v556 = vsel %vm554, %v544, %v555
      %557 = vst [vmem:[#allocation3 + $0x8] sm:$0x11] %v556
      %v558 = vld [vmem:[#allocation2] sm:$0x7]
      %v559 = vld [vmem:[#allocation2 + $0x8] sm:$0x7]
      %v560 = vld [vmem:[#allocation2 + $0x10] sm:$0x7]
      %561 = vrot.lane.b32.xlu0 %v390, 127
      %v562 = vpop.permute.xlu0 %561
      %563 = vrot.lane.b32.xlu0 %v394, 127
      %v564 = vpop.permute.xlu0 %563
      %vm565 = vcmask 1039360
      %v566 = vsel %vm565, %v562, %v564
      %v570 = vmul.f32 %v558, %v562
      %v571 = vmul.f32 %v559, %v566
      %v572 = vmul.f32 %v560, %v564
      %v573 = vpack.c.bf16 %v570, %v570
      %v574 = vpack.c.bf16 %v571, %v571
      %v575 = vpack.c.bf16 %v572, %v572
      %v579 = vunpack.c.l.b16 %v573
      %v580 = vunpack.c.l.b16 %v574
      %v581 = vunpack.c.l.b16 %v575
      %v582 = vpack.c.b16 %v580, %v579
      %v583 = vpack.c.b16 %v581, %v581
      %v585 = vshrl.u32 %v582, 16
      %v587 = vrot.slane %v585, 7
      %v588 = vshll.u32 %v582, 16
      %v590 = vor.u32 %v587, %v588
      %v592 = vshrl.u32 %v583, 16
      %v594 = vrot.slane %v592, 7
      %v595 = vshll.u32 %v583, 16
      %v597 = vor.u32 %v594, %v595
      %598 = vrot.lane.b32.xlu0 %v590, 1
      %v599 = vpop.permute.xlu0 %598
      %600 = vrot.lane.b32.xlu0 %v597, 1
      %v601 = vpop.permute.xlu0 %600
      %v602 = vrot.slane %v599, 4
      %v603 = vrot.slane %v601, 4
      %v604 = vsel %vm424, %v602, %v603
      %vm605 = vcmask 7168
      %v606 = vsel %vm605, %v599, %v604
      %vm608 = vsmask.f32 7938
      %vm609 = vmand %vm429, %vm608
      %vm610 = vsmask.f32 7954
      %vm611 = vmand %vm432, %vm610
      %vm612 = vmor %vm611, %vm609
      %v613 = vld [vmem:[#allocation3 + $0x8] sm:$0x33]
      %v614 = vsel %vm612, %v606, %v613
      %615 = vst [vmem:[#allocation3 + $0x8] sm:$0x33] %v614
      %v616 = vld [vmem:[#allocation2 + $0x8] sm:$0x7]
      %v617 = vld [vmem:[#allocation2 + $0x10] sm:$0x7]
      %v618 = vpack.c.bf16 %v616, %v616
      %v619 = vpack.c.bf16 %v617, %v617
      %v622 = vunpack.c.l.b16 %v618
      %v623 = vunpack.c.l.b16 %v619
      %v624 = vpack.c.b16 %v623, %v622
      %v625 = vrot.slane %v624, 6
      %vm627 = vcmask 1043458
      %vm628 = vsmask.f32 3328
      %vm629 = vmand %vm627, %vm628
      %vm630 = vcmask 1047558
      %vm631 = vsmask.f32 7424
      %vm632 = vmand %vm630, %vm631
      %vm633 = vmor %vm632, %vm629
      %v634 = vld [vmem:[#allocation3 + $0x8] sm:$0xcc]
      %v635 = vsel %vm633, %v625, %v634
      %636 = vst [vmem:[#allocation3 + $0x8] sm:$0xcc] %v635
      %v637 = vld [vmem:[#allocation2 + $0x8] sm:$0x7]
      %v638 = vld [vmem:[#allocation2 + $0x10] sm:$0x7]
      %v639 = vld [vmem:[#allocation2 + $0x18] sm:$0x7]
      %640 = vrot.lane.b32.xlu0 %v496, 1
      %v641 = vpop.permute.xlu0 %640
      %642 = vrot.lane.b32.xlu0 %v500, 1
      %v643 = vpop.permute.xlu0 %642
      %vm644 = vcmask 7168
      %v645 = vsel %vm644, %v641, %v643
      %v649 = vmul.f32 %v637, %v641
      %v650 = vmul.f32 %v638, %v645
      %v651 = vmul.f32 %v639, %v643
      %v652 = vpack.c.bf16 %v649, %v649
      %v653 = vpack.c.bf16 %v650, %v650
      %v654 = vpack.c.bf16 %v651, %v651
      %v658 = vunpack.c.l.b16 %v652
      %v659 = vunpack.c.l.b16 %v653
      %v660 = vunpack.c.l.b16 %v654
      %v661 = vpack.c.b16 %v659, %v658
      %v662 = vpack.c.b16 %v660, %v660
      %v664 = vshll.u32 %v661, 16
      %v666 = vrot.slane %v664, 5
      %v668 = vshll.u32 %v662, 16
      %v670 = vrot.slane %v668, 5
      %v671 = vshrl.u32 %v661, 16
      %v673 = vrot.slane %v671, 4
      %v674 = vor.u32 %v673, %v666
      %v675 = vrot.slane %v674, 4
      %v676 = vshrl.u32 %v662, 16
      %v678 = vrot.slane %v676, 4
      %v679 = vor.u32 %v678, %v670
      %v680 = vrot.slane %v679, 4
      %681 = vrot.lane.b32.xlu0 %v666, 127
      %v682 = vpop.permute.xlu0 %681
      %683 = vrot.lane.b32.xlu0 %v670, 127
      %v684 = vpop.permute.xlu0 %683
      %685 = vrot.lane.b32.xlu0 %v675, 127
      %v686 = vpop.permute.xlu0 %685
      %687 = vrot.lane.b32.xlu0 %v680, 127
      %v688 = vpop.permute.xlu0 %687
      %v689 = vrot.slane %v682, 4
      %v690 = vrot.slane %v684, 4
      %v691 = vrot.slane %v686, 4
      %v692 = vrot.slane %v688, 4
      %v693 = vsel %vm424, %v689, %v690
      %vm694 = vcmask 1039360
      %v695 = vsel %vm694, %v682, %v693
      %v696 = vsel %vm424, %v691, %v692
      %v697 = vsel %vm694, %v686, %v696
      %vm700 = vcmask 1043459
      %vm701 = vsmask.f32 7950
      %vm702 = vmand %vm700, %vm701
      %vm703 = vcmask 1047559
      %vm704 = vsmask.f32 7966
      %vm705 = vmand %vm703, %vm704
      %vm706 = vmor %vm705, %vm702
      %v707 = vld [vmem:[#allocation3 + $0x8] sm:$0x88]
      %v708 = vsel %vm706, %v695, %v707
      %709 = vst [vmem:[#allocation3 + $0x8] sm:$0x88] %v708
      %710 = vst [vmem:[#allocation3 + $0x10] sm:$0x11] %v697
      %v711 = vld [vmem:[#allocation2 + $0x8] sm:$0x7]
      %v712 = vld [vmem:[#allocation2 + $0x10] sm:$0x7]
      %v713 = vld [vmem:[#allocation2 + $0x18] sm:$0x7]
      %714 = vrot.lane.b32.xlu0 %v390, 15
      %v715 = vpop.permute.xlu0 %714
      %716 = vrot.lane.b32.xlu0 %v394, 15
      %v717 = vpop.permute.xlu0 %716
      %vm718 = vcmask 121856
      %v719 = vsel %vm718, %v715, %v717
      %v723 = vmul.f32 %v711, %v715
      %v724 = vmul.f32 %v712, %v719
      %v725 = vmul.f32 %v713, %v717
      %v726 = vpack.c.bf16 %v723, %v723
      %v727 = vpack.c.bf16 %v724, %v724
      %v728 = vpack.c.bf16 %v725, %v725
      %v732 = vunpack.c.l.b16 %v726
      %v733 = vunpack.c.l.b16 %v727
      %v734 = vunpack.c.l.b16 %v728
      %v735 = vpack.c.b16 %v733, %v732
      %v736 = vpack.c.b16 %v734, %v734
      %v737 = vrot.slane %v735, 7
      %v738 = vrot.slane %v736, 7
      %739 = vrot.lane.b32.xlu0 %v737, 113
      %v740 = vpop.permute.xlu0 %739
      %741 = vrot.lane.b32.xlu0 %v738, 113
      %v742 = vpop.permute.xlu0 %741
      %v743 = vrot.slane %v740, 4
      %v744 = vrot.slane %v742, 4
      %v745 = vsel %vm424, %v743, %v744
      %vm746 = vcmask 924672
      %v747 = vsel %vm746, %v740, %v745
      %vm749 = vsmask.f32 2304
      %vm750 = vmand %vm479, %vm749
      %vm751 = vsmask.f32 6400
      %vm752 = vmand %vm482, %vm751
      %vm753 = vmor %vm752, %vm750
      %v754 = vld [vmem:[#allocation3 + $0x10] sm:$0x66]
      %v755 = vsel %vm753, %v747, %v754
      %756 = vst [vmem:[#allocation3 + $0x10] sm:$0x66] %v755
      %v757 = vld [vmem:[#allocation2 + $0x8] sm:$0x7]
      %v758 = vld [vmem:[#allocation2 + $0x10] sm:$0x7]
      %v759 = vld [vmem:[#allocation2 + $0x18] sm:$0x7]
      %v760 = vpack.c.bf16 %v757, %v757
      %v761 = vpack.c.bf16 %v758, %v758
      %v762 = vpack.c.bf16 %v759, %v759
      %v766 = vunpack.c.l.b16 %v760
      %v767 = vunpack.c.l.b16 %v761
      %v768 = vunpack.c.l.b16 %v762
      %v769 = vpack.c.b16 %v767, %v766
      %v770 = vpack.c.b16 %v768, %v768
      %v772 = vshrl.u32 %v769, 16
      %v774 = vrot.slane %v772, 5
      %v775 = vshll.u32 %v769, 16
      %v777 = vrot.slane %v775, 6
      %v778 = vor.u32 %v774, %v777
      %v780 = vshrl.u32 %v770, 16
      %v782 = vrot.slane %v780, 5
      %v783 = vshll.u32 %v770, 16
      %v785 = vrot.slane %v783, 6
      %v786 = vor.u32 %v782, %v785
      %787 = vrot.lane.b32.xlu0 %v778, 112
      %v788 = vpop.permute.xlu0 %787
      %789 = vrot.lane.b32.xlu0 %v786, 112
      %v790 = vpop.permute.xlu0 %789
      %v791 = vrot.slane %v788, 4
      %v792 = vrot.slane %v790, 4
      %v793 = vsel %vm424, %v791, %v792
      %vm794 = vcmask 916480
      %v795 = vsel %vm794, %v788, %v793
      %vm797 = vsmask.f32 7946
      %vm798 = vmand %vm627, %vm797
      %vm799 = vsmask.f32 7962
      %vm800 = vmand %vm630, %vm799
      %vm801 = vmor %vm800, %vm798
      %v802 = vld [vmem:[#allocation3 + $0x10] sm:$0xcc]
      %v803 = vsel %vm801, %v795, %v802
      %804 = vst [vmem:[#allocation3 + $0x10] sm:$0xcc] %v803
      %v805 = vld [vmem:[#allocation2 + $0x8] sm:$0x7]
      %v806 = vld [vmem:[#allocation2 + $0x10] sm:$0x7]
      %v807 = vld [vmem:[#allocation2 + $0x18] sm:$0x7]
      %808 = vrot.lane.b32.xlu0 %v496, 17
      %v809 = vpop.permute.xlu0 %808
      %810 = vrot.lane.b32.xlu0 %v500, 17
      %v811 = vpop.permute.xlu0 %810
      %vm812 = vcmask 138240
      %v813 = vsel %vm812, %v809, %v811
      %v817 = vmul.f32 %v805, %v809
      %v818 = vmul.f32 %v806, %v813
      %v819 = vmul.f32 %v807, %v811
      %v820 = vpack.c.bf16 %v817, %v817
      %v821 = vpack.c.bf16 %v818, %v818
      %v822 = vpack.c.bf16 %v819, %v819
      %v826 = vunpack.c.l.b16 %v820
      %v827 = vunpack.c.l.b16 %v821
      %v828 = vunpack.c.l.b16 %v822
      %v829 = vpack.c.b16 %v827, %v826
      %v830 = vpack.c.b16 %v828, %v828
      %831 = vrot.lane.b32.xlu0 %v829, 111
      %v832 = vpop.permute.xlu0 %831
      %833 = vrot.lane.b32.xlu0 %v830, 111
      %v834 = vpop.permute.xlu0 %833
      %v835 = vrot.slane %v832, 4
      %v836 = vrot.slane %v834, 4
      %v837 = vsel %vm424, %v835, %v836
      %vm838 = vcmask 908288
      %v839 = vsel %vm838, %v832, %v837
      %v841 = vld [vmem:[#allocation3 + $0x18] sm:$0x33]
      %v842 = vsel %vm435, %v839, %v841
      %843 = vst [vmem:[#allocation3 + $0x18] sm:$0x33] %v842
      %v844 = vld [vmem:[%s4] sm:$0xf]
      %v845 = vld [vmem:[%s4 + $0x4] sm:$0xf]
      %v846 = vld [vmem:[%s4 + $0x8] sm:$0xf]
      %v847 = vld [vmem:[%s4 + $0xc] sm:$0xf]
      %v848 = vld [vmem:[#allocation3] sm:$0xff]
      %v849 = vld [vmem:[#allocation3 + $0x8] sm:$0xff]
      %v850 = vld [vmem:[#allocation3 + $0x10] sm:$0xff]
      %v851 = vld [vmem:[#allocation3 + $0x18] sm:$0x33]
      %853 = vset.pattern.permute.xlu0 0
      %854 = vperm.xlu0 %853, %v352
      %v855 = vpop.permute.xlu0 %854
      %858 = vset.pattern.permute.xlu0 0
      %859 = vperm.xlu0 %858, %v353
      %v860 = vpop.permute.xlu0 %859
      %863 = vset.pattern.permute.xlu0 0
      %864 = vperm.xlu0 %863, %v354
      %v865 = vpop.permute.xlu0 %864
      %868 = vset.pattern.permute.xlu0 0
      %869 = vperm.xlu0 %868, %v355
      %v870 = vpop.permute.xlu0 %869
      %v876 = vunpack.c.l.b16 %v844
      %v877 = vunpack.c.l.b16 %v845
      %v878 = vunpack.c.l.b16 %v846
      %v879 = vunpack.c.l.b16 %v847
      %v880 = vpack.c.b16 %v877, %v876
      %v881 = vpack.c.b16 %v879, %v878
      %v886 = vunpack.c.l.b16 %v848
      %v887 = vunpack.c.h.b16 %v848
      %v888 = vunpack.c.l.b16 %v849
      %v889 = vunpack.c.h.b16 %v849
      %v890 = vunpack.c.l.b16 %v850
      %v891 = vunpack.c.h.b16 %v850
      %v892 = vunpack.c.l.b16 %v851
      %v893 = vunpack.c.h.b16 %v851
      %v894 = vpack.c.b16 %v888, %v886
      %v895 = vpack.c.b16 %v889, %v887
      %v896 = vpack.c.b16 %v892, %v890
      %v897 = vpack.c.b16 %v893, %v891
      %vm900 = vcmask 220160
      %v902 = vsel %vm900, %v880, 0
      %v905 = vsel %vm900, %v881, 0
      %vm907 = vcmask 1044480
      %vm908 = vcmask 1045504
      %v909 = vsel %vm907, 4294967295, 65535
      %v910 = vsel %vm908, %v909, 0
      %v912 = vand.u32 %v896, %v910
      %v915 = vand.u32 %v897, %v910
      %917 = vmatprep.subr.bf16.mxu0 0
      %918 = vmatpush1.bf16.msra.mxu0 0
      %919 = vmatprep.subr.bf16.mxu0 0
      %920 = vmatpush1.bf16.msra.mxu0 0
      %921 = vmatprep.subr.bf16.mxu0 0
      %922 = vmatpush1.bf16.msra.mxu0 0
      %923 = vmatprep.subr.bf16.mxu0 0
      %924 = vmatpush1.bf16.msra.mxu0 0
      %925 = vmatprep.subr.bf16.mxu0 0
      %926 = vmatpush1.bf16.msra.mxu0 0
      %927 = vmatprep.subr.bf16.mxu0 0
      %928 = vmatpush1.bf16.msra.mxu0 0
      %929 = vmatprep.subr.bf16.mxu0 %v915
      %930 = vmatpush1.bf16.msra.mxu0 %v912
      %931 = vmatprep.subr.bf16.mxu0 %v895
      %932 = vmatpush1.bf16.msra.mxu0 %v894
      %933 = vmatprep.subr.bf16.mxu0 0
      %934 = vmatpush2.bf16.msra.mxu0 0
      %935 = vmatprep.subr.bf16.mxu0 0
      %936 = vmatpush2.bf16.msra.mxu0 0
      %937 = vmatprep.subr.bf16.mxu0 0
      %938 = vmatpush2.bf16.msra.mxu0 0
      %939 = vmatprep.subr.bf16.mxu0 0
      %940 = vmatpush2.bf16.msra.mxu0 0
      %941 = vmatprep.subr.bf16.mxu0 0
      %942 = vmatpush2.bf16.msra.mxu0 0
      %943 = vmatprep.subr.bf16.mxu0 0
      %944 = vmatpush2.bf16.msra.mxu0 0
      %945 = vmatprep.subr.bf16.mxu0 0
      %946 = vmatpush2.bf16.msra.mxu0 0
      %947 = vmatprep.subr.bf16.mxu0 0
      %948 = vmatpush2.bf16.msra.mxu0 0
      %949 = vmatprep.mubr.bf16.mxu0 0
      %950 = vmatmul.mubr.bf16.gmra.mxu0 %v902
      %v951 = vpop.f32.mrf.mxu0
      %v952 = vadd.f32 %v855, %v951
      %v953 = vpop.f32.mrf.mxu0
      %v954 = vadd.f32 %v855, %v953
      %v955 = vpop.f32.mrf.mxu0
      %v956 = vadd.f32 %v860, %v955
      %v957 = vpop.f32.mrf.mxu0
      %v958 = vadd.f32 %v860, %v957
      %959 = vmatprep.mubr.bf16.mxu0 0
      %960 = vmatmul.mubr.bf16.gmra.mxu0 %v905
      %v961 = vpop.f32.mrf.mxu0
      %v962 = vadd.f32 %v865, %v961
      %v963 = vpop.f32.mrf.mxu0
      %v964 = vadd.f32 %v865, %v963
      %v965 = vpop.f32.mrf.mxu0
      %v966 = vadd.f32 %v870, %v965
      %v967 = vpop.f32.mrf.mxu0
      %v968 = vadd.f32 %v870, %v967
      %969 = vdwg.mxu0
      %vm970 = vcmp.ge.f32.partialorder %v952, 0.0
      %vm971 = vcmp.ge.f32.partialorder %v954, 0.0
      %vm972 = vcmp.ge.f32.partialorder %v956, 0.0
      %vm973 = vcmp.ge.f32.partialorder %v958, 0.0
      %vm974 = vcmp.ge.f32.partialorder %v962, 0.0
      %vm975 = vcmp.ge.f32.partialorder %v964, 0.0
      %vm976 = vcmp.ge.f32.partialorder %v966, 0.0
      %vm977 = vcmp.ge.f32.partialorder %v968, 0.0
      %978 = vset.pattern.permute.xlu0 1
      %979 = vperm.xlu0 %978, %v352
      %v980 = vpop.permute.xlu0 %979
      %982 = vset.pattern.permute.xlu0 1
      %983 = vperm.xlu0 %982, %v353
      %v984 = vpop.permute.xlu0 %983
      %986 = vset.pattern.permute.xlu0 1
      %987 = vperm.xlu0 %986, %v354
      %v988 = vpop.permute.xlu0 %987
      %990 = vset.pattern.permute.xlu0 1
      %991 = vperm.xlu0 %990, %v355
      %v992 = vpop.permute.xlu0 %991
      %v994 = vmul.f32 %v952, %v980
      %v995 = vmul.f32 %v954, %v980
      %v996 = vmul.f32 %v956, %v984
      %v997 = vmul.f32 %v958, %v984
      %v998 = vmul.f32 %v962, %v988
      %v999 = vmul.f32 %v964, %v988
      %v1000 = vmul.f32 %v966, %v992
      %v1001 = vmul.f32 %v968, %v992
      %v1002 = vsel %vm970, %v952, %v994
      %v1003 = vsel %vm971, %v954, %v995
      %v1004 = vsel %vm972, %v956, %v996
      %v1005 = vsel %vm973, %v958, %v997
      %v1006 = vsel %vm974, %v962, %v998
      %v1007 = vsel %vm975, %v964, %v999
      %v1008 = vsel %vm976, %v966, %v1000
      %v1009 = vsel %vm977, %v968, %v1001
      %1010 = vst [vmem:[#allocation2 + $0x8] sm:$0xff] %v1002
      %vm1011 = vcmask 523264
      %1012 = vst.msk [vmem:[#allocation2 + $0x10] sm:$0xff] %vm1011, %v1003
      %1013 = vst [vmem:[#allocation2 + $0x28] sm:$0xff] %v1004
      %1014 = vst.msk [vmem:[#allocation2 + $0x30] sm:$0xff] %vm1011, %v1005
      %1015 = vst [vmem:[#allocation2 + $0x48] sm:$0xff] %v1006
      %1016 = vst.msk [vmem:[#allocation2 + $0x50] sm:$0xff] %vm1011, %v1007
      %1017 = vst [vmem:[#allocation2 + $0x68] sm:$0xff] %v1008
      %1018 = vst.msk [vmem:[#allocation2 + $0x70] sm:$0xff] %vm1011, %v1009
      %v1019 = vld [vmem:[#allocation2] sm:$0xff]
      %v1020 = vld [vmem:[#allocation2 + $0x8] sm:$0xff]
      %v1021 = vld [vmem:[#allocation2 + $0x10] sm:$0xff]
      %v1022 = vld [vmem:[#allocation2 + $0x20] sm:$0xff]
      %v1023 = vld [vmem:[#allocation2 + $0x28] sm:$0xff]
      %v1024 = vld [vmem:[#allocation2 + $0x30] sm:$0xff]
      %v1025 = vld [vmem:[#allocation2 + $0x40] sm:$0xff]
      %v1026 = vld [vmem:[#allocation2 + $0x48] sm:$0xff]
      %v1027 = vld [vmem:[#allocation2 + $0x50] sm:$0xff]
      %v1028 = vld [vmem:[#allocation2 + $0x60] sm:$0xff]
      %v1029 = vld [vmem:[#allocation2 + $0x68] sm:$0xff]
      %v1030 = vld [vmem:[#allocation2 + $0x70] sm:$0xff]
      %v1031 = vmul.f32 %v1019, %v396
      %v1032 = vmul.f32 %v1020, %v400
      %v1033 = vmul.f32 %v1021, %v398
      %v1034 = vmul.f32 %v1022, %v396
      %v1035 = vmul.f32 %v1023, %v400
      %v1036 = vmul.f32 %v1024, %v398
      %v1037 = vmul.f32 %v1025, %v396
      %v1038 = vmul.f32 %v1026, %v400
      %v1039 = vmul.f32 %v1027, %v398
      %v1040 = vmul.f32 %v1028, %v396
      %v1041 = vmul.f32 %v1029, %v400
      %v1042 = vmul.f32 %v1030, %v398
      %v1043 = vpack.c.bf16 %v1034, %v1031
      %v1044 = vpack.c.bf16 %v1035, %v1032
      %v1045 = vpack.c.bf16 %v1036, %v1033
      %v1046 = vpack.c.bf16 %v1040, %v1037
      %v1047 = vpack.c.bf16 %v1041, %v1038
      %v1048 = vpack.c.bf16 %v1042, %v1039
      %v1055 = vunpack.c.l.b16 %v1043
      %v1056 = vunpack.c.l.b16 %v1044
      %v1057 = vunpack.c.l.b16 %v1045
      %v1058 = vunpack.c.h.b16 %v1043
      %v1059 = vunpack.c.h.b16 %v1044
      %v1060 = vunpack.c.h.b16 %v1045
      %v1061 = vunpack.c.l.b16 %v1046
      %v1062 = vunpack.c.l.b16 %v1047
      %v1063 = vunpack.c.l.b16 %v1048
      %v1064 = vunpack.c.h.b16 %v1046
      %v1065 = vunpack.c.h.b16 %v1047
      %v1066 = vunpack.c.h.b16 %v1048
      %v1067 = vpack.c.b16 %v1056, %v1055
      %v1068 = vpack.c.b16 %v1057, %v1057
      %v1069 = vpack.c.b16 %v1059, %v1058
      %v1070 = vpack.c.b16 %v1060, %v1060
      %v1071 = vpack.c.b16 %v1062, %v1061
      %v1072 = vpack.c.b16 %v1063, %v1063
      %v1073 = vpack.c.b16 %v1065, %v1064
      %v1074 = vpack.c.b16 %v1066, %v1066
      %1075 = vrot.lane.b32.xlu0 %v1067, 17
      %v1076 = vpop.permute.xlu0 %1075
      %1077 = vrot.lane.b32.xlu0 %v1068, 17
      %v1078 = vpop.permute.xlu0 %1077
      %1079 = vrot.lane.b32.xlu0 %v1069, 17
      %v1080 = vpop.permute.xlu0 %1079
      %1081 = vrot.lane.b32.xlu0 %v1070, 17
      %v1082 = vpop.permute.xlu0 %1081
      %1083 = vrot.lane.b32.xlu0 %v1071, 17
      %v1084 = vpop.permute.xlu0 %1083
      %1085 = vrot.lane.b32.xlu0 %v1072, 17
      %v1086 = vpop.permute.xlu0 %1085
      %1087 = vrot.lane.b32.xlu0 %v1073, 17
      %v1088 = vpop.permute.xlu0 %1087
      %1089 = vrot.lane.b32.xlu0 %v1074, 17
      %v1090 = vpop.permute.xlu0 %1089
      %v1091 = vrot.slane %v1076, 4
      %v1092 = vrot.slane %v1078, 4
      %v1093 = vrot.slane %v1080, 4
      %v1094 = vrot.slane %v1082, 4
      %v1095 = vrot.slane %v1084, 4
      %v1096 = vrot.slane %v1086, 4
      %v1097 = vrot.slane %v1088, 4
      %v1098 = vrot.slane %v1090, 4
      %v1099 = vsel %vm424, %v1091, %v1092
      %v1100 = vsel %vm426, %v1076, %v1099
      %v1101 = vsel %vm424, %v1093, %v1094
      %v1102 = vsel %vm426, %v1080, %v1101
      %v1103 = vsel %vm424, %v1095, %v1096
      %v1104 = vsel %vm426, %v1084, %v1103
      %v1105 = vsel %vm424, %v1097, %v1098
      %v1106 = vsel %vm426, %v1088, %v1105
      %1111 = vst [vmem:[#allocation4] sm:$0xff] %v1100
      %1112 = vst [vmem:[#allocation4 + $0x8] sm:$0xff] %v1102
      %1113 = vst [vmem:[#allocation4 + $0x10] sm:$0xff] %v1104
      %1114 = vst [vmem:[#allocation4 + $0x18] sm:$0xff] %v1106
      %v1115 = vld [vmem:[#allocation2] sm:$0xff]
      %v1116 = vld [vmem:[#allocation2 + $0x8] sm:$0xff]
      %v1117 = vld [vmem:[#allocation2 + $0x10] sm:$0xff]
      %v1118 = vld [vmem:[#allocation2 + $0x20] sm:$0xff]
      %v1119 = vld [vmem:[#allocation2 + $0x28] sm:$0xff]
      %v1120 = vld [vmem:[#allocation2 + $0x30] sm:$0xff]
      %v1121 = vld [vmem:[#allocation2 + $0x40] sm:$0xff]
      %v1122 = vld [vmem:[#allocation2 + $0x48] sm:$0xff]
      %v1123 = vld [vmem:[#allocation2 + $0x50] sm:$0xff]
      %v1124 = vld [vmem:[#allocation2 + $0x60] sm:$0xff]
      %v1125 = vld [vmem:[#allocation2 + $0x68] sm:$0xff]
      %v1126 = vld [vmem:[#allocation2 + $0x70] sm:$0xff]
      %v1127 = vpack.c.bf16 %v1118, %v1115
      %v1128 = vpack.c.bf16 %v1119, %v1116
      %v1129 = vpack.c.bf16 %v1120, %v1117
      %v1130 = vpack.c.bf16 %v1124, %v1121
      %v1131 = vpack.c.bf16 %v1125, %v1122
      %v1132 = vpack.c.bf16 %v1126, %v1123
      %v1139 = vunpack.c.l.b16 %v1127
      %v1140 = vunpack.c.l.b16 %v1128
      %v1141 = vunpack.c.l.b16 %v1129
      %v1142 = vunpack.c.h.b16 %v1127
      %v1143 = vunpack.c.h.b16 %v1128
      %v1144 = vunpack.c.h.b16 %v1129
      %v1145 = vunpack.c.l.b16 %v1130
      %v1146 = vunpack.c.l.b16 %v1131
      %v1147 = vunpack.c.l.b16 %v1132
      %v1148 = vunpack.c.h.b16 %v1130
      %v1149 = vunpack.c.h.b16 %v1131
      %v1150 = vunpack.c.h.b16 %v1132
      %v1151 = vpack.c.b16 %v1140, %v1139
      %v1152 = vpack.c.b16 %v1141, %v1141
      %v1153 = vpack.c.b16 %v1143, %v1142
      %v1154 = vpack.c.b16 %v1144, %v1144
      %v1155 = vpack.c.b16 %v1146, %v1145
      %v1156 = vpack.c.b16 %v1147, %v1147
      %v1157 = vpack.c.b16 %v1149, %v1148
      %v1158 = vpack.c.b16 %v1150, %v1150
      %1159 = vrot.lane.b32.xlu0 %v1151, 16
      %v1160 = vpop.permute.xlu0 %1159
      %1161 = vrot.lane.b32.xlu0 %v1152, 16
      %v1162 = vpop.permute.xlu0 %1161
      %1163 = vrot.lane.b32.xlu0 %v1153, 16
      %v1164 = vpop.permute.xlu0 %1163
      %1165 = vrot.lane.b32.xlu0 %v1154, 16
      %v1166 = vpop.permute.xlu0 %1165
      %1167 = vrot.lane.b32.xlu0 %v1155, 16
      %v1168 = vpop.permute.xlu0 %1167
      %1169 = vrot.lane.b32.xlu0 %v1156, 16
      %v1170 = vpop.permute.xlu0 %1169
      %1171 = vrot.lane.b32.xlu0 %v1157, 16
      %v1172 = vpop.permute.xlu0 %1171
      %1173 = vrot.lane.b32.xlu0 %v1158, 16
      %v1174 = vpop.permute.xlu0 %1173
      %v1175 = vrot.slane %v1160, 4
      %v1176 = vrot.slane %v1162, 4
      %v1177 = vrot.slane %v1164, 4
      %v1178 = vrot.slane %v1166, 4
      %v1179 = vrot.slane %v1168, 4
      %v1180 = vrot.slane %v1170, 4
      %v1181 = vrot.slane %v1172, 4
      %v1182 = vrot.slane %v1174, 4
      %v1183 = vsel %vm424, %v1175, %v1176
      %v1184 = vsel %vm476, %v1160, %v1183
      %v1185 = vsel %vm424, %v1177, %v1178
      %v1186 = vsel %vm476, %v1164, %v1185
      %v1187 = vsel %vm424, %v1179, %v1180
      %v1188 = vsel %vm476, %v1168, %v1187
      %v1189 = vsel %vm424, %v1181, %v1182
      %v1190 = vsel %vm476, %v1172, %v1189
      %1195 = vst [vmem:[#allocation4 + $0x20] sm:$0xff] %v1184
      %1196 = vst [vmem:[#allocation4 + $0x28] sm:$0xff] %v1186
      %1197 = vst [vmem:[#allocation4 + $0x30] sm:$0xff] %v1188
      %1198 = vst [vmem:[#allocation4 + $0x38] sm:$0xff] %v1190
      %v1199 = vld [vmem:[#allocation2] sm:$0xff]
      %v1200 = vld [vmem:[#allocation2 + $0x8] sm:$0xff]
      %v1201 = vld [vmem:[#allocation2 + $0x10] sm:$0xff]
      %v1202 = vld [vmem:[#allocation2 + $0x20] sm:$0xff]
      %v1203 = vld [vmem:[#allocation2 + $0x28] sm:$0xff]
      %v1204 = vld [vmem:[#allocation2 + $0x30] sm:$0xff]
      %v1205 = vld [vmem:[#allocation2 + $0x40] sm:$0xff]
      %v1206 = vld [vmem:[#allocation2 + $0x48] sm:$0xff]
      %v1207 = vld [vmem:[#allocation2 + $0x50] sm:$0xff]
      %v1208 = vld [vmem:[#allocation2 + $0x60] sm:$0xff]
      %v1209 = vld [vmem:[#allocation2 + $0x68] sm:$0xff]
      %v1210 = vld [vmem:[#allocation2 + $0x70] sm:$0xff]
      %v1211 = vmul.f32 %v1199, %v502
      %v1212 = vmul.f32 %v1200, %v506
      %v1213 = vmul.f32 %v1201, %v504
      %v1214 = vmul.f32 %v1202, %v502
      %v1215 = vmul.f32 %v1203, %v506
      %v1216 = vmul.f32 %v1204, %v504
      %v1217 = vmul.f32 %v1205, %v502
      %v1218 = vmul.f32 %v1206, %v506
      %v1219 = vmul.f32 %v1207, %v504
      %v1220 = vmul.f32 %v1208, %v502
      %v1221 = vmul.f32 %v1209, %v506
      %v1222 = vmul.f32 %v1210, %v504
      %v1223 = vpack.c.bf16 %v1214, %v1211
      %v1224 = vpack.c.bf16 %v1215, %v1212
      %v1225 = vpack.c.bf16 %v1216, %v1213
      %v1226 = vpack.c.bf16 %v1220, %v1217
      %v1227 = vpack.c.bf16 %v1221, %v1218
      %v1228 = vpack.c.bf16 %v1222, %v1219
      %v1235 = vunpack.c.l.b16 %v1223
      %v1236 = vunpack.c.l.b16 %v1224
      %v1237 = vunpack.c.l.b16 %v1225
      %v1238 = vunpack.c.h.b16 %v1223
      %v1239 = vunpack.c.h.b16 %v1224
      %v1240 = vunpack.c.h.b16 %v1225
      %v1241 = vunpack.c.l.b16 %v1226
      %v1242 = vunpack.c.l.b16 %v1227
      %v1243 = vunpack.c.l.b16 %v1228
      %v1244 = vunpack.c.h.b16 %v1226
      %v1245 = vunpack.c.h.b16 %v1227
      %v1246 = vunpack.c.h.b16 %v1228
      %v1247 = vpack.c.b16 %v1236, %v1235
      %v1248 = vpack.c.b16 %v1237, %v1237
      %v1249 = vpack.c.b16 %v1239, %v1238
      %v1250 = vpack.c.b16 %v1240, %v1240
      %v1251 = vpack.c.b16 %v1242, %v1241
      %v1252 = vpack.c.b16 %v1243, %v1243
      %v1253 = vpack.c.b16 %v1245, %v1244
      %v1254 = vpack.c.b16 %v1246, %v1246
      %1255 = vrot.lane.b32.xlu0 %v1247, 15
      %v1256 = vpop.permute.xlu0 %1255
      %1257 = vrot.lane.b32.xlu0 %v1248, 15
      %v1258 = vpop.permute.xlu0 %1257
      %1259 = vrot.lane.b32.xlu0 %v1249, 15
      %v1260 = vpop.permute.xlu0 %1259
      %1261 = vrot.lane.b32.xlu0 %v1250, 15
      %v1262 = vpop.permute.xlu0 %1261
      %1263 = vrot.lane.b32.xlu0 %v1251, 15
      %v1264 = vpop.permute.xlu0 %1263
      %1265 = vrot.lane.b32.xlu0 %v1252, 15
      %v1266 = vpop.permute.xlu0 %1265
      %1267 = vrot.lane.b32.xlu0 %v1253, 15
      %v1268 = vpop.permute.xlu0 %1267
      %1269 = vrot.lane.b32.xlu0 %v1254, 15
      %v1270 = vpop.permute.xlu0 %1269
      %v1271 = vrot.slane %v1256, 4
      %v1272 = vrot.slane %v1258, 4
      %v1273 = vrot.slane %v1260, 4
      %v1274 = vrot.slane %v1262, 4
      %v1275 = vrot.slane %v1264, 4
      %v1276 = vrot.slane %v1266, 4
      %v1277 = vrot.slane %v1268, 4
      %v1278 = vrot.slane %v1270, 4
      %v1279 = vsel %vm424, %v1271, %v1272
      %v1280 = vsel %vm541, %v1256, %v1279
      %v1281 = vsel %vm424, %v1273, %v1274
      %v1282 = vsel %vm541, %v1260, %v1281
      %v1283 = vsel %vm424, %v1275, %v1276
      %v1284 = vsel %vm541, %v1264, %v1283
      %v1285 = vsel %vm424, %v1277, %v1278
      %v1286 = vsel %vm541, %v1268, %v1285
      %1291 = vst [vmem:[#allocation4 + $0x40] sm:$0xff] %v1280
      %1292 = vst [vmem:[#allocation4 + $0x48] sm:$0xff] %v1282
      %1293 = vst [vmem:[#allocation4 + $0x50] sm:$0xff] %v1284
      %1294 = vst [vmem:[#allocation4 + $0x58] sm:$0xff] %v1286
      %v1295 = vld [vmem:[#allocation2] sm:$0xff]
      %v1296 = vld [vmem:[#allocation2 + $0x8] sm:$0xff]
      %v1297 = vld [vmem:[#allocation2 + $0x10] sm:$0xff]
      %v1298 = vld [vmem:[#allocation2 + $0x20] sm:$0xff]
      %v1299 = vld [vmem:[#allocation2 + $0x28] sm:$0xff]
      %v1300 = vld [vmem:[#allocation2 + $0x30] sm:$0xff]
      %v1301 = vld [vmem:[#allocation2 + $0x40] sm:$0xff]
      %v1302 = vld [vmem:[#allocation2 + $0x48] sm:$0xff]
      %v1303 = vld [vmem:[#allocation2 + $0x50] sm:$0xff]
      %v1304 = vld [vmem:[#allocation2 + $0x60] sm:$0xff]
      %v1305 = vld [vmem:[#allocation2 + $0x68] sm:$0xff]
      %v1306 = vld [vmem:[#allocation2 + $0x70] sm:$0xff]
      %v1307 = vmul.f32 %v1295, %v562
      %v1308 = vmul.f32 %v1296, %v566
      %v1309 = vmul.f32 %v1297, %v564
      %v1310 = vmul.f32 %v1298, %v562
      %v1311 = vmul.f32 %v1299, %v566
      %v1312 = vmul.f32 %v1300, %v564
      %v1313 = vmul.f32 %v1301, %v562
      %v1314 = vmul.f32 %v1302, %v566
      %v1315 = vmul.f32 %v1303, %v564
      %v1316 = vmul.f32 %v1304, %v562
      %v1317 = vmul.f32 %v1305, %v566
      %v1318 = vmul.f32 %v1306, %v564
      %v1319 = vpack.c.bf16 %v1310, %v1307
      %v1320 = vpack.c.bf16 %v1311, %v1308
      %v1321 = vpack.c.bf16 %v1312, %v1309
      %v1322 = vpack.c.bf16 %v1316, %v1313
      %v1323 = vpack.c.bf16 %v1317, %v1314
      %v1324 = vpack.c.bf16 %v1318, %v1315
      %v1331 = vunpack.c.l.b16 %v1319
      %v1332 = vunpack.c.l.b16 %v1320
      %v1333 = vunpack.c.l.b16 %v1321
      %v1334 = vunpack.c.h.b16 %v1319
      %v1335 = vunpack.c.h.b16 %v1320
      %v1336 = vunpack.c.h.b16 %v1321
      %v1337 = vunpack.c.l.b16 %v1322
      %v1338 = vunpack.c.l.b16 %v1323
      %v1339 = vunpack.c.l.b16 %v1324
      %v1340 = vunpack.c.h.b16 %v1322
      %v1341 = vunpack.c.h.b16 %v1323
      %v1342 = vunpack.c.h.b16 %v1324
      %v1343 = vpack.c.b16 %v1332, %v1331
      %v1344 = vpack.c.b16 %v1333, %v1333
      %v1345 = vpack.c.b16 %v1335, %v1334
      %v1346 = vpack.c.b16 %v1336, %v1336
      %v1347 = vpack.c.b16 %v1338, %v1337
      %v1348 = vpack.c.b16 %v1339, %v1339
      %v1349 = vpack.c.b16 %v1341, %v1340
      %v1350 = vpack.c.b16 %v1342, %v1342
      %1351 = vrot.lane.b32.xlu0 %v1343, 1
      %v1352 = vpop.permute.xlu0 %1351
      %1353 = vrot.lane.b32.xlu0 %v1344, 1
      %v1354 = vpop.permute.xlu0 %1353
      %1355 = vrot.lane.b32.xlu0 %v1345, 1
      %v1356 = vpop.permute.xlu0 %1355
      %1357 = vrot.lane.b32.xlu0 %v1346, 1
      %v1358 = vpop.permute.xlu0 %1357
      %1359 = vrot.lane.b32.xlu0 %v1347, 1
      %v1360 = vpop.permute.xlu0 %1359
      %1361 = vrot.lane.b32.xlu0 %v1348, 1
      %v1362 = vpop.permute.xlu0 %1361
      %1363 = vrot.lane.b32.xlu0 %v1349, 1
      %v1364 = vpop.permute.xlu0 %1363
      %1365 = vrot.lane.b32.xlu0 %v1350, 1
      %v1366 = vpop.permute.xlu0 %1365
      %v1367 = vrot.slane %v1352, 4
      %v1368 = vrot.slane %v1354, 4
      %v1369 = vrot.slane %v1356, 4
      %v1370 = vrot.slane %v1358, 4
      %v1371 = vrot.slane %v1360, 4
      %v1372 = vrot.slane %v1362, 4
      %v1373 = vrot.slane %v1364, 4
      %v1374 = vrot.slane %v1366, 4
      %v1375 = vsel %vm424, %v1367, %v1368
      %v1376 = vsel %vm605, %v1352, %v1375
      %v1377 = vsel %vm424, %v1369, %v1370
      %v1378 = vsel %vm605, %v1356, %v1377
      %v1379 = vsel %vm424, %v1371, %v1372
      %v1380 = vsel %vm605, %v1360, %v1379
      %v1381 = vsel %vm424, %v1373, %v1374
      %v1382 = vsel %vm605, %v1364, %v1381
      %1387 = vst [vmem:[#allocation4 + $0x60] sm:$0xff] %v1376
      %1388 = vst [vmem:[#allocation4 + $0x68] sm:$0xff] %v1378
      %1389 = vst [vmem:[#allocation4 + $0x70] sm:$0xff] %v1380
      %1390 = vst [vmem:[#allocation4 + $0x78] sm:$0xff] %v1382
      %v1391 = vld [vmem:[#allocation2 + $0x8] sm:$0xff]
      %v1392 = vld [vmem:[#allocation2 + $0x10] sm:$0xff]
      %v1393 = vld [vmem:[#allocation2 + $0x28] sm:$0xff]
      %v1394 = vld [vmem:[#allocation2 + $0x30] sm:$0xff]
      %v1395 = vld [vmem:[#allocation2 + $0x48] sm:$0xff]
      %v1396 = vld [vmem:[#allocation2 + $0x50] sm:$0xff]
      %v1397 = vld [vmem:[#allocation2 + $0x68] sm:$0xff]
      %v1398 = vld [vmem:[#allocation2 + $0x70] sm:$0xff]
      %v1399 = vpack.c.bf16 %v1393, %v1391
      %v1400 = vpack.c.bf16 %v1394, %v1392
      %v1401 = vpack.c.bf16 %v1397, %v1395
      %v1402 = vpack.c.bf16 %v1398, %v1396
      %v1407 = vunpack.c.l.b16 %v1399
      %v1408 = vunpack.c.l.b16 %v1400
      %v1409 = vunpack.c.h.b16 %v1399
      %v1410 = vunpack.c.h.b16 %v1400
      %v1411 = vunpack.c.l.b16 %v1401
      %v1412 = vunpack.c.l.b16 %v1402
      %v1413 = vunpack.c.h.b16 %v1401
      %v1414 = vunpack.c.h.b16 %v1402
      %v1415 = vpack.c.b16 %v1408, %v1407
      %v1416 = vpack.c.b16 %v1410, %v1409
      %v1417 = vpack.c.b16 %v1412, %v1411
      %v1418 = vpack.c.b16 %v1414, %v1413
      %1423 = vst [vmem:[#allocation4 + $0x80] sm:$0xff] %v1415
      %1424 = vst [vmem:[#allocation4 + $0x88] sm:$0xff] %v1416
      %1425 = vst [vmem:[#allocation4 + $0x90] sm:$0xff] %v1417
      %1426 = vst [vmem:[#allocation4 + $0x98] sm:$0xff] %v1418
      %v1427 = vld [vmem:[#allocation2 + $0x8] sm:$0xff]
      %v1428 = vld [vmem:[#allocation2 + $0x10] sm:$0xff]
      %v1429 = vld [vmem:[#allocation2 + $0x18] sm:$0xff]
      %v1430 = vld [vmem:[#allocation2 + $0x28] sm:$0xff]
      %v1431 = vld [vmem:[#allocation2 + $0x30] sm:$0xff]
      %v1432 = vld [vmem:[#allocation2 + $0x38] sm:$0xff]
      %v1433 = vld [vmem:[#allocation2 + $0x48] sm:$0xff]
      %v1434 = vld [vmem:[#allocation2 + $0x50] sm:$0xff]
      %v1435 = vld [vmem:[#allocation2 + $0x58] sm:$0xff]
      %v1436 = vld [vmem:[#allocation2 + $0x68] sm:$0xff]
      %v1437 = vld [vmem:[#allocation2 + $0x70] sm:$0xff]
      %v1438 = vld [vmem:[#allocation2 + $0x78] sm:$0xff]
      %v1439 = vmul.f32 %v1427, %v641
      %v1440 = vmul.f32 %v1428, %v645
      %v1441 = vmul.f32 %v1429, %v643
      %v1442 = vmul.f32 %v1430, %v641
      %v1443 = vmul.f32 %v1431, %v645
      %v1444 = vmul.f32 %v1432, %v643
      %v1445 = vmul.f32 %v1433, %v641
      %v1446 = vmul.f32 %v1434, %v645
      %v1447 = vmul.f32 %v1435, %v643
      %v1448 = vmul.f32 %v1436, %v641
      %v1449 = vmul.f32 %v1437, %v645
      %v1450 = vmul.f32 %v1438, %v643
      %v1451 = vpack.c.bf16 %v1442, %v1439
      %v1452 = vpack.c.bf16 %v1443, %v1440
      %v1453 = vpack.c.bf16 %v1444, %v1441
      %v1454 = vpack.c.bf16 %v1448, %v1445
      %v1455 = vpack.c.bf16 %v1449, %v1446
      %v1456 = vpack.c.bf16 %v1450, %v1447
      %v1463 = vunpack.c.l.b16 %v1451
      %v1464 = vunpack.c.l.b16 %v1452
      %v1465 = vunpack.c.l.b16 %v1453
      %v1466 = vunpack.c.h.b16 %v1451
      %v1467 = vunpack.c.h.b16 %v1452
      %v1468 = vunpack.c.h.b16 %v1453
      %v1469 = vunpack.c.l.b16 %v1454
      %v1470 = vunpack.c.l.b16 %v1455
      %v1471 = vunpack.c.l.b16 %v1456
      %v1472 = vunpack.c.h.b16 %v1454
      %v1473 = vunpack.c.h.b16 %v1455
      %v1474 = vunpack.c.h.b16 %v1456
      %v1475 = vpack.c.b16 %v1464, %v1463
      %v1476 = vpack.c.b16 %v1465, %v1465
      %v1477 = vpack.c.b16 %v1467, %v1466
      %v1478 = vpack.c.b16 %v1468, %v1468
      %v1479 = vpack.c.b16 %v1470, %v1469
      %v1480 = vpack.c.b16 %v1471, %v1471
      %v1481 = vpack.c.b16 %v1473, %v1472
      %v1482 = vpack.c.b16 %v1474, %v1474
      %1483 = vrot.lane.b32.xlu0 %v1475, 127
      %v1484 = vpop.permute.xlu0 %1483
      %1485 = vrot.lane.b32.xlu0 %v1476, 127
      %v1486 = vpop.permute.xlu0 %1485
      %1487 = vrot.lane.b32.xlu0 %v1477, 127
      %v1488 = vpop.permute.xlu0 %1487
      %1489 = vrot.lane.b32.xlu0 %v1478, 127
      %v1490 = vpop.permute.xlu0 %1489
      %1491 = vrot.lane.b32.xlu0 %v1479, 127
      %v1492 = vpop.permute.xlu0 %1491
      %1493 = vrot.lane.b32.xlu0 %v1480, 127
      %v1494 = vpop.permute.xlu0 %1493
      %1495 = vrot.lane.b32.xlu0 %v1481, 127
      %v1496 = vpop.permute.xlu0 %1495
      %1497 = vrot.lane.b32.xlu0 %v1482, 127
      %v1498 = vpop.permute.xlu0 %1497
      %v1499 = vrot.slane %v1484, 4
      %v1500 = vrot.slane %v1486, 4
      %v1501 = vrot.slane %v1488, 4
      %v1502 = vrot.slane %v1490, 4
      %v1503 = vrot.slane %v1492, 4
      %v1504 = vrot.slane %v1494, 4
      %v1505 = vrot.slane %v1496, 4
      %v1506 = vrot.slane %v1498, 4
      %v1507 = vsel %vm424, %v1499, %v1500
      %v1508 = vsel %vm694, %v1484, %v1507
      %v1509 = vsel %vm424, %v1501, %v1502
      %v1510 = vsel %vm694, %v1488, %v1509
      %v1511 = vsel %vm424, %v1503, %v1504
      %v1512 = vsel %vm694, %v1492, %v1511
      %v1513 = vsel %vm424, %v1505, %v1506
      %v1514 = vsel %vm694, %v1496, %v1513
      %1519 = vst [vmem:[#allocation4 + $0xa0] sm:$0xff] %v1508
      %1520 = vst [vmem:[#allocation4 + $0xa8] sm:$0xff] %v1510
      %1521 = vst [vmem:[#allocation4 + $0xb0] sm:$0xff] %v1512
      %1522 = vst [vmem:[#allocation4 + $0xb8] sm:$0xff] %v1514
      %v1523 = vld [vmem:[#allocation2 + $0x8] sm:$0xff]
      %v1524 = vld [vmem:[#allocation2 + $0x10] sm:$0xff]
      %v1525 = vld [vmem:[#allocation2 + $0x18] sm:$0xff]
      %v1526 = vld [vmem:[#allocation2 + $0x28] sm:$0xff]
      %v1527 = vld [vmem:[#allocation2 + $0x30] sm:$0xff]
      %v1528 = vld [vmem:[#allocation2 + $0x38] sm:$0xff]
      %v1529 = vld [vmem:[#allocation2 + $0x48] sm:$0xff]
      %v1530 = vld [vmem:[#allocation2 + $0x50] sm:$0xff]
      %v1531 = vld [vmem:[#allocation2 + $0x58] sm:$0xff]
      %v1532 = vld [vmem:[#allocation2 + $0x68] sm:$0xff]
      %v1533 = vld [vmem:[#allocation2 + $0x70] sm:$0xff]
      %v1534 = vld [vmem:[#allocation2 + $0x78] sm:$0xff]
      %v1535 = vmul.f32 %v1523, %v715
      %v1536 = vmul.f32 %v1524, %v719
      %v1537 = vmul.f32 %v1525, %v717
      %v1538 = vmul.f32 %v1526, %v715
      %v1539 = vmul.f32 %v1527, %v719
      %v1540 = vmul.f32 %v1528, %v717
      %v1541 = vmul.f32 %v1529, %v715
      %v1542 = vmul.f32 %v1530, %v719
      %v1543 = vmul.f32 %v1531, %v717
      %v1544 = vmul.f32 %v1532, %v715
      %v1545 = vmul.f32 %v1533, %v719
      %v1546 = vmul.f32 %v1534, %v717
      %v1547 = vpack.c.bf16 %v1538, %v1535
      %v1548 = vpack.c.bf16 %v1539, %v1536
      %v1549 = vpack.c.bf16 %v1540, %v1537
      %v1550 = vpack.c.bf16 %v1544, %v1541
      %v1551 = vpack.c.bf16 %v1545, %v1542
      %v1552 = vpack.c.bf16 %v1546, %v1543
      %v1559 = vunpack.c.l.b16 %v1547
      %v1560 = vunpack.c.l.b16 %v1548
      %v1561 = vunpack.c.l.b16 %v1549
      %v1562 = vunpack.c.h.b16 %v1547
      %v1563 = vunpack.c.h.b16 %v1548
      %v1564 = vunpack.c.h.b16 %v1549
      %v1565 = vunpack.c.l.b16 %v1550
      %v1566 = vunpack.c.l.b16 %v1551
      %v1567 = vunpack.c.l.b16 %v1552
      %v1568 = vunpack.c.h.b16 %v1550
      %v1569 = vunpack.c.h.b16 %v1551
      %v1570 = vunpack.c.h.b16 %v1552
      %v1571 = vpack.c.b16 %v1560, %v1559
      %v1572 = vpack.c.b16 %v1561, %v1561
      %v1573 = vpack.c.b16 %v1563, %v1562
      %v1574 = vpack.c.b16 %v1564, %v1564
      %v1575 = vpack.c.b16 %v1566, %v1565
      %v1576 = vpack.c.b16 %v1567, %v1567
      %v1577 = vpack.c.b16 %v1569, %v1568
      %v1578 = vpack.c.b16 %v1570, %v1570
      %1579 = vrot.lane.b32.xlu0 %v1571, 113
      %v1580 = vpop.permute.xlu0 %1579
      %1581 = vrot.lane.b32.xlu0 %v1572, 113
      %v1582 = vpop.permute.xlu0 %1581
      %1583 = vrot.lane.b32.xlu0 %v1573, 113
      %v1584 = vpop.permute.xlu0 %1583
      %1585 = vrot.lane.b32.xlu0 %v1574, 113
      %v1586 = vpop.permute.xlu0 %1585
      %1587 = vrot.lane.b32.xlu0 %v1575, 113
      %v1588 = vpop.permute.xlu0 %1587
      %1589 = vrot.lane.b32.xlu0 %v1576, 113
      %v1590 = vpop.permute.xlu0 %1589
      %1591 = vrot.lane.b32.xlu0 %v1577, 113
      %v1592 = vpop.permute.xlu0 %1591
      %1593 = vrot.lane.b32.xlu0 %v1578, 113
      %v1594 = vpop.permute.xlu0 %1593
      %v1595 = vrot.slane %v1580, 4
      %v1596 = vrot.slane %v1582, 4
      %v1597 = vrot.slane %v1584, 4
      %v1598 = vrot.slane %v1586, 4
      %v1599 = vrot.slane %v1588, 4
      %v1600 = vrot.slane %v1590, 4
      %v1601 = vrot.slane %v1592, 4
      %v1602 = vrot.slane %v1594, 4
      %v1603 = vsel %vm424, %v1595, %v1596
      %v1604 = vsel %vm746, %v1580, %v1603
      %v1605 = vsel %vm424, %v1597, %v1598
      %v1606 = vsel %vm746, %v1584, %v1605
      %v1607 = vsel %vm424, %v1599, %v1600
      %v1608 = vsel %vm746, %v1588, %v1607
      %v1609 = vsel %vm424, %v1601, %v1602
      %v1610 = vsel %vm746, %v1592, %v1609
      %1615 = vst [vmem:[#allocation4 + $0xc0] sm:$0xff] %v1604
      %1616 = vst [vmem:[#allocation4 + $0xc8] sm:$0xff] %v1606
      %1617 = vst [vmem:[#allocation4 + $0xd0] sm:$0xff] %v1608
      %1618 = vst [vmem:[#allocation4 + $0xd8] sm:$0xff] %v1610
      %v1619 = vld [vmem:[#allocation2 + $0x8] sm:$0xff]
      %v1620 = vld [vmem:[#allocation2 + $0x10] sm:$0xff]
      %v1621 = vld [vmem:[#allocation2 + $0x18] sm:$0xff]
      %v1622 = vld [vmem:[#allocation2 + $0x28] sm:$0xff]
      %v1623 = vld [vmem:[#allocation2 + $0x30] sm:$0xff]
      %v1624 = vld [vmem:[#allocation2 + $0x38] sm:$0xff]
      %v1625 = vld [vmem:[#allocation2 + $0x48] sm:$0xff]
      %v1626 = vld [vmem:[#allocation2 + $0x50] sm:$0xff]
      %v1627 = vld [vmem:[#allocation2 + $0x58] sm:$0xff]
      %v1628 = vld [vmem:[#allocation2 + $0x68] sm:$0xff]
      %v1629 = vld [vmem:[#allocation2 + $0x70] sm:$0xff]
      %v1630 = vld [vmem:[#allocation2 + $0x78] sm:$0xff]
      %v1631 = vpack.c.bf16 %v1622, %v1619
      %v1632 = vpack.c.bf16 %v1623, %v1620
      %v1633 = vpack.c.bf16 %v1624, %v1621
      %v1634 = vpack.c.bf16 %v1628, %v1625
      %v1635 = vpack.c.bf16 %v1629, %v1626
      %v1636 = vpack.c.bf16 %v1630, %v1627
      %v1643 = vunpack.c.l.b16 %v1631
      %v1644 = vunpack.c.l.b16 %v1632
      %v1645 = vunpack.c.l.b16 %v1633
      %v1646 = vunpack.c.h.b16 %v1631
      %v1647 = vunpack.c.h.b16 %v1632
      %v1648 = vunpack.c.h.b16 %v1633
      %v1649 = vunpack.c.l.b16 %v1634
      %v1650 = vunpack.c.l.b16 %v1635
      %v1651 = vunpack.c.l.b16 %v1636
      %v1652 = vunpack.c.h.b16 %v1634
      %v1653 = vunpack.c.h.b16 %v1635
      %v1654 = vunpack.c.h.b16 %v1636
      %v1655 = vpack.c.b16 %v1644, %v1643
      %v1656 = vpack.c.b16 %v1645, %v1645
      %v1657 = vpack.c.b16 %v1647, %v1646
      %v1658 = vpack.c.b16 %v1648, %v1648
      %v1659 = vpack.c.b16 %v1650, %v1649
      %v1660 = vpack.c.b16 %v1651, %v1651
      %v1661 = vpack.c.b16 %v1653, %v1652
      %v1662 = vpack.c.b16 %v1654, %v1654
      %1663 = vrot.lane.b32.xlu0 %v1655, 112
      %v1664 = vpop.permute.xlu0 %1663
      %1665 = vrot.lane.b32.xlu0 %v1656, 112
      %v1666 = vpop.permute.xlu0 %1665
      %1667 = vrot.lane.b32.xlu0 %v1657, 112
      %v1668 = vpop.permute.xlu0 %1667
      %1669 = vrot.lane.b32.xlu0 %v1658, 112
      %v1670 = vpop.permute.xlu0 %1669
      %1671 = vrot.lane.b32.xlu0 %v1659, 112
      %v1672 = vpop.permute.xlu0 %1671
      %1673 = vrot.lane.b32.xlu0 %v1660, 112
      %v1674 = vpop.permute.xlu0 %1673
      %1675 = vrot.lane.b32.xlu0 %v1661, 112
      %v1676 = vpop.permute.xlu0 %1675
      %1677 = vrot.lane.b32.xlu0 %v1662, 112
      %v1678 = vpop.permute.xlu0 %1677
      %v1679 = vrot.slane %v1664, 4
      %v1680 = vrot.slane %v1666, 4
      %v1681 = vrot.slane %v1668, 4
      %v1682 = vrot.slane %v1670, 4
      %v1683 = vrot.slane %v1672, 4
      %v1684 = vrot.slane %v1674, 4
      %v1685 = vrot.slane %v1676, 4
      %v1686 = vrot.slane %v1678, 4
      %v1687 = vsel %vm424, %v1679, %v1680
      %v1688 = vsel %vm794, %v1664, %v1687
      %v1689 = vsel %vm424, %v1681, %v1682
      %v1690 = vsel %vm794, %v1668, %v1689
      %v1691 = vsel %vm424, %v1683, %v1684
      %v1692 = vsel %vm794, %v1672, %v1691
      %v1693 = vsel %vm424, %v1685, %v1686
      %v1694 = vsel %vm794, %v1676, %v1693
      %1699 = vst [vmem:[#allocation4 + $0xe0] sm:$0xff] %v1688
      %1700 = vst [vmem:[#allocation4 + $0xe8] sm:$0xff] %v1690
      %1701 = vst [vmem:[#allocation4 + $0xf0] sm:$0xff] %v1692
      %1702 = vst [vmem:[#allocation4 + $0xf8] sm:$0xff] %v1694
      %v1703 = vld [vmem:[#allocation2 + $0x8] sm:$0xff]
      %v1704 = vld [vmem:[#allocation2 + $0x10] sm:$0xff]
      %v1705 = vld [vmem:[#allocation2 + $0x18] sm:$0xff]
      %v1706 = vld [vmem:[#allocation2 + $0x28] sm:$0xff]
      %v1707 = vld [vmem:[#allocation2 + $0x30] sm:$0xff]
      %v1708 = vld [vmem:[#allocation2 + $0x38] sm:$0xff]
      %v1709 = vld [vmem:[#allocation2 + $0x48] sm:$0xff]
      %v1710 = vld [vmem:[#allocation2 + $0x50] sm:$0xff]
      %v1711 = vld [vmem:[#allocation2 + $0x58] sm:$0xff]
      %v1712 = vld [vmem:[#allocation2 + $0x68] sm:$0xff]
      %v1713 = vld [vmem:[#allocation2 + $0x70] sm:$0xff]
      %v1714 = vld [vmem:[#allocation2 + $0x78] sm:$0xff]
      %v1715 = vmul.f32 %v1703, %v809
      %v1716 = vmul.f32 %v1704, %v813
      %v1717 = vmul.f32 %v1705, %v811
      %v1718 = vmul.f32 %v1706, %v809
      %v1719 = vmul.f32 %v1707, %v813
      %v1720 = vmul.f32 %v1708, %v811
      %v1721 = vmul.f32 %v1709, %v809
      %v1722 = vmul.f32 %v1710, %v813
      %v1723 = vmul.f32 %v1711, %v811
      %v1724 = vmul.f32 %v1712, %v809
      %v1725 = vmul.f32 %v1713, %v813
      %v1726 = vmul.f32 %v1714, %v811
      %v1727 = vpack.c.bf16 %v1718, %v1715
      %v1728 = vpack.c.bf16 %v1719, %v1716
      %v1729 = vpack.c.bf16 %v1720, %v1717
      %v1730 = vpack.c.bf16 %v1724, %v1721
      %v1731 = vpack.c.bf16 %v1725, %v1722
      %v1732 = vpack.c.bf16 %v1726, %v1723
      %v1739 = vunpack.c.l.b16 %v1727
      %v1740 = vunpack.c.l.b16 %v1728
      %v1741 = vunpack.c.l.b16 %v1729
      %v1742 = vunpack.c.h.b16 %v1727
      %v1743 = vunpack.c.h.b16 %v1728
      %v1744 = vunpack.c.h.b16 %v1729
      %v1745 = vunpack.c.l.b16 %v1730
      %v1746 = vunpack.c.l.b16 %v1731
      %v1747 = vunpack.c.l.b16 %v1732
      %v1748 = vunpack.c.h.b16 %v1730
      %v1749 = vunpack.c.h.b16 %v1731
      %v1750 = vunpack.c.h.b16 %v1732
      %v1751 = vpack.c.b16 %v1740, %v1739
      %v1752 = vpack.c.b16 %v1741, %v1741
      %v1753 = vpack.c.b16 %v1743, %v1742
      %v1754 = vpack.c.b16 %v1744, %v1744
      %v1755 = vpack.c.b16 %v1746, %v1745
      %v1756 = vpack.c.b16 %v1747, %v1747
      %v1757 = vpack.c.b16 %v1749, %v1748
      %v1758 = vpack.c.b16 %v1750, %v1750
      %1759 = vrot.lane.b32.xlu0 %v1751, 111
      %v1760 = vpop.permute.xlu0 %1759
      %1761 = vrot.lane.b32.xlu0 %v1752, 111
      %v1762 = vpop.permute.xlu0 %1761
      %1763 = vrot.lane.b32.xlu0 %v1753, 111
      %v1764 = vpop.permute.xlu0 %1763
      %1765 = vrot.lane.b32.xlu0 %v1754, 111
      %v1766 = vpop.permute.xlu0 %1765
      %1767 = vrot.lane.b32.xlu0 %v1755, 111
      %v1768 = vpop.permute.xlu0 %1767
      %1769 = vrot.lane.b32.xlu0 %v1756, 111
      %v1770 = vpop.permute.xlu0 %1769
      %1771 = vrot.lane.b32.xlu0 %v1757, 111
      %v1772 = vpop.permute.xlu0 %1771
      %1773 = vrot.lane.b32.xlu0 %v1758, 111
      %v1774 = vpop.permute.xlu0 %1773
      %v1775 = vrot.slane %v1760, 4
      %v1776 = vrot.slane %v1762, 4
      %v1777 = vrot.slane %v1764, 4
      %v1778 = vrot.slane %v1766, 4
      %v1779 = vrot.slane %v1768, 4
      %v1780 = vrot.slane %v1770, 4
      %v1781 = vrot.slane %v1772, 4
      %v1782 = vrot.slane %v1774, 4
      %v1783 = vsel %vm424, %v1775, %v1776
      %v1784 = vsel %vm838, %v1760, %v1783
      %v1785 = vsel %vm424, %v1777, %v1778
      %v1786 = vsel %vm838, %v1764, %v1785
      %v1787 = vsel %vm424, %v1779, %v1780
      %v1788 = vsel %vm838, %v1768, %v1787
      %v1789 = vsel %vm424, %v1781, %v1782
      %v1790 = vsel %vm838, %v1772, %v1789
      %1795 = vst [vmem:[#allocation4 + $0x100] sm:$0xff] %v1784
      %1796 = vst [vmem:[#allocation4 + $0x108] sm:$0xff] %v1786
      %1797 = vst [vmem:[#allocation4 + $0x110] sm:$0xff] %v1788
      %1798 = vst [vmem:[#allocation4 + $0x118] sm:$0xff] %v1790
      %v1799 = vld [vmem:[%s5] sm:$0xff]
      %v1800 = vld [vmem:[%s5 + $0x8] sm:$0xf]
      %v1801 = vld [vmem:[%s5 + $0xc] sm:$0xff]
      %v1802 = vld [vmem:[%s5 + $0x14] sm:$0xf]
      %v1803 = vld [vmem:[%s5 + $0x18] sm:$0xff]
      %v1804 = vld [vmem:[%s5 + $0x20] sm:$0xf]
      %v1805 = vld [vmem:[%s5 + $0x24] sm:$0xff]
      %v1806 = vld [vmem:[%s5 + $0x2c] sm:$0xf]
      %v1807 = vld [vmem:[#allocation4] sm:$0xff]
      %v1808 = vld [vmem:[#allocation4 + $0x8] sm:$0xff]
      %v1809 = vld [vmem:[#allocation4 + $0x10] sm:$0xff]
      %v1810 = vld [vmem:[#allocation4 + $0x18] sm:$0xff]
      %v1811 = vld [vmem:[#allocation4 + $0x20] sm:$0xff]
      %v1812 = vld [vmem:[#allocation4 + $0x28] sm:$0xff]
      %v1813 = vld [vmem:[#allocation4 + $0x30] sm:$0xff]
      %v1814 = vld [vmem:[#allocation4 + $0x38] sm:$0xff]
      %v1815 = vld [vmem:[#allocation4 + $0x40] sm:$0xff]
      %v1816 = vld [vmem:[#allocation4 + $0x48] sm:$0xff]
      %v1817 = vld [vmem:[#allocation4 + $0x50] sm:$0xff]
      %v1818 = vld [vmem:[#allocation4 + $0x58] sm:$0xff]
      %v1819 = vld [vmem:[#allocation4 + $0x60] sm:$0xff]
      %v1820 = vld [vmem:[#allocation4 + $0x68] sm:$0xff]
      %v1821 = vld [vmem:[#allocation4 + $0x70] sm:$0xff]
      %v1822 = vld [vmem:[#allocation4 + $0x78] sm:$0xff]
      %v1823 = vld [vmem:[#allocation4 + $0x80] sm:$0xff]
      %v1824 = vld [vmem:[#allocation4 + $0x88] sm:$0xff]
      %v1825 = vld [vmem:[#allocation4 + $0x90] sm:$0xff]
      %v1826 = vld [vmem:[#allocation4 + $0x98] sm:$0xff]
      %v1827 = vld [vmem:[#allocation4 + $0xa0] sm:$0xff]
      %v1828 = vld [vmem:[#allocation4 + $0xa8] sm:$0xff]
      %v1829 = vld [vmem:[#allocation4 + $0xb0] sm:$0xff]
      %v1830 = vld [vmem:[#allocation4 + $0xb8] sm:$0xff]
      %v1831 = vld [vmem:[#allocation4 + $0xc0] sm:$0xff]
      %v1832 = vld [vmem:[#allocation4 + $0xc8] sm:$0xff]
      %v1833 = vld [vmem:[#allocation4 + $0xd0] sm:$0xff]
      %v1834 = vld [vmem:[#allocation4 + $0xd8] sm:$0xff]
      %v1835 = vld [vmem:[#allocation4 + $0xe0] sm:$0xff]
      %v1836 = vld [vmem:[#allocation4 + $0xe8] sm:$0xff]
      %v1837 = vld [vmem:[#allocation4 + $0xf0] sm:$0xff]
      %v1838 = vld [vmem:[#allocation4 + $0xf8] sm:$0xff]
      %v1839 = vld [vmem:[#allocation4 + $0x100] sm:$0xff]
      %v1840 = vld [vmem:[#allocation4 + $0x108] sm:$0xff]
      %v1841 = vld [vmem:[#allocation4 + $0x110] sm:$0xff]
      %v1842 = vld [vmem:[#allocation4 + $0x118] sm:$0xff]
      %1843 = vset.pattern.permute.xlu0 2
      %1844 = vperm.xlu0 %1843, %v352
      %v1845 = vpop.permute.xlu0 %1844
      %1847 = vset.pattern.permute.xlu0 2
      %1848 = vperm.xlu0 %1847, %v353
      %v1849 = vpop.permute.xlu0 %1848
      %1851 = vset.pattern.permute.xlu0 2
      %1852 = vperm.xlu0 %1851, %v354
      %v1853 = vpop.permute.xlu0 %1852
      %1855 = vset.pattern.permute.xlu0 2
      %1856 = vperm.xlu0 %1855, %v355
      %v1857 = vpop.permute.xlu0 %1856
      %v1867 = vunpack.c.l.b16 %v1799
      %v1868 = vunpack.c.h.b16 %v1799
      %v1869 = vunpack.c.l.b16 %v1800
      %v1870 = vunpack.c.l.b16 %v1801
      %v1871 = vunpack.c.h.b16 %v1801
      %v1872 = vunpack.c.l.b16 %v1802
      %v1873 = vunpack.c.l.b16 %v1803
      %v1874 = vunpack.c.h.b16 %v1803
      %v1875 = vunpack.c.l.b16 %v1804
      %v1876 = vunpack.c.l.b16 %v1805
      %v1877 = vunpack.c.h.b16 %v1805
      %v1878 = vunpack.c.l.b16 %v1806
      %v1879 = vpack.c.b16 %v1870, %v1867
      %v1880 = vpack.c.b16 %v1871, %v1868
      %v1881 = vpack.c.b16 %v1872, %v1869
      %v1882 = vpack.c.b16 %v1876, %v1873
      %v1883 = vpack.c.b16 %v1877, %v1874
      %v1884 = vpack.c.b16 %v1878, %v1875
      %v1925 = vunpack.c.l.b16 %v1807
      %v1926 = vunpack.c.h.b16 %v1807
      %v1927 = vunpack.c.l.b16 %v1808
      %v1928 = vunpack.c.h.b16 %v1808
      %v1929 = vunpack.c.l.b16 %v1809
      %v1930 = vunpack.c.h.b16 %v1809
      %v1931 = vunpack.c.l.b16 %v1810
      %v1932 = vunpack.c.h.b16 %v1810
      %v1933 = vunpack.c.l.b16 %v1811
      %v1934 = vunpack.c.h.b16 %v1811
      %v1935 = vunpack.c.l.b16 %v1812
      %v1936 = vunpack.c.h.b16 %v1812
      %v1937 = vunpack.c.l.b16 %v1813
      %v1938 = vunpack.c.h.b16 %v1813
      %v1939 = vunpack.c.l.b16 %v1814
      %v1940 = vunpack.c.h.b16 %v1814
      %v1941 = vunpack.c.l.b16 %v1815
      %v1942 = vunpack.c.h.b16 %v1815
      %v1943 = vunpack.c.l.b16 %v1816
      %v1944 = vunpack.c.h.b16 %v1816
      %v1945 = vunpack.c.l.b16 %v1817
      %v1946 = vunpack.c.h.b16 %v1817
      %v1947 = vunpack.c.l.b16 %v1818
      %v1948 = vunpack.c.h.b16 %v1818
      %v1949 = vunpack.c.l.b16 %v1819
      %v1950 = vunpack.c.h.b16 %v1819
      %v1951 = vunpack.c.l.b16 %v1820
      %v1952 = vunpack.c.h.b16 %v1820
      %v1953 = vunpack.c.l.b16 %v1821
      %v1954 = vunpack.c.h.b16 %v1821
      %v1955 = vunpack.c.l.b16 %v1822
      %v1956 = vunpack.c.h.b16 %v1822
      %v1957 = vunpack.c.l.b16 %v1823
      %v1958 = vunpack.c.h.b16 %v1823
      %v1959 = vunpack.c.l.b16 %v1824
      %v1960 = vunpack.c.h.b16 %v1824
      %v1961 = vunpack.c.l.b16 %v1825
      %v1962 = vunpack.c.h.b16 %v1825
      %v1963 = vunpack.c.l.b16 %v1826
      %v1964 = vunpack.c.h.b16 %v1826
      %v1965 = vunpack.c.l.b16 %v1827
      %v1966 = vunpack.c.h.b16 %v1827
      %v1967 = vunpack.c.l.b16 %v1828
      %v1968 = vunpack.c.h.b16 %v1828
      %v1969 = vunpack.c.l.b16 %v1829
      %v1970 = vunpack.c.h.b16 %v1829
      %v1971 = vunpack.c.l.b16 %v1830
      %v1972 = vunpack.c.h.b16 %v1830
      %v1973 = vunpack.c.l.b16 %v1831
      %v1974 = vunpack.c.h.b16 %v1831
      %v1975 = vunpack.c.l.b16 %v1832
      %v1976 = vunpack.c.h.b16 %v1832
      %v1977 = vunpack.c.l.b16 %v1833
      %v1978 = vunpack.c.h.b16 %v1833
      %v1979 = vunpack.c.l.b16 %v1834
      %v1980 = vunpack.c.h.b16 %v1834
      %v1981 = vunpack.c.l.b16 %v1835
      %v1982 = vunpack.c.h.b16 %v1835
      %v1983 = vunpack.c.l.b16 %v1836
      %v1984 = vunpack.c.h.b16 %v1836
      %v1985 = vunpack.c.l.b16 %v1837
      %v1986 = vunpack.c.h.b16 %v1837
      %v1987 = vunpack.c.l.b16 %v1838
      %v1988 = vunpack.c.h.b16 %v1838
      %v1989 = vunpack.c.l.b16 %v1839
      %v1990 = vunpack.c.h.b16 %v1839
      %v1991 = vunpack.c.l.b16 %v1840
      %v1992 = vunpack.c.h.b16 %v1840
      %v1993 = vunpack.c.l.b16 %v1841
      %v1994 = vunpack.c.h.b16 %v1841
      %v1995 = vunpack.c.l.b16 %v1842
      %v1996 = vunpack.c.h.b16 %v1842
      %v1997 = vpack.c.b16 %v1927, %v1925
      %v1998 = vpack.c.b16 %v1928, %v1926
      %v1999 = vpack.c.b16 %v1931, %v1929
      %v2000 = vpack.c.b16 %v1932, %v1930
      %v2001 = vpack.c.b16 %v1935, %v1933
      %v2002 = vpack.c.b16 %v1936, %v1934
      %v2003 = vpack.c.b16 %v1939, %v1937
      %v2004 = vpack.c.b16 %v1940, %v1938
      %v2005 = vpack.c.b16 %v1943, %v1941
      %v2006 = vpack.c.b16 %v1944, %v1942
      %v2007 = vpack.c.b16 %v1947, %v1945
      %v2008 = vpack.c.b16 %v1948, %v1946
      %v2009 = vpack.c.b16 %v1951, %v1949
      %v2010 = vpack.c.b16 %v1952, %v1950
      %v2011 = vpack.c.b16 %v1955, %v1953
      %v2012 = vpack.c.b16 %v1956, %v1954
      %v2013 = vpack.c.b16 %v1959, %v1957
      %v2014 = vpack.c.b16 %v1960, %v1958
      %v2015 = vpack.c.b16 %v1963, %v1961
      %v2016 = vpack.c.b16 %v1964, %v1962
      %v2017 = vpack.c.b16 %v1967, %v1965
      %v2018 = vpack.c.b16 %v1968, %v1966
      %v2019 = vpack.c.b16 %v1971, %v1969
      %v2020 = vpack.c.b16 %v1972, %v1970
      %v2021 = vpack.c.b16 %v1975, %v1973
      %v2022 = vpack.c.b16 %v1976, %v1974
      %v2023 = vpack.c.b16 %v1979, %v1977
      %v2024 = vpack.c.b16 %v1980, %v1978
      %v2025 = vpack.c.b16 %v1983, %v1981
      %v2026 = vpack.c.b16 %v1984, %v1982
      %v2027 = vpack.c.b16 %v1987, %v1985
      %v2028 = vpack.c.b16 %v1988, %v1986
      %v2029 = vpack.c.b16 %v1991, %v1989
      %v2030 = vpack.c.b16 %v1992, %v1990
      %v2031 = vpack.c.b16 %v1995, %v1993
      %v2032 = vpack.c.b16 %v1996, %v1994
      %vm2069 = vcmask 261120
      %v2071 = vsel %vm2069, %v1881, 0
      %v2074 = vsel %vm2069, %v1884, 0
      %2076 = vmatprep.subr.bf16.mxu0 %v2012
      %2077 = vmatpush1.bf16.msra.mxu0 %v2011
      %2078 = vmatprep.subr.bf16.mxu0 %v2010
      %2079 = vmatpush1.bf16.msra.mxu0 %v2009
      %2080 = vmatprep.subr.bf16.mxu0 %v2008
      %2081 = vmatpush1.bf16.msra.mxu0 %v2007
      %2082 = vmatprep.subr.bf16.mxu0 %v2006
      %2083 = vmatpush1.bf16.msra.mxu0 %v2005
      %2084 = vmatprep.subr.bf16.mxu0 %v2004
      %2085 = vmatpush1.bf16.msra.mxu0 %v2003
      %2086 = vmatprep.subr.bf16.mxu0 %v2002
      %2087 = vmatpush1.bf16.msra.mxu0 %v2001
      %2088 = vmatprep.subr.bf16.mxu0 %v2000
      %2089 = vmatpush1.bf16.msra.mxu0 %v1999
      %2090 = vmatprep.subr.bf16.mxu0 %v1998
      %2091 = vmatpush1.bf16.msra.mxu0 %v1997
      %2092 = vmatprep.subr.bf16.mxu0 %v2028
      %2093 = vmatpush2.bf16.msra.mxu0 %v2027
      %2094 = vmatprep.subr.bf16.mxu0 %v2026
      %2095 = vmatpush2.bf16.msra.mxu0 %v2025
      %2096 = vmatprep.subr.bf16.mxu0 %v2024
      %2097 = vmatpush2.bf16.msra.mxu0 %v2023
      %2098 = vmatprep.subr.bf16.mxu0 %v2022
      %2099 = vmatpush2.bf16.msra.mxu0 %v2021
      %2100 = vmatprep.subr.bf16.mxu0 %v2020
      %2101 = vmatpush2.bf16.msra.mxu0 %v2019
      %2102 = vmatprep.subr.bf16.mxu0 %v2018
      %2103 = vmatpush2.bf16.msra.mxu0 %v2017
      %2104 = vmatprep.subr.bf16.mxu0 %v2016
      %2105 = vmatpush2.bf16.msra.mxu0 %v2015
      %2106 = vmatprep.subr.bf16.mxu0 %v2014
      %2107 = vmatpush2.bf16.msra.mxu0 %v2013
      %2108 = vmatprep.mubr.bf16.mxu0 %v1880
      %2109 = vmatmul.mubr.bf16.gmra.mxu0 %v1879
      %v2110 = vpop.f32.mrf.mxu0
      %v2111 = vadd.f32 %v1845, %v2110
      %v2112 = vpop.f32.mrf.mxu0
      %v2113 = vadd.f32 %v1845, %v2112
      %v2114 = vpop.f32.mrf.mxu0
      %v2115 = vadd.f32 %v1849, %v2114
      %v2116 = vpop.f32.mrf.mxu0
      %v2117 = vadd.f32 %v1849, %v2116
      %2118 = vmatprep.mubr.bf16.mxu0 %v1883
      %2119 = vmatmul.mubr.bf16.gmra.mxu0 %v1882
      %v2120 = vpop.f32.mrf.mxu0
      %v2121 = vadd.f32 %v1853, %v2120
      %v2122 = vpop.f32.mrf.mxu0
      %v2123 = vadd.f32 %v1853, %v2122
      %v2124 = vpop.f32.mrf.mxu0
      %v2125 = vadd.f32 %v1857, %v2124
      %v2126 = vpop.f32.mrf.mxu0
      %v2127 = vadd.f32 %v1857, %v2126
      %2128 = vdwg.mxu0
      %2129 = vmatprep.subr.bf16.mxu0 0
      %2130 = vmatpush1.bf16.msra.mxu0 0
      %2131 = vmatprep.subr.bf16.mxu0 0
      %2132 = vmatpush1.bf16.msra.mxu0 0
      %2133 = vmatprep.subr.bf16.mxu0 0
      %2134 = vmatpush1.bf16.msra.mxu0 0
      %2135 = vmatprep.subr.bf16.mxu0 0
      %2136 = vmatpush1.bf16.msra.mxu0 0
      %2137 = vmatprep.subr.bf16.mxu0 0
      %2138 = vmatpush1.bf16.msra.mxu0 0
      %2139 = vmatprep.subr.bf16.mxu0 0
      %2140 = vmatpush1.bf16.msra.mxu0 0
      %2141 = vmatprep.subr.bf16.mxu0 %v2032
      %2142 = vmatpush1.bf16.msra.mxu0 %v2031
      %2143 = vmatprep.subr.bf16.mxu0 %v2030
      %2144 = vmatpush1.bf16.msra.mxu0 %v2029
      %2145 = vmatprep.subr.bf16.mxu0 0
      %2146 = vmatpush2.bf16.msra.mxu0 0
      %2147 = vmatprep.subr.bf16.mxu0 0
      %2148 = vmatpush2.bf16.msra.mxu0 0
      %2149 = vmatprep.subr.bf16.mxu0 0
      %2150 = vmatpush2.bf16.msra.mxu0 0
      %2151 = vmatprep.subr.bf16.mxu0 0
      %2152 = vmatpush2.bf16.msra.mxu0 0
      %2153 = vmatprep.subr.bf16.mxu0 0
      %2154 = vmatpush2.bf16.msra.mxu0 0
      %2155 = vmatprep.subr.bf16.mxu0 0
      %2156 = vmatpush2.bf16.msra.mxu0 0
      %2157 = vmatprep.subr.bf16.mxu0 0
      %2158 = vmatpush2.bf16.msra.mxu0 0
      %2159 = vmatprep.subr.bf16.mxu0 0
      %2160 = vmatpush2.bf16.msra.mxu0 0
      %2161 = vmatprep.mubr.bf16.mxu0 0
      %2162 = vmatmul.mubr.bf16.gmra.mxu0 %v2071
      %v2163 = vpop.f32.mrf.mxu0
      %v2164 = vadd.f32 %v2111, %v2163
      %v2165 = vpop.f32.mrf.mxu0
      %v2166 = vadd.f32 %v2113, %v2165
      %v2167 = vpop.f32.mrf.mxu0
      %v2168 = vadd.f32 %v2115, %v2167
      %v2169 = vpop.f32.mrf.mxu0
      %v2170 = vadd.f32 %v2117, %v2169
      %2171 = vmatprep.mubr.bf16.mxu0 0
      %2172 = vmatmul.mubr.bf16.gmra.mxu0 %v2074
      %v2173 = vpop.f32.mrf.mxu0
      %v2174 = vadd.f32 %v2121, %v2173
      %v2175 = vpop.f32.mrf.mxu0
      %v2176 = vadd.f32 %v2123, %v2175
      %v2177 = vpop.f32.mrf.mxu0
      %v2178 = vadd.f32 %v2125, %v2177
      %v2179 = vpop.f32.mrf.mxu0
      %v2180 = vadd.f32 %v2127, %v2179
      %2181 = vdwg.mxu0
      %vm2182 = vcmp.ge.f32.partialorder %v2164, 0.0
      %vm2183 = vcmp.ge.f32.partialorder %v2166, 0.0
      %vm2184 = vcmp.ge.f32.partialorder %v2168, 0.0
      %vm2185 = vcmp.ge.f32.partialorder %v2170, 0.0
      %vm2186 = vcmp.ge.f32.partialorder %v2174, 0.0
      %vm2187 = vcmp.ge.f32.partialorder %v2176, 0.0
      %vm2188 = vcmp.ge.f32.partialorder %v2178, 0.0
      %vm2189 = vcmp.ge.f32.partialorder %v2180, 0.0
      %2190 = vset.pattern.permute.xlu0 3
      %2191 = vperm.xlu0 %2190, %v352
      %v2192 = vpop.permute.xlu0 %2191
      %2194 = vset.pattern.permute.xlu0 3
      %2195 = vperm.xlu0 %2194, %v353
      %v2196 = vpop.permute.xlu0 %2195
      %2198 = vset.pattern.permute.xlu0 3
      %2199 = vperm.xlu0 %2198, %v354
      %v2200 = vpop.permute.xlu0 %2199
      %2202 = vset.pattern.permute.xlu0 3
      %2203 = vperm.xlu0 %2202, %v355
      %v2204 = vpop.permute.xlu0 %2203
      %v2206 = vmul.f32 %v2164, %v2192
      %v2207 = vmul.f32 %v2166, %v2192
      %v2208 = vmul.f32 %v2168, %v2196
      %v2209 = vmul.f32 %v2170, %v2196
      %v2210 = vmul.f32 %v2174, %v2200
      %v2211 = vmul.f32 %v2176, %v2200
      %v2212 = vmul.f32 %v2178, %v2204
      %v2213 = vmul.f32 %v2180, %v2204
      %v2214 = vsel %vm2182, %v2164, %v2206
      %v2215 = vsel %vm2183, %v2166, %v2207
      %v2216 = vsel %vm2184, %v2168, %v2208
      %v2217 = vsel %vm2185, %v2170, %v2209
      %v2218 = vsel %vm2186, %v2174, %v2210
      %v2219 = vsel %vm2187, %v2176, %v2211
      %v2220 = vsel %vm2188, %v2178, %v2212
      %v2221 = vsel %vm2189, %v2180, %v2213
      %v2222 = vld [vmem:[%s6] sm:$0xf]
      %v2223 = vld [vmem:[%s6 + $0x4] sm:$0xf]
      %v2224 = vpack.c.bf16 %v2216, %v2214
      %v2225 = vpack.c.bf16 %v2217, %v2215
      %v2226 = vpack.c.bf16 %v2220, %v2218
      %v2227 = vpack.c.bf16 %v2221, %v2219
      %v2230 = vunpack.c.l.b16 %v2222
      %v2231 = vunpack.c.l.b16 %v2223
      %v2232 = vpack.c.b16 %v2231, %v2230
      %v2234 = vsel %vm2069, %v2232, 0
      %2236 = vmatprep.subr.bf16.mxu0 0
      %2237 = vmatpush1.bf16.msra.mxu0 0
      %2238 = vmatprep.subr.bf16.mxu0 0
      %2239 = vmatpush1.bf16.msra.mxu0 0
      %2240 = vmatprep.subr.bf16.mxu0 0
      %2241 = vmatpush1.bf16.msra.mxu0 0
      %2242 = vmatprep.subr.bf16.mxu0 0
      %2243 = vmatpush1.bf16.msra.mxu0 0
      %2244 = vmatprep.subr.bf16.mxu0 0
      %2245 = vmatpush1.bf16.msra.mxu0 0
      %2246 = vmatprep.subr.bf16.mxu0 0
      %2247 = vmatpush1.bf16.msra.mxu0 0
      %2248 = vmatprep.subr.bf16.mxu0 %v2227
      %2249 = vmatpush1.bf16.msra.mxu0 %v2226
      %2250 = vmatprep.subr.bf16.mxu0 %v2225
      %2251 = vmatpush1.bf16.msra.mxu0 %v2224
      %2252 = vmatprep.subr.bf16.mxu0 0
      %2253 = vmatpush2.bf16.msra.mxu0 0
      %2254 = vmatprep.subr.bf16.mxu0 0
      %2255 = vmatpush2.bf16.msra.mxu0 0
      %2256 = vmatprep.subr.bf16.mxu0 0
      %2257 = vmatpush2.bf16.msra.mxu0 0
      %2258 = vmatprep.subr.bf16.mxu0 0
      %2259 = vmatpush2.bf16.msra.mxu0 0
      %2260 = vmatprep.subr.bf16.mxu0 0
      %2261 = vmatpush2.bf16.msra.mxu0 0
      %2262 = vmatprep.subr.bf16.mxu0 0
      %2263 = vmatpush2.bf16.msra.mxu0 0
      %2264 = vmatprep.subr.bf16.mxu0 0
      %2265 = vmatpush2.bf16.msra.mxu0 0
      %2266 = vmatprep.subr.bf16.mxu0 0
      %2267 = vmatpush2.bf16.msra.mxu0 0
      %2268 = vmatprep.mubr.bf16.mxu0 0
      %2269 = vmatmul.mubr.bf16.gmra.mxu0 %v2234
      %v2270 = vpop.f32.mrf.mxu0
      %v2271 = vadd.f32 0.0, %v2270
      %v2272 = vpop.f32.mrf.mxu0
      %v2273 = vadd.f32 0.0, %v2272
      %v2274 = vpop.f32.mrf.mxu0
      %v2275 = vadd.f32 0.0, %v2274
      %v2276 = vpop.f32.mrf.mxu0
      %v2277 = vadd.f32 0.0, %v2276
      %2278 = vdwg.mxu0
      %2279 = vst [vmem:[#allocation2 + $0x8] sm:$0xff] %v2271
      %2280 = vst.msk [vmem:[#allocation2 + $0x10] sm:$0xff] %vm1011, %v2273
      %2281 = vst [vmem:[#allocation2 + $0x28] sm:$0x1] %v2275
      %vm2282 = vcmask 516096
      %2283 = vst.msk [vmem:[#allocation2 + $0x30] sm:$0x1] %vm2282, %v2277
      %v2284 = vld [vmem:[#allocation2] ss:$8 sm:$0x7]
      %2285 = vrot.lane.b32.xlu0 %v349, 111
      %v2286 = vpop.permute.xlu0 %2285
      %v2287 = vrot.slane %v2286, 7
      %v2288 = vsel %vm399, %v2287, %v2286
      %v2290 = vmul.f32 %v2284, %v2288
      %s2291 = scalar_lea.vmem [#allocation2], 1
      %v2292 = vld [vmem:[%s2291] ss:$8 sm:$0x7]
      %2294 = vrot.lane.b32.xlu0 %v2292, 127
      %v2295 = vpop.permute.xlu0 %2294
      %v2296 = vrot.slane %v2295, 1
      %v2297 = vsel %vm565, %v2295, %v2296
      %v2299 = vadd.f32 %v2290, %v2297
      %s2300 = scalar_lea.vmem [#allocation2], 2
      %v2301 = vld [vmem:[%s2300] ss:$8 sm:$0x7]
      %2302 = vrot.lane.b32.xlu0 %v351, 113
      %v2303 = vpop.permute.xlu0 %2302
      %v2304 = vrot.slane %v2303, 7
      %v2305 = vsel %vm505, %v2304, %v2303
      %v2307 = vmul.f32 %v2301, %v2305
      %2309 = vrot.lane.b32.xlu0 %v2307, 126
      %v2310 = vpop.permute.xlu0 %2309
      %v2311 = vrot.slane %v2310, 1
      %vm2312 = vcmask 1031168
      %v2313 = vsel %vm2312, %v2310, %v2311
      %v2315 = vadd.f32 %v2299, %v2313
      %s2316 = scalar_lea.vmem [#allocation2], 3
      %v2317 = vld [vmem:[%s2316] ss:$8 sm:$0x7]
      %2318 = vrot.lane.b32.xlu0 %v349, 127
      %v2319 = vpop.permute.xlu0 %2318
      %v2320 = vrot.slane %v2319, 7
      %v2321 = vsel %vm565, %v2320, %v2319
      %v2323 = vmul.f32 %v2317, %v2321
      %2325 = vrot.lane.b32.xlu0 %v2323, 112
      %v2326 = vpop.permute.xlu0 %2325
      %v2327 = vrot.slane %v2326, 1
      %vm2328 = vcmask 916480
      %v2329 = vsel %vm2328, %v2326, %v2327
      %v2331 = vadd.f32 %v2315, %v2329
      %s2332 = scalar_lea.vmem [#allocation2], 12
      %v2333 = vld [vmem:[%s2332] ss:$8 sm:$0x3]
      %2335 = vrot.lane.b32.xlu0 %v2333, 111
      %v2336 = vpop.permute.xlu0 %2335
      %v2337 = vrot.slane %v2336, 7
      %v2338 = vsel %vm399, %v2337, %v2336
      %v2340 = vadd.f32 %v2331, %v2338
      %s2341 = scalar_lea.vmem [#allocation2], 13
      %v2342 = vld [vmem:[%s2341] ss:$8 sm:$0x7]
      %2343 = vrot.lane.b32.xlu0 %v351, 1
      %v2344 = vpop.permute.xlu0 %2343
      %v2345 = vrot.slane %v2344, 7
      %v2346 = vsel %vm644, %v2345, %v2344
      %v2348 = vmul.f32 %v2342, %v2346
      %2350 = vrot.lane.b32.xlu0 %v2348, 110
      %v2351 = vpop.permute.xlu0 %2350
      %v2352 = vrot.slane %v2351, 7
      %vm2353 = vcmask 900096
      %v2354 = vsel %vm2353, %v2352, %v2351
      %v2356 = vadd.f32 %v2340, %v2354
      %s2357 = scalar_lea.vmem [#allocation2], 14
      %v2358 = vld [vmem:[%s2357] ss:$8 sm:$0x7]
      %2359 = vrot.lane.b32.xlu0 %v349, 15
      %v2360 = vpop.permute.xlu0 %2359
      %v2361 = vrot.slane %v2360, 7
      %v2362 = vsel %vm718, %v2361, %v2360
      %v2364 = vmul.f32 %v2358, %v2362
      %2366 = vrot.lane.b32.xlu0 %v2364, 96
      %v2367 = vpop.permute.xlu0 %2366
      %v2368 = vrot.slane %v2367, 7
      %vm2369 = vcmask 785408
      %v2370 = vsel %vm2369, %v2368, %v2367
      %v2372 = vadd.f32 %v2356, %v2370
      %s2373 = scalar_lea.vmem [#allocation2], 15
      %v2374 = vld [vmem:[%s2373] ss:$8 sm:$0x7]
      %2376 = vrot.lane.b32.xlu0 %v2374, 95
      %v2377 = vpop.permute.xlu0 %2376
      %v2378 = vrot.slane %v2377, 7
      %vm2379 = vcmask 777216
      %v2380 = vsel %vm2379, %v2378, %v2377
      %v2382 = vadd.f32 %v2372, %v2380
      %s2383 = scalar_lea.vmem [#allocation2], 40
      %v2384 = vld [vmem:[%s2383] ss:$8 sm:$0x7]
      %2385 = vrot.lane.b32.xlu0 %v351, 17
      %v2386 = vpop.permute.xlu0 %2385
      %v2387 = vrot.slane %v2386, 7
      %v2388 = vsel %vm812, %v2387, %v2386
      %v2390 = vmul.f32 %v2384, %v2388
      %2392 = vrot.lane.b32.xlu0 %v2390, 94
      %v2393 = vpop.permute.xlu0 %2392
      %v2394 = vrot.slane %v2393, 7
      %vm2395 = vcmask 769024
      %v2396 = vsel %vm2395, %v2394, %v2393
      %v2398 = vadd.f32 %v2382, %v2396
      %2400 = vset.pattern.permute.xlu0 4
      %2401 = vperm.xlu0 %2400, %v356
      %v2402 = vpop.permute.xlu0 %2401
      %v2403 = vlaneseq
      %v2404 = vshrl.u32 %v2403, 7
      %v2405 = vsub.s32 0, %v2404
      %v2406 = vrot.slane %v2402, %v2405
      %v2408 = vadd.f32 %v2398, %v2406
      %v2409 = vld [vmem:[%s322] sm:$0x3]
      %2411 = vrot.lane.b32.xlu0 %v2408, 17
      %v2412 = vpop.permute.xlu0 %2411
      %v2413 = vrot.slane %v2412, 1
      %v2414 = vsel %vm812, %v2412, %v2413
      %v2416 = vadd.f32 %v2409, %v2414
      %vm2417 = vcmp.lt.s32.totalorder %v358, 256
      %vm2418 = vmand %vm359, %vm2417
      %2419 = vst.msk [vmem:[%s334] sm:$0x3] %vm2418, %v2416
      %p2420 = scmp.lt.s32.totalorder %s19, 1
      %s2421 = scalar_select %p2420, %s19, 1
      %s2422 = smul.addr %s2421, 2
      %s2423 = scalar_lea.vmem %s8, %s2422
      // Predicated region
      $region53: #{_forward_impl.13} parent=51 // pred_check
        %p2424 = pneg %p220
      $region54: #{_forward_impl.13} parent=51 // pred_check_branch
        %2426 = sbr.rel (%p2424) target = $region56
      $region55: #{_forward_impl.13} parent=51 // pred_region
        _
      $region56: #{_forward_impl.13} parent=51 // pred_fallthru
        _
    $region52: #{_forward_impl.13} parent=5 // pred_fallthru
      _
    %p2427 = scmp.le.s32.totalorder 2, %s14
    // Predicated region
    $region57: #{_forward_impl.13} parent=5 // pred_check
      %p2428 = pneg %p2427
    $region58: #{_forward_impl.13} parent=5 // pred_check_branch
      %2430 = sbr.rel (%p2428) target = $region60
    $region59: #{_forward_impl.13} parent=5 // pred_region
      %s2431 = ssub.s32 %s14, 2
      // Predicated region
      $region61: #{_forward_impl.13} parent=59 // pred_check
        %p2432 = pneg %p226
      $region62: #{_forward_impl.13} parent=59 // pred_check_branch
        %2434 = sbr.rel (%p2432) target = $region64
      $region63: #{_forward_impl.13} parent=59 // pred_region
        %p2435 = scmp.lt.s32.totalorder %s20, 1
        %s2436 = scalar_select %p2435, %s20, 1
        %s2437 = smul.addr %s2436, 2
        %s2438 = scalar_lea.vmem %s8, %s2437
      $region64: #{_forward_impl.13} parent=59 // pred_fallthru
        _
    $region60: #{_forward_impl.13} parent=5 // pred_fallthru
      _
  $region6: #{_forward_impl.13} parent=0 // loop_footer
    %s18 = sadd.s32 1, %s14
  $region7: #{_forward_impl.13} parent=0 // loop_footer_branch
    %13 = sbr.rel target = $region3
  $region8: #{_forward_impl.13} parent=0 // loop_exit
    _

// kernel: _forward_impl.15
$region0: #{_forward_impl.15}
  #allocation0 [shape = 'u32[]', space=smem, size = 0x4, offset = 0x4, fixed_abs, tag = 'smem constant byte address 0x4 - core index']
  #allocation1 [shape = 'u32[144,128]{1,0:T(1,128)}', space=vmem, size = 0x12000, scoped, tag = 'internal scratch']
  #allocation2 [shape = 'f32[32,512]{1,0:T(8,128)}', space=vmem, size = 0x10000, scoped, tag = 'scratch operand']
  #allocation3 [shape = 'bf16[18,256]{1,0:T(8,128)(2,1)}', space=vmem, size = 0x3000, scoped, tag = 'scratch operand']
  #allocation4 [shape = 'bf16[288,256]{1,0:T(8,128)(2,1)}', space=vmem, size = 0x24000, scoped, tag = 'scratch operand']
  %s0 = inlined_call_operand.vmem [shape: f32[2,1,256], index: 0, kind: input, shape index: {}]
  %s1 = inlined_call_operand.vmem [shape: bf16[2,1,256], index: 1, kind: input, shape index: {}]
  %s2 = inlined_call_operand.vmem [shape: f32[2,256], index: 2, kind: input, shape index: {}]
  %s3 = inlined_call_operand.vmem [shape: bf16[32,18], index: 3, kind: input, shape index: {}]
  %s4 = inlined_call_operand.vmem [shape: bf16[32,288], index: 4, kind: input, shape index: {}]
  %s5 = inlined_call_operand.vmem [shape: bf16[16,32], index: 5, kind: input, shape index: {}]
  %s6 = inlined_call_operand.vmem [shape: f32[32,8], index: 6, kind: input, shape index: {}]
  %s7 = inlined_call_operand.vmem [shape: f32[2,1,256], index: 7, kind: output, shape index: {}]
  %s8 = sld [smem:[#allocation0]]
  $region61: #{_forward_impl.15} parent=0
    _
  %s10 = ssub.s32 1, %s8
  %s11 = scalar_select 0, %s10, %s8
  loop: start=0, step=1, limit=4
  $region2: #{_forward_impl.15} parent=0 // loop_pre_header
    _
  $region3: #{_forward_impl.15} parent=0 // loop_header
    %s13 = sphi 0, %s17
    %p14 = scmp.ge.s32.totalorder %s13, 4
    %s23 = sphi 0, %s25
    %s26 = sphi 0, %s23
    %s27 = sphi 0, %s26
    %s43 = sphi 0, %s27
    %s49 = sphi 0, %s51
    %s52 = sphi 0, %s49
    %s53 = sphi 0, %s52
    %s69 = sphi 0, %s53
    %s73 = sphi 0, %s73
    %s75 = sphi 0, %s73
    %s76 = sphi 0, %s75
    %s90 = sphi 0, %s76
    %s94 = sphi 0, %s94
    %s96 = sphi 0, %s94
    %s97 = sphi 0, %s96
    %s111 = sphi 0, %s97
    %s115 = sphi 0, %s115
    %s117 = sphi 0, %s115
    %s118 = sphi 0, %s117
    %s132 = sphi 0, %s118
    %s136 = sphi 0, %s136
    %s138 = sphi 0, %s136
    %s139 = sphi 0, %s138
    %s153 = sphi 0, %s139
    %s157 = sphi 0, %s157
    %s159 = sphi 0, %s157
    %s160 = sphi 0, %s159
    %s174 = sphi 0, %s160
    %s180 = sphi 0, %s182
    %s183 = sphi 0, %s180
    %s184 = sphi 0, %s183
    %s200 = sphi 0, %s184
  $region4: #{_forward_impl.15} parent=0 // loop_header_branch
    %16 = sbr.rel (%p14) target = $region8
  $region5: #{_forward_impl.15} parent=0 // loop_body
    %s18 = ssub.s32 %s13, 1
    %s19 = ssub.s32 %s13, 2
    %s20 = sadd.s32 %s13, 1
    %s21 = ssub.s32 %s13, %s20
    %p22 = scmp.eq.s32.totalorder %s21, 0
    %s24 = sadd.s32 %s23, 1
    %s25 = scalar_select %p22, %s23, %s24
    %p28 = pneg %p22
    %p29 = scmp.eq.s32.totalorder %s13, 1
    %p30 = por %p28, %p29
    %p31 = scmp.ne.s32.totalorder %s23, %s26
    %p32 = scmp.eq.s32.totalorder %s13, 0
    %p33 = por %p31, %p32
    %p34 = scmp.ne.s32.totalorder %s23, %s26
    %p35 = scmp.eq.s32.totalorder %s18, 1
    %p36 = por %p34, %p35
    %p37 = scmp.ne.s32.totalorder %s26, %s27
    %p38 = scmp.eq.s32.totalorder %s18, 0
    %p39 = por %p37, %p38
    %p40 = scmp.ne.s32.totalorder %s26, %s27
    %p41 = scmp.eq.s32.totalorder %s19, 1
    %p42 = por %p40, %p41
    %p44 = scmp.ne.s32.totalorder %s27, %s43
    %p45 = scmp.eq.s32.totalorder %s19, 0
    %p46 = por %p44, %p45
    %s47 = ssub.s32 %s13, %s20
    %p48 = scmp.eq.s32.totalorder %s47, 0
    %s50 = sadd.s32 %s49, 1
    %s51 = scalar_select %p48, %s49, %s50
    %p54 = pneg %p48
    %p55 = scmp.eq.s32.totalorder %s13, 1
    %p56 = por %p54, %p55
    %p57 = scmp.ne.s32.totalorder %s49, %s52
    %p58 = scmp.eq.s32.totalorder %s13, 0
    %p59 = por %p57, %p58
    %p60 = scmp.ne.s32.totalorder %s49, %s52
    %p61 = scmp.eq.s32.totalorder %s18, 1
    %p62 = por %p60, %p61
    %p63 = scmp.ne.s32.totalorder %s52, %s53
    %p64 = scmp.eq.s32.totalorder %s18, 0
    %p65 = por %p63, %p64
    %p66 = scmp.ne.s32.totalorder %s52, %s53
    %p67 = scmp.eq.s32.totalorder %s19, 1
    %p68 = por %p66, %p67
    %p70 = scmp.ne.s32.totalorder %s53, %s69
    %p71 = scmp.eq.s32.totalorder %s19, 0
    %p72 = por %p70, %p71
    %s74 = sadd.s32 %s73, 1
    %p77 = scmp.eq.s32.totalorder %s13, 1
    %p78 = scmp.ne.s32.totalorder %s73, %s75
    %p79 = scmp.eq.s32.totalorder %s13, 0
    %p80 = por %p78, %p79
    %p81 = scmp.ne.s32.totalorder %s73, %s75
    %p82 = scmp.eq.s32.totalorder %s18, 1
    %p83 = por %p81, %p82
    %p84 = scmp.ne.s32.totalorder %s75, %s76
    %p85 = scmp.eq.s32.totalorder %s18, 0
    %p86 = por %p84, %p85
    %p87 = scmp.ne.s32.totalorder %s75, %s76
    %p88 = scmp.eq.s32.totalorder %s19, 1
    %p89 = por %p87, %p88
    %p91 = scmp.ne.s32.totalorder %s76, %s90
    %p92 = scmp.eq.s32.totalorder %s19, 0
    %p93 = por %p91, %p92
    %s95 = sadd.s32 %s94, 1
    %p98 = scmp.eq.s32.totalorder %s13, 1
    %p99 = scmp.ne.s32.totalorder %s94, %s96
    %p100 = scmp.eq.s32.totalorder %s13, 0
    %p101 = por %p99, %p100
    %p102 = scmp.ne.s32.totalorder %s94, %s96
    %p103 = scmp.eq.s32.totalorder %s18, 1
    %p104 = por %p102, %p103
    %p105 = scmp.ne.s32.totalorder %s96, %s97
    %p106 = scmp.eq.s32.totalorder %s18, 0
    %p107 = por %p105, %p106
    %p108 = scmp.ne.s32.totalorder %s96, %s97
    %p109 = scmp.eq.s32.totalorder %s19, 1
    %p110 = por %p108, %p109
    %p112 = scmp.ne.s32.totalorder %s97, %s111
    %p113 = scmp.eq.s32.totalorder %s19, 0
    %p114 = por %p112, %p113
    %s116 = sadd.s32 %s115, 1
    %p119 = scmp.eq.s32.totalorder %s13, 1
    %p120 = scmp.ne.s32.totalorder %s115, %s117
    %p121 = scmp.eq.s32.totalorder %s13, 0
    %p122 = por %p120, %p121
    %p123 = scmp.ne.s32.totalorder %s115, %s117
    %p124 = scmp.eq.s32.totalorder %s18, 1
    %p125 = por %p123, %p124
    %p126 = scmp.ne.s32.totalorder %s117, %s118
    %p127 = scmp.eq.s32.totalorder %s18, 0
    %p128 = por %p126, %p127
    %p129 = scmp.ne.s32.totalorder %s117, %s118
    %p130 = scmp.eq.s32.totalorder %s19, 1
    %p131 = por %p129, %p130
    %p133 = scmp.ne.s32.totalorder %s118, %s132
    %p134 = scmp.eq.s32.totalorder %s19, 0
    %p135 = por %p133, %p134
    %s137 = sadd.s32 %s136, 1
    %p140 = scmp.eq.s32.totalorder %s13, 1
    %p141 = scmp.ne.s32.totalorder %s136, %s138
    %p142 = scmp.eq.s32.totalorder %s13, 0
    %p143 = por %p141, %p142
    %p144 = scmp.ne.s32.totalorder %s136, %s138
    %p145 = scmp.eq.s32.totalorder %s18, 1
    %p146 = por %p144, %p145
    %p147 = scmp.ne.s32.totalorder %s138, %s139
    %p148 = scmp.eq.s32.totalorder %s18, 0
    %p149 = por %p147, %p148
    %p150 = scmp.ne.s32.totalorder %s138, %s139
    %p151 = scmp.eq.s32.totalorder %s19, 1
    %p152 = por %p150, %p151
    %p154 = scmp.ne.s32.totalorder %s139, %s153
    %p155 = scmp.eq.s32.totalorder %s19, 0
    %p156 = por %p154, %p155
    %s158 = sadd.s32 %s157, 1
    %p161 = scmp.eq.s32.totalorder %s13, 1
    %p162 = scmp.ne.s32.totalorder %s157, %s159
    %p163 = scmp.eq.s32.totalorder %s13, 0
    %p164 = por %p162, %p163
    %p165 = scmp.ne.s32.totalorder %s157, %s159
    %p166 = scmp.eq.s32.totalorder %s18, 1
    %p167 = por %p165, %p166
    %p168 = scmp.ne.s32.totalorder %s159, %s160
    %p169 = scmp.eq.s32.totalorder %s18, 0
    %p170 = por %p168, %p169
    %p171 = scmp.ne.s32.totalorder %s159, %s160
    %p172 = scmp.eq.s32.totalorder %s19, 1
    %p173 = por %p171, %p172
    %p175 = scmp.ne.s32.totalorder %s160, %s174
    %p176 = scmp.eq.s32.totalorder %s19, 0
    %p177 = por %p175, %p176
    %s178 = ssub.s32 %s13, %s20
    %p179 = scmp.eq.s32.totalorder %s178, 0
    %s181 = sadd.s32 %s180, 1
    %s182 = scalar_select %p179, %s180, %s181
    %p185 = pneg %p179
    %p186 = scmp.eq.s32.totalorder %s13, 1
    %p187 = por %p185, %p186
    %p188 = scmp.ne.s32.totalorder %s180, %s183
    %p189 = scmp.eq.s32.totalorder %s13, 0
    %p190 = por %p188, %p189
    %p191 = scmp.ne.s32.totalorder %s180, %s183
    %p192 = scmp.eq.s32.totalorder %s18, 1
    %p193 = por %p191, %p192
    %p194 = scmp.ne.s32.totalorder %s183, %s184
    %p195 = scmp.eq.s32.totalorder %s18, 0
    %p196 = por %p194, %p195
    %p197 = scmp.ne.s32.totalorder %s183, %s184
    %p198 = scmp.eq.s32.totalorder %s19, 1
    %p199 = por %p197, %p198
    %p201 = scmp.ne.s32.totalorder %s184, %s200
    %p202 = scmp.eq.s32.totalorder %s19, 0
    %p203 = por %p201, %p202
    %p204 = scmp.le.s32.totalorder 1, %s13
    %p205 = scmp.lt.s32.totalorder %s13, 3
    %p206 = pnand %p204, %p205
    %p207 = pneg %p206
    // Predicated region
    $region9: #{_forward_impl.15} parent=5 // pred_check
      _
    $region10: #{_forward_impl.15} parent=5 // pred_check_branch
      %209 = sbr.rel (%p206) target = $region12
    $region11: #{_forward_impl.15} parent=5 // pred_region
      %s210 = ssub.s32 %s13, 1
      // Predicated region
      $region13: #{_forward_impl.15} parent=11 // pred_check
        %p211 = pneg %p86
      $region14: #{_forward_impl.15} parent=11 // pred_check_branch
        %213 = sbr.rel (%p211) target = $region16
      $region15: #{_forward_impl.15} parent=11 // pred_region
        _
      $region16: #{_forward_impl.15} parent=11 // pred_fallthru
        _
      // Predicated region
      $region17: #{_forward_impl.15} parent=11 // pred_check
        %p214 = pneg %p107
      $region18: #{_forward_impl.15} parent=11 // pred_check_branch
        %216 = sbr.rel (%p214) target = $region20
      $region19: #{_forward_impl.15} parent=11 // pred_region
        _
      $region20: #{_forward_impl.15} parent=11 // pred_fallthru
        _
      // Predicated region
      $region21: #{_forward_impl.15} parent=11 // pred_check
        %p217 = pneg %p128
      $region22: #{_forward_impl.15} parent=11 // pred_check_branch
        %219 = sbr.rel (%p217) target = $region24
      $region23: #{_forward_impl.15} parent=11 // pred_region
        _
      $region24: #{_forward_impl.15} parent=11 // pred_fallthru
        _
      // Predicated region
      $region25: #{_forward_impl.15} parent=11 // pred_check
        %p220 = pneg %p149
      $region26: #{_forward_impl.15} parent=11 // pred_check_branch
        %222 = sbr.rel (%p220) target = $region28
      $region27: #{_forward_impl.15} parent=11 // pred_region
        _
      $region28: #{_forward_impl.15} parent=11 // pred_fallthru
        _
      // Predicated region
      $region29: #{_forward_impl.15} parent=11 // pred_check
        %p223 = pneg %p170
      $region30: #{_forward_impl.15} parent=11 // pred_check_branch
        %225 = sbr.rel (%p223) target = $region32
      $region31: #{_forward_impl.15} parent=11 // pred_region
        _
      $region32: #{_forward_impl.15} parent=11 // pred_fallthru
        _
    $region12: #{_forward_impl.15} parent=5 // pred_fallthru
      _
    %p226 = scmp.lt.s32.totalorder %s13, 2
    // Predicated region
    $region33: #{_forward_impl.15} parent=5 // pred_check
      %p227 = pneg %p226
    $region34: #{_forward_impl.15} parent=5 // pred_check_branch
      %229 = sbr.rel (%p227) target = $region36
    $region35: #{_forward_impl.15} parent=5 // pred_region
      // Predicated region
      $region37: #{_forward_impl.15} parent=35 // pred_check
        %p230 = pneg %p33
      $region38: #{_forward_impl.15} parent=35 // pred_check_branch
        %232 = sbr.rel (%p230) target = $region40
      $region39: #{_forward_impl.15} parent=35 // pred_region
        %p233 = scmp.lt.s32.totalorder %s13, 1
        %s234 = scalar_select %p233, %s13, 1
        %s235 = smul.addr %s234, 2
        %s236 = scalar_lea.vmem %s0, %s235
      $region40: #{_forward_impl.15} parent=35 // pred_fallthru
        _
      // Predicated region
      $region41: #{_forward_impl.15} parent=35 // pred_check
        %p237 = pneg %p59
      $region42: #{_forward_impl.15} parent=35 // pred_check_branch
        %239 = sbr.rel (%p237) target = $region44
      $region43: #{_forward_impl.15} parent=35 // pred_region
        %p240 = scmp.lt.s32.totalorder %s13, 1
        %s241 = scalar_select %p240, %s13, 1
        %s242 = smul.addr %s241, 2
        %s243 = scalar_lea.vmem %s1, %s242
      $region44: #{_forward_impl.15} parent=35 // pred_fallthru
        _
    $region36: #{_forward_impl.15} parent=5 // pred_fallthru
      _
    %p244 = scmp.le.s32.totalorder 1, %s13
    %p245 = scmp.lt.s32.totalorder %s13, 3
    %p246 = pnand %p244, %p245
    %p247 = pneg %p246
    // Predicated region
    $region45: #{_forward_impl.15} parent=5 // pred_check
      _
    $region46: #{_forward_impl.15} parent=5 // pred_check_branch
      %249 = sbr.rel (%p246) target = $region48
    $region47: #{_forward_impl.15} parent=5 // pred_region
      %s250 = ssub.s32 %s13, 1
      %p251 = scmp.lt.s32.totalorder %s18, 1
      %s252 = scalar_select %p251, %s18, 1
      %s253 = smul.addr %s252, 2
      %s254 = scalar_lea.vmem %s0, %s253
      %p255 = pneg %p39
      %p256 = pneg %p36
      %p257 = scmp.lt.s32.totalorder %s18, 1
      %s258 = scalar_select %p257, %s18, 1
      %s259 = smul.addr %s258, 2
      %s260 = scalar_lea.vmem %s1, %s259
      %p261 = pneg %p65
      %p262 = pneg %p62
      %p263 = pneg %p86
      %p264 = pneg %p83
      %p265 = pneg %p107
      %p266 = pneg %p104
      %p267 = pneg %p128
      %p268 = pneg %p125
      %p269 = pneg %p149
      %p270 = pneg %p146
      %p271 = pneg %p170
      %p272 = pneg %p167
      %p273 = pneg %p196
      %p274 = pneg %p193
      %p275 = scmp.lt.s32.totalorder %s18, 1
      %s276 = scalar_select %p275, %s18, 1
      %s277 = smul.addr %s276, 2
      %s278 = scalar_lea.vmem %s7, %s277
      %p279 = scmp.lt.s32.totalorder %s18, 1
      %s280 = scalar_select %p279, %s18, 1
      %s281 = smul.addr %s280, 2
      %s282 = scalar_lea.vmem %s0, %s281
      %p283 = scmp.lt.s32.totalorder %s18, 1
      %s284 = scalar_select %p283, %s18, 1
      %s285 = smul.addr %s284, 2
      %s286 = scalar_lea.vmem %s1, %s285
      %p287 = scmp.lt.s32.totalorder %s18, 1
      %s288 = scalar_select %p287, %s18, 1
      %s289 = smul.addr %s288, 2
      %s290 = scalar_lea.vmem %s7, %s289
      %292 = vst [vmem:[#allocation2] sm:$0xff] 0.0
      %293 = vst [vmem:[#allocation2 + $0x20] sm:$0xff] 0.0
      %294 = vst [vmem:[#allocation2 + $0x40] sm:$0xff] 0.0
      %295 = vst [vmem:[#allocation2 + $0x60] sm:$0xff] 0.0
      %296 = vst [vmem:[#allocation2 + $0x18] sm:$0xff] 0.0
      %297 = vst [vmem:[#allocation2 + $0x38] sm:$0xff] 0.0
      %298 = vst [vmem:[#allocation2 + $0x58] sm:$0xff] 0.0
      %299 = vst [vmem:[#allocation2 + $0x78] sm:$0xff] 0.0
      %v300 = vld [vmem:[%s2] ss:$2 sm:$0x3]
      %s301 = scalar_lea.vmem %s2, 1
      %v302 = vld [vmem:[%s301] ss:$2 sm:$0x3]
      %v303 = vld [vmem:[%s6] sm:$0xff]
      %v304 = vld [vmem:[%s6 + $0x8] sm:$0xff]
      %v305 = vld [vmem:[%s6 + $0x10] sm:$0xff]
      %v306 = vld [vmem:[%s6 + $0x18] sm:$0xff]
      %v307 = vld [vmem:[%s6] sm:$0x1]
      %v308 = vld [vmem:[%s282] sm:$0x3]
      %v309 = vlaneseq
      %vm310 = vcmp.ge.s32.totalorder %v309, 0
      %vm311 = vcmp.lt.s32.totalorder %v309, 256
      %vm312 = vmand %vm310, %vm311
      %s313 = scalar_lea.vmem [#allocation2], 8
      %314 = vst.msk [vmem:[%s313] ss:$8 sm:$0x3] %vm312, %v308
      %315 = vst.msk [vmem:[%s313] ss:$8 sm:$0x0] %vm312, %v308
      %v316 = vld [vmem:[%s286] sm:$0x3]
      %v317 = vunpack.c.l.bf16 %v316
      %v320 = vunpack.c.l.s4 1966171168
      %v321 = vunpack.c.0.s8 %v320
      %v322 = vlaneseq
      %v323 = vshrl.u32 %v322, 7
      %v324 = vsub.s32 %v321, %v323
      %v325 = vrot.slane %v317, %v324
      %s327 = scalar_lea.vmem [#allocation2], 9
      %328 = vst.msk [vmem:[%s327] ss:$8 sm:$0x3] %vm312, %v325
      %329 = vst.msk [vmem:[%s327] ss:$8 sm:$0x0] %vm312, %v325
      %v330 = vld [vmem:[#allocation2] sm:$0x3]
      %v331 = vld [vmem:[#allocation2 + $0x8] sm:$0x3]
      %v332 = vld [vmem:[#allocation2 + $0x10] sm:$0x3]
      %v334 = vlaneseq
      %v335 = vshrl.u32 %v334, 7
      %v336 = vsub.s32 0, %v335
      %v337 = vrot.slane %v300, %v336
      %v338 = vlaneseq
      %v339 = vshrl.u32 %v338, 7
      %v340 = vsub.s32 1, %v339
      %v341 = vrot.slane %v300, %v340
      %342 = vrot.lane.b32.xlu0 %v337, 111
      %v343 = vpop.permute.xlu0 %342
      %344 = vrot.lane.b32.xlu0 %v341, 111
      %v345 = vpop.permute.xlu0 %344
      %vm346 = vcmask 908288
      %v347 = vsel %vm346, %v343, %v345
      %v351 = vmul.f32 %v330, %v343
      %v352 = vmul.f32 %v331, %v347
      %v353 = vmul.f32 %v332, %v345
      %v354 = vpack.c.bf16 %v351, %v351
      %v355 = vpack.c.bf16 %v352, %v352
      %v356 = vpack.c.bf16 %v353, %v353
      %v360 = vunpack.c.l.b16 %v354
      %v361 = vunpack.c.l.b16 %v355
      %v362 = vunpack.c.l.b16 %v356
      %v363 = vpack.c.b16 %v361, %v360
      %v364 = vpack.c.b16 %v362, %v362
      %365 = vrot.lane.b32.xlu0 %v363, 17
      %v366 = vpop.permute.xlu0 %365
      %367 = vrot.lane.b32.xlu0 %v364, 17
      %v368 = vpop.permute.xlu0 %367
      %v369 = vrot.slane %v366, 4
      %v370 = vrot.slane %v368, 4
      %vm371 = vcmask 1043456
      %v372 = vsel %vm371, %v369, %v370
      %vm373 = vcmask 138240
      %v374 = vsel %vm373, %v366, %v372
      %376 = vst [vmem:[#allocation3] sm:$0x11] %v374
      %v377 = vld [vmem:[#allocation2] sm:$0x3]
      %v378 = vld [vmem:[#allocation2 + $0x8] sm:$0x3]
      %v379 = vld [vmem:[#allocation2 + $0x10] sm:$0x3]
      %v380 = vpack.c.bf16 %v377, %v377
      %v381 = vpack.c.bf16 %v378, %v378
      %v382 = vpack.c.bf16 %v379, %v379
      %v386 = vunpack.c.l.b16 %v380
      %v387 = vunpack.c.l.b16 %v381
      %v388 = vunpack.c.l.b16 %v382
      %v389 = vpack.c.b16 %v387, %v386
      %v390 = vpack.c.b16 %v388, %v388
      %v391 = vrot.slane %v389, 7
      %v392 = vrot.slane %v390, 7
      %393 = vrot.lane.b32.xlu0 %v391, 16
      %v394 = vpop.permute.xlu0 %393
      %395 = vrot.lane.b32.xlu0 %v392, 16
      %v396 = vpop.permute.xlu0 %395
      %v397 = vrot.slane %v394, 4
      %v398 = vrot.slane %v396, 4
      %v399 = vsel %vm371, %v397, %v398
      %vm400 = vcmask 130048
      %v401 = vsel %vm400, %v394, %v399
      %403 = vst [vmem:[#allocation3] sm:$0x22] %v401
      %v404 = vld [vmem:[#allocation2] sm:$0x3]
      %v405 = vld [vmem:[#allocation2 + $0x8] sm:$0x3]
      %v406 = vld [vmem:[#allocation2 + $0x10] sm:$0x3]
      %v408 = vlaneseq
      %v409 = vshrl.u32 %v408, 7
      %v410 = vsub.s32 0, %v409
      %v411 = vrot.slane %v302, %v410
      %v412 = vlaneseq
      %v413 = vshrl.u32 %v412, 7
      %v414 = vsub.s32 1, %v413
      %v415 = vrot.slane %v302, %v414
      %416 = vrot.lane.b32.xlu0 %v411, 113
      %v417 = vpop.permute.xlu0 %416
      %418 = vrot.lane.b32.xlu0 %v415, 113
      %v419 = vpop.permute.xlu0 %418
      %vm420 = vcmask 924672
      %v421 = vsel %vm420, %v417, %v419
      %v425 = vmul.f32 %v404, %v417
      %v426 = vmul.f32 %v405, %v421
      %v427 = vmul.f32 %v406, %v419
      %v428 = vpack.c.bf16 %v425, %v425
      %v429 = vpack.c.bf16 %v426, %v426
      %v430 = vpack.c.bf16 %v427, %v427
      %v434 = vunpack.c.l.b16 %v428
      %v435 = vunpack.c.l.b16 %v429
      %v436 = vunpack.c.l.b16 %v430
      %v437 = vpack.c.b16 %v435, %v434
      %v438 = vpack.c.b16 %v436, %v436
      %v439 = vrot.slane %v437, 6
      %v440 = vrot.slane %v438, 6
      %441 = vrot.lane.b32.xlu0 %v439, 15
      %v442 = vpop.permute.xlu0 %441
      %443 = vrot.lane.b32.xlu0 %v440, 15
      %v444 = vpop.permute.xlu0 %443
      %v445 = vrot.slane %v442, 4
      %v446 = vrot.slane %v444, 4
      %v447 = vsel %vm371, %v445, %v446
      %vm448 = vcmask 121856
      %v449 = vsel %vm448, %v442, %v447
      %451 = vst [vmem:[#allocation3] sm:$0x44] %v449
      %v452 = vld [vmem:[#allocation2] sm:$0x3]
      %v453 = vld [vmem:[#allocation2 + $0x8] sm:$0x3]
      %v454 = vld [vmem:[#allocation2 + $0x10] sm:$0x3]
      %455 = vrot.lane.b32.xlu0 %v337, 127
      %v456 = vpop.permute.xlu0 %455
      %457 = vrot.lane.b32.xlu0 %v341, 127
      %v458 = vpop.permute.xlu0 %457
      %vm459 = vcmask 1039360
      %v460 = vsel %vm459, %v456, %v458
      %v464 = vmul.f32 %v452, %v456
      %v465 = vmul.f32 %v453, %v460
      %v466 = vmul.f32 %v454, %v458
      %v467 = vpack.c.bf16 %v464, %v464
      %v468 = vpack.c.bf16 %v465, %v465
      %v469 = vpack.c.bf16 %v466, %v466
      %v473 = vunpack.c.l.b16 %v467
      %v474 = vunpack.c.l.b16 %v468
      %v475 = vunpack.c.l.b16 %v469
      %v476 = vpack.c.b16 %v474, %v473
      %v477 = vpack.c.b16 %v475, %v475
      %v478 = vrot.slane %v476, 5
      %v479 = vrot.slane %v477, 5
      %480 = vrot.lane.b32.xlu0 %v478, 1
      %v481 = vpop.permute.xlu0 %480
      %482 = vrot.lane.b32.xlu0 %v479, 1
      %v483 = vpop.permute.xlu0 %482
      %v484 = vrot.slane %v481, 4
      %v485 = vrot.slane %v483, 4
      %v486 = vsel %vm371, %v484, %v485
      %vm487 = vcmask 7168
      %v488 = vsel %vm487, %v481, %v486
      %490 = vst [vmem:[#allocation3] sm:$0x88] %v488
      %v491 = vld [vmem:[#allocation2 + $0x8] sm:$0x3]
      %v492 = vld [vmem:[#allocation2 + $0x10] sm:$0x3]
      %v493 = vpack.c.bf16 %v491, %v491
      %v494 = vpack.c.bf16 %v492, %v492
      %v497 = vunpack.c.l.b16 %v493
      %v498 = vunpack.c.l.b16 %v494
      %v499 = vpack.c.b16 %v498, %v497
      %501 = vst [vmem:[#allocation3 + $0x8] sm:$0x11] %v499
      %v502 = vld [vmem:[#allocation2 + $0x8] sm:$0x3]
      %v503 = vld [vmem:[#allocation2 + $0x10] sm:$0x3]
      %v504 = vld [vmem:[#allocation2 + $0x18] sm:$0x3]
      %505 = vrot.lane.b32.xlu0 %v411, 1
      %v506 = vpop.permute.xlu0 %505
      %507 = vrot.lane.b32.xlu0 %v415, 1
      %v508 = vpop.permute.xlu0 %507
      %vm509 = vcmask 7168
      %v510 = vsel %vm509, %v506, %v508
      %v514 = vmul.f32 %v502, %v506
      %v515 = vmul.f32 %v503, %v510
      %v516 = vmul.f32 %v504, %v508
      %v517 = vpack.c.bf16 %v514, %v514
      %v518 = vpack.c.bf16 %v515, %v515
      %v519 = vpack.c.bf16 %v516, %v516
      %v523 = vunpack.c.l.b16 %v517
      %v524 = vunpack.c.l.b16 %v518
      %v525 = vunpack.c.l.b16 %v519
      %v526 = vpack.c.b16 %v524, %v523
      %v527 = vpack.c.b16 %v525, %v525
      %v528 = vrot.slane %v526, 7
      %v529 = vrot.slane %v527, 7
      %530 = vrot.lane.b32.xlu0 %v528, 127
      %v531 = vpop.permute.xlu0 %530
      %532 = vrot.lane.b32.xlu0 %v529, 127
      %v533 = vpop.permute.xlu0 %532
      %v534 = vrot.slane %v531, 4
      %v535 = vrot.slane %v533, 4
      %v536 = vsel %vm371, %v534, %v535
      %vm537 = vcmask 1039360
      %v538 = vsel %vm537, %v531, %v536
      %540 = vst [vmem:[#allocation3 + $0x8] sm:$0x22] %v538
      %v541 = vld [vmem:[#allocation2 + $0x8] sm:$0x3]
      %v542 = vld [vmem:[#allocation2 + $0x10] sm:$0x3]
      %v543 = vld [vmem:[#allocation2 + $0x18] sm:$0x3]
      %544 = vrot.lane.b32.xlu0 %v337, 15
      %v545 = vpop.permute.xlu0 %544
      %546 = vrot.lane.b32.xlu0 %v341, 15
      %v547 = vpop.permute.xlu0 %546
      %vm548 = vcmask 121856
      %v549 = vsel %vm548, %v545, %v547
      %v553 = vmul.f32 %v541, %v545
      %v554 = vmul.f32 %v542, %v549
      %v555 = vmul.f32 %v543, %v547
      %v556 = vpack.c.bf16 %v553, %v553
      %v557 = vpack.c.bf16 %v554, %v554
      %v558 = vpack.c.bf16 %v555, %v555
      %v562 = vunpack.c.l.b16 %v556
      %v563 = vunpack.c.l.b16 %v557
      %v564 = vunpack.c.l.b16 %v558
      %v565 = vpack.c.b16 %v563, %v562
      %v566 = vpack.c.b16 %v564, %v564
      %v567 = vrot.slane %v565, 6
      %v568 = vrot.slane %v566, 6
      %569 = vrot.lane.b32.xlu0 %v567, 113
      %v570 = vpop.permute.xlu0 %569
      %571 = vrot.lane.b32.xlu0 %v568, 113
      %v572 = vpop.permute.xlu0 %571
      %v573 = vrot.slane %v570, 4
      %v574 = vrot.slane %v572, 4
      %v575 = vsel %vm371, %v573, %v574
      %vm576 = vcmask 924672
      %v577 = vsel %vm576, %v570, %v575
      %579 = vst [vmem:[#allocation3 + $0x8] sm:$0x44] %v577
      %v580 = vld [vmem:[#allocation2 + $0x8] sm:$0x3]
      %v581 = vld [vmem:[#allocation2 + $0x10] sm:$0x3]
      %v582 = vld [vmem:[#allocation2 + $0x18] sm:$0x3]
      %v583 = vpack.c.bf16 %v580, %v580
      %v584 = vpack.c.bf16 %v581, %v581
      %v585 = vpack.c.bf16 %v582, %v582
      %v589 = vunpack.c.l.b16 %v583
      %v590 = vunpack.c.l.b16 %v584
      %v591 = vunpack.c.l.b16 %v585
      %v592 = vpack.c.b16 %v590, %v589
      %v593 = vpack.c.b16 %v591, %v591
      %v594 = vrot.slane %v592, 5
      %v595 = vrot.slane %v593, 5
      %596 = vrot.lane.b32.xlu0 %v594, 112
      %v597 = vpop.permute.xlu0 %596
      %598 = vrot.lane.b32.xlu0 %v595, 112
      %v599 = vpop.permute.xlu0 %598
      %v600 = vrot.slane %v597, 4
      %v601 = vrot.slane %v599, 4
      %v602 = vsel %vm371, %v600, %v601
      %vm603 = vcmask 916480
      %v604 = vsel %vm603, %v597, %v602
      %606 = vst [vmem:[#allocation3 + $0x8] sm:$0x88] %v604
      %v607 = vld [vmem:[#allocation2 + $0x8] sm:$0x3]
      %v608 = vld [vmem:[#allocation2 + $0x10] sm:$0x3]
      %v609 = vld [vmem:[#allocation2 + $0x18] sm:$0x3]
      %610 = vrot.lane.b32.xlu0 %v411, 17
      %v611 = vpop.permute.xlu0 %610
      %612 = vrot.lane.b32.xlu0 %v415, 17
      %v613 = vpop.permute.xlu0 %612
      %vm614 = vcmask 138240
      %v615 = vsel %vm614, %v611, %v613
      %v619 = vmul.f32 %v607, %v611
      %v620 = vmul.f32 %v608, %v615
      %v621 = vmul.f32 %v609, %v613
      %v622 = vpack.c.bf16 %v619, %v619
      %v623 = vpack.c.bf16 %v620, %v620
      %v624 = vpack.c.bf16 %v621, %v621
      %v628 = vunpack.c.l.b16 %v622
      %v629 = vunpack.c.l.b16 %v623
      %v630 = vunpack.c.l.b16 %v624
      %v631 = vpack.c.b16 %v629, %v628
      %v632 = vpack.c.b16 %v630, %v630
      %633 = vrot.lane.b32.xlu0 %v631, 111
      %v634 = vpop.permute.xlu0 %633
      %635 = vrot.lane.b32.xlu0 %v632, 111
      %v636 = vpop.permute.xlu0 %635
      %v637 = vrot.slane %v634, 4
      %v638 = vrot.slane %v636, 4
      %v639 = vsel %vm371, %v637, %v638
      %vm640 = vcmask 908288
      %v641 = vsel %vm640, %v634, %v639
      %643 = vst [vmem:[#allocation3 + $0x10] sm:$0x11] %v641
      %v644 = vld [vmem:[%s3] sm:$0xf]
      %v645 = vld [vmem:[%s3 + $0x4] sm:$0xf]
      %v646 = vld [vmem:[%s3 + $0x8] sm:$0xf]
      %v647 = vld [vmem:[%s3 + $0xc] sm:$0xf]
      %v648 = vld [vmem:[#allocation3] sm:$0xff]
      %v649 = vld [vmem:[#allocation3 + $0x8] sm:$0xff]
      %v650 = vld [vmem:[#allocation3 + $0x10] sm:$0x11]
      %652 = vset.pattern.permute.xlu0 0
      %653 = vperm.xlu0 %652, %v303
      %v654 = vpop.permute.xlu0 %653
      %657 = vset.pattern.permute.xlu0 0
      %658 = vperm.xlu0 %657, %v304
      %v659 = vpop.permute.xlu0 %658
      %662 = vset.pattern.permute.xlu0 0
      %663 = vperm.xlu0 %662, %v305
      %v664 = vpop.permute.xlu0 %663
      %667 = vset.pattern.permute.xlu0 0
      %668 = vperm.xlu0 %667, %v306
      %v669 = vpop.permute.xlu0 %668
      %v675 = vunpack.c.l.b16 %v644
      %v676 = vunpack.c.l.b16 %v645
      %v677 = vunpack.c.l.b16 %v646
      %v678 = vunpack.c.l.b16 %v647
      %v679 = vpack.c.b16 %v676, %v675
      %v680 = vpack.c.b16 %v678, %v677
      %v684 = vunpack.c.l.b16 %v648
      %v685 = vunpack.c.h.b16 %v648
      %v686 = vunpack.c.l.b16 %v649
      %v687 = vunpack.c.h.b16 %v649
      %v688 = vunpack.c.l.b16 %v650
      %v689 = vunpack.c.h.b16 %v650
      %v690 = vpack.c.b16 %v686, %v684
      %v691 = vpack.c.b16 %v687, %v685
      %v692 = vpack.c.b16 %v688, %v688
      %v693 = vpack.c.b16 %v689, %v689
      %vm696 = vcmask 146432
      %v698 = vsel %vm696, %v679, 0
      %v701 = vsel %vm696, %v680, 0
      %vm703 = vcmask 1040384
      %v705 = vsel %vm703, %v692, 0
      %v708 = vsel %vm703, %v693, 0
      %710 = vmatprep.subr.bf16.mxu0 0
      %711 = vmatpush1.bf16.msra.mxu0 0
      %712 = vmatprep.subr.bf16.mxu0 0
      %713 = vmatpush1.bf16.msra.mxu0 0
      %714 = vmatprep.subr.bf16.mxu0 0
      %715 = vmatpush1.bf16.msra.mxu0 0
      %716 = vmatprep.subr.bf16.mxu0 0
      %717 = vmatpush1.bf16.msra.mxu0 0
      %718 = vmatprep.subr.bf16.mxu0 0
      %719 = vmatpush1.bf16.msra.mxu0 0
      %720 = vmatprep.subr.bf16.mxu0 0
      %721 = vmatpush1.bf16.msra.mxu0 0
      %722 = vmatprep.subr.bf16.mxu0 %v708
      %723 = vmatpush1.bf16.msra.mxu0 %v705
      %724 = vmatprep.subr.bf16.mxu0 %v691
      %725 = vmatpush1.bf16.msra.mxu0 %v690
      %726 = vmatprep.subr.bf16.mxu0 0
      %727 = vmatpush2.bf16.msra.mxu0 0
      %728 = vmatprep.subr.bf16.mxu0 0
      %729 = vmatpush2.bf16.msra.mxu0 0
      %730 = vmatprep.subr.bf16.mxu0 0
      %731 = vmatpush2.bf16.msra.mxu0 0
      %732 = vmatprep.subr.bf16.mxu0 0
      %733 = vmatpush2.bf16.msra.mxu0 0
      %734 = vmatprep.subr.bf16.mxu0 0
      %735 = vmatpush2.bf16.msra.mxu0 0
      %736 = vmatprep.subr.bf16.mxu0 0
      %737 = vmatpush2.bf16.msra.mxu0 0
      %738 = vmatprep.subr.bf16.mxu0 0
      %739 = vmatpush2.bf16.msra.mxu0 0
      %740 = vmatprep.subr.bf16.mxu0 0
      %741 = vmatpush2.bf16.msra.mxu0 0
      %742 = vmatprep.mubr.bf16.mxu0 0
      %743 = vmatmul.mubr.bf16.gmra.mxu0 %v698
      %v744 = vpop.f32.mrf.mxu0
      %v745 = vadd.f32 %v654, %v744
      %v746 = vpop.f32.mrf.mxu0
      %v747 = vadd.f32 %v654, %v746
      %v748 = vpop.f32.mrf.mxu0
      %v749 = vadd.f32 %v659, %v748
      %v750 = vpop.f32.mrf.mxu0
      %v751 = vadd.f32 %v659, %v750
      %752 = vmatprep.mubr.bf16.mxu0 0
      %753 = vmatmul.mubr.bf16.gmra.mxu0 %v701
      %v754 = vpop.f32.mrf.mxu0
      %v755 = vadd.f32 %v664, %v754
      %v756 = vpop.f32.mrf.mxu0
      %v757 = vadd.f32 %v664, %v756
      %v758 = vpop.f32.mrf.mxu0
      %v759 = vadd.f32 %v669, %v758
      %v760 = vpop.f32.mrf.mxu0
      %v761 = vadd.f32 %v669, %v760
      %762 = vdwg.mxu0
      %vm763 = vcmp.ge.f32.partialorder %v745, 0.0
      %vm764 = vcmp.ge.f32.partialorder %v747, 0.0
      %vm765 = vcmp.ge.f32.partialorder %v749, 0.0
      %vm766 = vcmp.ge.f32.partialorder %v751, 0.0
      %vm767 = vcmp.ge.f32.partialorder %v755, 0.0
      %vm768 = vcmp.ge.f32.partialorder %v757, 0.0
      %vm769 = vcmp.ge.f32.partialorder %v759, 0.0
      %vm770 = vcmp.ge.f32.partialorder %v761, 0.0
      %771 = vset.pattern.permute.xlu0 1
      %772 = vperm.xlu0 %771, %v303
      %v773 = vpop.permute.xlu0 %772
      %775 = vset.pattern.permute.xlu0 1
      %776 = vperm.xlu0 %775, %v304
      %v777 = vpop.permute.xlu0 %776
      %779 = vset.pattern.permute.xlu0 1
      %780 = vperm.xlu0 %779, %v305
      %v781 = vpop.permute.xlu0 %780
      %783 = vset.pattern.permute.xlu0 1
      %784 = vperm.xlu0 %783, %v306
      %v785 = vpop.permute.xlu0 %784
      %v787 = vmul.f32 %v745, %v773
      %v788 = vmul.f32 %v747, %v773
      %v789 = vmul.f32 %v749, %v777
      %v790 = vmul.f32 %v751, %v777
      %v791 = vmul.f32 %v755, %v781
      %v792 = vmul.f32 %v757, %v781
      %v793 = vmul.f32 %v759, %v785
      %v794 = vmul.f32 %v761, %v785
      %v795 = vsel %vm763, %v745, %v787
      %v796 = vsel %vm764, %v747, %v788
      %v797 = vsel %vm765, %v749, %v789
      %v798 = vsel %vm766, %v751, %v790
      %v799 = vsel %vm767, %v755, %v791
      %v800 = vsel %vm768, %v757, %v792
      %v801 = vsel %vm769, %v759, %v793
      %v802 = vsel %vm770, %v761, %v794
      %803 = vst [vmem:[#allocation2 + $0x8] sm:$0xff] %v795
      %804 = vst [vmem:[#allocation2 + $0x10] sm:$0xff] %v796
      %805 = vst [vmem:[#allocation2 + $0x28] sm:$0xff] %v797
      %806 = vst [vmem:[#allocation2 + $0x30] sm:$0xff] %v798
      %807 = vst [vmem:[#allocation2 + $0x48] sm:$0xff] %v799
      %808 = vst [vmem:[#allocation2 + $0x50] sm:$0xff] %v800
      %809 = vst [vmem:[#allocation2 + $0x68] sm:$0xff] %v801
      %810 = vst [vmem:[#allocation2 + $0x70] sm:$0xff] %v802
      %v811 = vld [vmem:[#allocation2] sm:$0xff]
      %v812 = vld [vmem:[#allocation2 + $0x8] sm:$0xff]
      %v813 = vld [vmem:[#allocation2 + $0x10] sm:$0xff]
      %v814 = vld [vmem:[#allocation2 + $0x20] sm:$0xff]
      %v815 = vld [vmem:[#allocation2 + $0x28] sm:$0xff]
      %v816 = vld [vmem:[#allocation2 + $0x30] sm:$0xff]
      %v817 = vld [vmem:[#allocation2 + $0x40] sm:$0xff]
      %v818 = vld [vmem:[#allocation2 + $0x48] sm:$0xff]
      %v819 = vld [vmem:[#allocation2 + $0x50] sm:$0xff]
      %v820 = vld [vmem:[#allocation2 + $0x60] sm:$0xff]
      %v821 = vld [vmem:[#allocation2 + $0x68] sm:$0xff]
      %v822 = vld [vmem:[#allocation2 + $0x70] sm:$0xff]
      %v823 = vmul.f32 %v811, %v343
      %v824 = vmul.f32 %v812, %v347
      %v825 = vmul.f32 %v813, %v345
      %v826 = vmul.f32 %v814, %v343
      %v827 = vmul.f32 %v815, %v347
      %v828 = vmul.f32 %v816, %v345
      %v829 = vmul.f32 %v817, %v343
      %v830 = vmul.f32 %v818, %v347
      %v831 = vmul.f32 %v819, %v345
      %v832 = vmul.f32 %v820, %v343
      %v833 = vmul.f32 %v821, %v347
      %v834 = vmul.f32 %v822, %v345
      %v835 = vpack.c.bf16 %v826, %v823
      %v836 = vpack.c.bf16 %v827, %v824
      %v837 = vpack.c.bf16 %v828, %v825
      %v838 = vpack.c.bf16 %v832, %v829
      %v839 = vpack.c.bf16 %v833, %v830
      %v840 = vpack.c.bf16 %v834, %v831
      %v847 = vunpack.c.l.b16 %v835
      %v848 = vunpack.c.l.b16 %v836
      %v849 = vunpack.c.l.b16 %v837
      %v850 = vunpack.c.h.b16 %v835
      %v851 = vunpack.c.h.b16 %v836
      %v852 = vunpack.c.h.b16 %v837
      %v853 = vunpack.c.l.b16 %v838
      %v854 = vunpack.c.l.b16 %v839
      %v855 = vunpack.c.l.b16 %v840
      %v856 = vunpack.c.h.b16 %v838
      %v857 = vunpack.c.h.b16 %v839
      %v858 = vunpack.c.h.b16 %v840
      %v859 = vpack.c.b16 %v848, %v847
      %v860 = vpack.c.b16 %v849, %v849
      %v861 = vpack.c.b16 %v851, %v850
      %v862 = vpack.c.b16 %v852, %v852
      %v863 = vpack.c.b16 %v854, %v853
      %v864 = vpack.c.b16 %v855, %v855
      %v865 = vpack.c.b16 %v857, %v856
      %v866 = vpack.c.b16 %v858, %v858
      %867 = vrot.lane.b32.xlu0 %v859, 17
      %v868 = vpop.permute.xlu0 %867
      %869 = vrot.lane.b32.xlu0 %v860, 17
      %v870 = vpop.permute.xlu0 %869
      %871 = vrot.lane.b32.xlu0 %v861, 17
      %v872 = vpop.permute.xlu0 %871
      %873 = vrot.lane.b32.xlu0 %v862, 17
      %v874 = vpop.permute.xlu0 %873
      %875 = vrot.lane.b32.xlu0 %v863, 17
      %v876 = vpop.permute.xlu0 %875
      %877 = vrot.lane.b32.xlu0 %v864, 17
      %v878 = vpop.permute.xlu0 %877
      %879 = vrot.lane.b32.xlu0 %v865, 17
      %v880 = vpop.permute.xlu0 %879
      %881 = vrot.lane.b32.xlu0 %v866, 17
      %v882 = vpop.permute.xlu0 %881
      %v883 = vrot.slane %v868, 4
      %v884 = vrot.slane %v870, 4
      %v885 = vrot.slane %v872, 4
      %v886 = vrot.slane %v874, 4
      %v887 = vrot.slane %v876, 4
      %v888 = vrot.slane %v878, 4
      %v889 = vrot.slane %v880, 4
      %v890 = vrot.slane %v882, 4
      %v891 = vsel %vm371, %v883, %v884
      %v892 = vsel %vm373, %v868, %v891
      %v893 = vsel %vm371, %v885, %v886
      %v894 = vsel %vm373, %v872, %v893
      %v895 = vsel %vm371, %v887, %v888
      %v896 = vsel %vm373, %v876, %v895
      %v897 = vsel %vm371, %v889, %v890
      %v898 = vsel %vm373, %v880, %v897
      %903 = vst [vmem:[#allocation4] sm:$0xff] %v892
      %904 = vst [vmem:[#allocation4 + $0x8] sm:$0xff] %v894
      %905 = vst [vmem:[#allocation4 + $0x10] sm:$0xff] %v896
      %906 = vst [vmem:[#allocation4 + $0x18] sm:$0xff] %v898
      %v907 = vld [vmem:[#allocation2] sm:$0xff]
      %v908 = vld [vmem:[#allocation2 + $0x8] sm:$0xff]
      %v909 = vld [vmem:[#allocation2 + $0x10] sm:$0xff]
      %v910 = vld [vmem:[#allocation2 + $0x20] sm:$0xff]
      %v911 = vld [vmem:[#allocation2 + $0x28] sm:$0xff]
      %v912 = vld [vmem:[#allocation2 + $0x30] sm:$0xff]
      %v913 = vld [vmem:[#allocation2 + $0x40] sm:$0xff]
      %v914 = vld [vmem:[#allocation2 + $0x48] sm:$0xff]
      %v915 = vld [vmem:[#allocation2 + $0x50] sm:$0xff]
      %v916 = vld [vmem:[#allocation2 + $0x60] sm:$0xff]
      %v917 = vld [vmem:[#allocation2 + $0x68] sm:$0xff]
      %v918 = vld [vmem:[#allocation2 + $0x70] sm:$0xff]
      %v919 = vpack.c.bf16 %v910, %v907
      %v920 = vpack.c.bf16 %v911, %v908
      %v921 = vpack.c.bf16 %v912, %v909
      %v922 = vpack.c.bf16 %v916, %v913
      %v923 = vpack.c.bf16 %v917, %v914
      %v924 = vpack.c.bf16 %v918, %v915
      %v931 = vunpack.c.l.b16 %v919
      %v932 = vunpack.c.l.b16 %v920
      %v933 = vunpack.c.l.b16 %v921
      %v934 = vunpack.c.h.b16 %v919
      %v935 = vunpack.c.h.b16 %v920
      %v936 = vunpack.c.h.b16 %v921
      %v937 = vunpack.c.l.b16 %v922
      %v938 = vunpack.c.l.b16 %v923
      %v939 = vunpack.c.l.b16 %v924
      %v940 = vunpack.c.h.b16 %v922
      %v941 = vunpack.c.h.b16 %v923
      %v942 = vunpack.c.h.b16 %v924
      %v943 = vpack.c.b16 %v932, %v931
      %v944 = vpack.c.b16 %v933, %v933
      %v945 = vpack.c.b16 %v935, %v934
      %v946 = vpack.c.b16 %v936, %v936
      %v947 = vpack.c.b16 %v938, %v937
      %v948 = vpack.c.b16 %v939, %v939
      %v949 = vpack.c.b16 %v941, %v940
      %v950 = vpack.c.b16 %v942, %v942
      %951 = vrot.lane.b32.xlu0 %v943, 16
      %v952 = vpop.permute.xlu0 %951
      %953 = vrot.lane.b32.xlu0 %v944, 16
      %v954 = vpop.permute.xlu0 %953
      %955 = vrot.lane.b32.xlu0 %v945, 16
      %v956 = vpop.permute.xlu0 %955
      %957 = vrot.lane.b32.xlu0 %v946, 16
      %v958 = vpop.permute.xlu0 %957
      %959 = vrot.lane.b32.xlu0 %v947, 16
      %v960 = vpop.permute.xlu0 %959
      %961 = vrot.lane.b32.xlu0 %v948, 16
      %v962 = vpop.permute.xlu0 %961
      %963 = vrot.lane.b32.xlu0 %v949, 16
      %v964 = vpop.permute.xlu0 %963
      %965 = vrot.lane.b32.xlu0 %v950, 16
      %v966 = vpop.permute.xlu0 %965
      %v967 = vrot.slane %v952, 4
      %v968 = vrot.slane %v954, 4
      %v969 = vrot.slane %v956, 4
      %v970 = vrot.slane %v958, 4
      %v971 = vrot.slane %v960, 4
      %v972 = vrot.slane %v962, 4
      %v973 = vrot.slane %v964, 4
      %v974 = vrot.slane %v966, 4
      %v975 = vsel %vm371, %v967, %v968
      %v976 = vsel %vm400, %v952, %v975
      %v977 = vsel %vm371, %v969, %v970
      %v978 = vsel %vm400, %v956, %v977
      %v979 = vsel %vm371, %v971, %v972
      %v980 = vsel %vm400, %v960, %v979
      %v981 = vsel %vm371, %v973, %v974
      %v982 = vsel %vm400, %v964, %v981
      %987 = vst [vmem:[#allocation4 + $0x20] sm:$0xff] %v976
      %988 = vst [vmem:[#allocation4 + $0x28] sm:$0xff] %v978
      %989 = vst [vmem:[#allocation4 + $0x30] sm:$0xff] %v980
      %990 = vst [vmem:[#allocation4 + $0x38] sm:$0xff] %v982
      %v991 = vld [vmem:[#allocation2] sm:$0xff]
      %v992 = vld [vmem:[#allocation2 + $0x8] sm:$0xff]
      %v993 = vld [vmem:[#allocation2 + $0x10] sm:$0xff]
      %v994 = vld [vmem:[#allocation2 + $0x20] sm:$0xff]
      %v995 = vld [vmem:[#allocation2 + $0x28] sm:$0xff]
      %v996 = vld [vmem:[#allocation2 + $0x30] sm:$0xff]
      %v997 = vld [vmem:[#allocation2 + $0x40] sm:$0xff]
      %v998 = vld [vmem:[#allocation2 + $0x48] sm:$0xff]
      %v999 = vld [vmem:[#allocation2 + $0x50] sm:$0xff]
      %v1000 = vld [vmem:[#allocation2 + $0x60] sm:$0xff]
      %v1001 = vld [vmem:[#allocation2 + $0x68] sm:$0xff]
      %v1002 = vld [vmem:[#allocation2 + $0x70] sm:$0xff]
      %v1003 = vmul.f32 %v991, %v417
      %v1004 = vmul.f32 %v992, %v421
      %v1005 = vmul.f32 %v993, %v419
      %v1006 = vmul.f32 %v994, %v417
      %v1007 = vmul.f32 %v995, %v421
      %v1008 = vmul.f32 %v996, %v419
      %v1009 = vmul.f32 %v997, %v417
      %v1010 = vmul.f32 %v998, %v421
      %v1011 = vmul.f32 %v999, %v419
      %v1012 = vmul.f32 %v1000, %v417
      %v1013 = vmul.f32 %v1001, %v421
      %v1014 = vmul.f32 %v1002, %v419
      %v1015 = vpack.c.bf16 %v1006, %v1003
      %v1016 = vpack.c.bf16 %v1007, %v1004
      %v1017 = vpack.c.bf16 %v1008, %v1005
      %v1018 = vpack.c.bf16 %v1012, %v1009
      %v1019 = vpack.c.bf16 %v1013, %v1010
      %v1020 = vpack.c.bf16 %v1014, %v1011
      %v1027 = vunpack.c.l.b16 %v1015
      %v1028 = vunpack.c.l.b16 %v1016
      %v1029 = vunpack.c.l.b16 %v1017
      %v1030 = vunpack.c.h.b16 %v1015
      %v1031 = vunpack.c.h.b16 %v1016
      %v1032 = vunpack.c.h.b16 %v1017
      %v1033 = vunpack.c.l.b16 %v1018
      %v1034 = vunpack.c.l.b16 %v1019
      %v1035 = vunpack.c.l.b16 %v1020
      %v1036 = vunpack.c.h.b16 %v1018
      %v1037 = vunpack.c.h.b16 %v1019
      %v1038 = vunpack.c.h.b16 %v1020
      %v1039 = vpack.c.b16 %v1028, %v1027
      %v1040 = vpack.c.b16 %v1029, %v1029
      %v1041 = vpack.c.b16 %v1031, %v1030
      %v1042 = vpack.c.b16 %v1032, %v1032
      %v1043 = vpack.c.b16 %v1034, %v1033
      %v1044 = vpack.c.b16 %v1035, %v1035
      %v1045 = vpack.c.b16 %v1037, %v1036
      %v1046 = vpack.c.b16 %v1038, %v1038
      %1047 = vrot.lane.b32.xlu0 %v1039, 15
      %v1048 = vpop.permute.xlu0 %1047
      %1049 = vrot.lane.b32.xlu0 %v1040, 15
      %v1050 = vpop.permute.xlu0 %1049
      %1051 = vrot.lane.b32.xlu0 %v1041, 15
      %v1052 = vpop.permute.xlu0 %1051
      %1053 = vrot.lane.b32.xlu0 %v1042, 15
      %v1054 = vpop.permute.xlu0 %1053
      %1055 = vrot.lane.b32.xlu0 %v1043, 15
      %v1056 = vpop.permute.xlu0 %1055
      %1057 = vrot.lane.b32.xlu0 %v1044, 15
      %v1058 = vpop.permute.xlu0 %1057
      %1059 = vrot.lane.b32.xlu0 %v1045, 15
      %v1060 = vpop.permute.xlu0 %1059
      %1061 = vrot.lane.b32.xlu0 %v1046, 15
      %v1062 = vpop.permute.xlu0 %1061
      %v1063 = vrot.slane %v1048, 4
      %v1064 = vrot.slane %v1050, 4
      %v1065 = vrot.slane %v1052, 4
      %v1066 = vrot.slane %v1054, 4
      %v1067 = vrot.slane %v1056, 4
      %v1068 = vrot.slane %v1058, 4
      %v1069 = vrot.slane %v1060, 4
      %v1070 = vrot.slane %v1062, 4
      %v1071 = vsel %vm371, %v1063, %v1064
      %v1072 = vsel %vm448, %v1048, %v1071
      %v1073 = vsel %vm371, %v1065, %v1066
      %v1074 = vsel %vm448, %v1052, %v1073
      %v1075 = vsel %vm371, %v1067, %v1068
      %v1076 = vsel %vm448, %v1056, %v1075
      %v1077 = vsel %vm371, %v1069, %v1070
      %v1078 = vsel %vm448, %v1060, %v1077
      %1083 = vst [vmem:[#allocation4 + $0x40] sm:$0xff] %v1072
      %1084 = vst [vmem:[#allocation4 + $0x48] sm:$0xff] %v1074
      %1085 = vst [vmem:[#allocation4 + $0x50] sm:$0xff] %v1076
      %1086 = vst [vmem:[#allocation4 + $0x58] sm:$0xff] %v1078
      %v1087 = vld [vmem:[#allocation2] sm:$0xff]
      %v1088 = vld [vmem:[#allocation2 + $0x8] sm:$0xff]
      %v1089 = vld [vmem:[#allocation2 + $0x10] sm:$0xff]
      %v1090 = vld [vmem:[#allocation2 + $0x20] sm:$0xff]
      %v1091 = vld [vmem:[#allocation2 + $0x28] sm:$0xff]
      %v1092 = vld [vmem:[#allocation2 + $0x30] sm:$0xff]
      %v1093 = vld [vmem:[#allocation2 + $0x40] sm:$0xff]
      %v1094 = vld [vmem:[#allocation2 + $0x48] sm:$0xff]
      %v1095 = vld [vmem:[#allocation2 + $0x50] sm:$0xff]
      %v1096 = vld [vmem:[#allocation2 + $0x60] sm:$0xff]
      %v1097 = vld [vmem:[#allocation2 + $0x68] sm:$0xff]
      %v1098 = vld [vmem:[#allocation2 + $0x70] sm:$0xff]
      %v1099 = vmul.f32 %v1087, %v456
      %v1100 = vmul.f32 %v1088, %v460
      %v1101 = vmul.f32 %v1089, %v458
      %v1102 = vmul.f32 %v1090, %v456
      %v1103 = vmul.f32 %v1091, %v460
      %v1104 = vmul.f32 %v1092, %v458
      %v1105 = vmul.f32 %v1093, %v456
      %v1106 = vmul.f32 %v1094, %v460
      %v1107 = vmul.f32 %v1095, %v458
      %v1108 = vmul.f32 %v1096, %v456
      %v1109 = vmul.f32 %v1097, %v460
      %v1110 = vmul.f32 %v1098, %v458
      %v1111 = vpack.c.bf16 %v1102, %v1099
      %v1112 = vpack.c.bf16 %v1103, %v1100
      %v1113 = vpack.c.bf16 %v1104, %v1101
      %v1114 = vpack.c.bf16 %v1108, %v1105
      %v1115 = vpack.c.bf16 %v1109, %v1106
      %v1116 = vpack.c.bf16 %v1110, %v1107
      %v1123 = vunpack.c.l.b16 %v1111
      %v1124 = vunpack.c.l.b16 %v1112
      %v1125 = vunpack.c.l.b16 %v1113
      %v1126 = vunpack.c.h.b16 %v1111
      %v1127 = vunpack.c.h.b16 %v1112
      %v1128 = vunpack.c.h.b16 %v1113
      %v1129 = vunpack.c.l.b16 %v1114
      %v1130 = vunpack.c.l.b16 %v1115
      %v1131 = vunpack.c.l.b16 %v1116
      %v1132 = vunpack.c.h.b16 %v1114
      %v1133 = vunpack.c.h.b16 %v1115
      %v1134 = vunpack.c.h.b16 %v1116
      %v1135 = vpack.c.b16 %v1124, %v1123
      %v1136 = vpack.c.b16 %v1125, %v1125
      %v1137 = vpack.c.b16 %v1127, %v1126
      %v1138 = vpack.c.b16 %v1128, %v1128
      %v1139 = vpack.c.b16 %v1130, %v1129
      %v1140 = vpack.c.b16 %v1131, %v1131
      %v1141 = vpack.c.b16 %v1133, %v1132
      %v1142 = vpack.c.b16 %v1134, %v1134
      %1143 = vrot.lane.b32.xlu0 %v1135, 1
      %v1144 = vpop.permute.xlu0 %1143
      %1145 = vrot.lane.b32.xlu0 %v1136, 1
      %v1146 = vpop.permute.xlu0 %1145
      %1147 = vrot.lane.b32.xlu0 %v1137, 1
      %v1148 = vpop.permute.xlu0 %1147
      %1149 = vrot.lane.b32.xlu0 %v1138, 1
      %v1150 = vpop.permute.xlu0 %1149
      %1151 = vrot.lane.b32.xlu0 %v1139, 1
      %v1152 = vpop.permute.xlu0 %1151
      %1153 = vrot.lane.b32.xlu0 %v1140, 1
      %v1154 = vpop.permute.xlu0 %1153
      %1155 = vrot.lane.b32.xlu0 %v1141, 1
      %v1156 = vpop.permute.xlu0 %1155
      %1157 = vrot.lane.b32.xlu0 %v1142, 1
      %v1158 = vpop.permute.xlu0 %1157
      %v1159 = vrot.slane %v1144, 4
      %v1160 = vrot.slane %v1146, 4
      %v1161 = vrot.slane %v1148, 4
      %v1162 = vrot.slane %v1150, 4
      %v1163 = vrot.slane %v1152, 4
      %v1164 = vrot.slane %v1154, 4
      %v1165 = vrot.slane %v1156, 4
      %v1166 = vrot.slane %v1158, 4
      %v1167 = vsel %vm371, %v1159, %v1160
      %v1168 = vsel %vm487, %v1144, %v1167
      %v1169 = vsel %vm371, %v1161, %v1162
      %v1170 = vsel %vm487, %v1148, %v1169
      %v1171 = vsel %vm371, %v1163, %v1164
      %v1172 = vsel %vm487, %v1152, %v1171
      %v1173 = vsel %vm371, %v1165, %v1166
      %v1174 = vsel %vm487, %v1156, %v1173
      %1179 = vst [vmem:[#allocation4 + $0x60] sm:$0xff] %v1168
      %1180 = vst [vmem:[#allocation4 + $0x68] sm:$0xff] %v1170
      %1181 = vst [vmem:[#allocation4 + $0x70] sm:$0xff] %v1172
      %1182 = vst [vmem:[#allocation4 + $0x78] sm:$0xff] %v1174
      %v1183 = vld [vmem:[#allocation2 + $0x8] sm:$0xff]
      %v1184 = vld [vmem:[#allocation2 + $0x10] sm:$0xff]
      %v1185 = vld [vmem:[#allocation2 + $0x28] sm:$0xff]
      %v1186 = vld [vmem:[#allocation2 + $0x30] sm:$0xff]
      %v1187 = vld [vmem:[#allocation2 + $0x48] sm:$0xff]
      %v1188 = vld [vmem:[#allocation2 + $0x50] sm:$0xff]
      %v1189 = vld [vmem:[#allocation2 + $0x68] sm:$0xff]
      %v1190 = vld [vmem:[#allocation2 + $0x70] sm:$0xff]
      %v1191 = vpack.c.bf16 %v1185, %v1183
      %v1192 = vpack.c.bf16 %v1186, %v1184
      %v1193 = vpack.c.bf16 %v1189, %v1187
      %v1194 = vpack.c.bf16 %v1190, %v1188
      %v1199 = vunpack.c.l.b16 %v1191
      %v1200 = vunpack.c.l.b16 %v1192
      %v1201 = vunpack.c.h.b16 %v1191
      %v1202 = vunpack.c.h.b16 %v1192
      %v1203 = vunpack.c.l.b16 %v1193
      %v1204 = vunpack.c.l.b16 %v1194
      %v1205 = vunpack.c.h.b16 %v1193
      %v1206 = vunpack.c.h.b16 %v1194
      %v1207 = vpack.c.b16 %v1200, %v1199
      %v1208 = vpack.c.b16 %v1202, %v1201
      %v1209 = vpack.c.b16 %v1204, %v1203
      %v1210 = vpack.c.b16 %v1206, %v1205
      %1215 = vst [vmem:[#allocation4 + $0x80] sm:$0xff] %v1207
      %1216 = vst [vmem:[#allocation4 + $0x88] sm:$0xff] %v1208
      %1217 = vst [vmem:[#allocation4 + $0x90] sm:$0xff] %v1209
      %1218 = vst [vmem:[#allocation4 + $0x98] sm:$0xff] %v1210
      %v1219 = vld [vmem:[#allocation2 + $0x8] sm:$0xff]
      %v1220 = vld [vmem:[#allocation2 + $0x10] sm:$0xff]
      %v1221 = vld [vmem:[#allocation2 + $0x18] sm:$0xff]
      %v1222 = vld [vmem:[#allocation2 + $0x28] sm:$0xff]
      %v1223 = vld [vmem:[#allocation2 + $0x30] sm:$0xff]
      %v1224 = vld [vmem:[#allocation2 + $0x38] sm:$0xff]
      %v1225 = vld [vmem:[#allocation2 + $0x48] sm:$0xff]
      %v1226 = vld [vmem:[#allocation2 + $0x50] sm:$0xff]
      %v1227 = vld [vmem:[#allocation2 + $0x58] sm:$0xff]
      %v1228 = vld [vmem:[#allocation2 + $0x68] sm:$0xff]
      %v1229 = vld [vmem:[#allocation2 + $0x70] sm:$0xff]
      %v1230 = vld [vmem:[#allocation2 + $0x78] sm:$0xff]
      %v1231 = vmul.f32 %v1219, %v506
      %v1232 = vmul.f32 %v1220, %v510
      %v1233 = vmul.f32 %v1221, %v508
      %v1234 = vmul.f32 %v1222, %v506
      %v1235 = vmul.f32 %v1223, %v510
      %v1236 = vmul.f32 %v1224, %v508
      %v1237 = vmul.f32 %v1225, %v506
      %v1238 = vmul.f32 %v1226, %v510
      %v1239 = vmul.f32 %v1227, %v508
      %v1240 = vmul.f32 %v1228, %v506
      %v1241 = vmul.f32 %v1229, %v510
      %v1242 = vmul.f32 %v1230, %v508
      %v1243 = vpack.c.bf16 %v1234, %v1231
      %v1244 = vpack.c.bf16 %v1235, %v1232
      %v1245 = vpack.c.bf16 %v1236, %v1233
      %v1246 = vpack.c.bf16 %v1240, %v1237
      %v1247 = vpack.c.bf16 %v1241, %v1238
      %v1248 = vpack.c.bf16 %v1242, %v1239
      %v1255 = vunpack.c.l.b16 %v1243
      %v1256 = vunpack.c.l.b16 %v1244
      %v1257 = vunpack.c.l.b16 %v1245
      %v1258 = vunpack.c.h.b16 %v1243
      %v1259 = vunpack.c.h.b16 %v1244
      %v1260 = vunpack.c.h.b16 %v1245
      %v1261 = vunpack.c.l.b16 %v1246
      %v1262 = vunpack.c.l.b16 %v1247
      %v1263 = vunpack.c.l.b16 %v1248
      %v1264 = vunpack.c.h.b16 %v1246
      %v1265 = vunpack.c.h.b16 %v1247
      %v1266 = vunpack.c.h.b16 %v1248
      %v1267 = vpack.c.b16 %v1256, %v1255
      %v1268 = vpack.c.b16 %v1257, %v1257
      %v1269 = vpack.c.b16 %v1259, %v1258
      %v1270 = vpack.c.b16 %v1260, %v1260
      %v1271 = vpack.c.b16 %v1262, %v1261
      %v1272 = vpack.c.b16 %v1263, %v1263
      %v1273 = vpack.c.b16 %v1265, %v1264
      %v1274 = vpack.c.b16 %v1266, %v1266
      %1275 = vrot.lane.b32.xlu0 %v1267, 127
      %v1276 = vpop.permute.xlu0 %1275
      %1277 = vrot.lane.b32.xlu0 %v1268, 127
      %v1278 = vpop.permute.xlu0 %1277
      %1279 = vrot.lane.b32.xlu0 %v1269, 127
      %v1280 = vpop.permute.xlu0 %1279
      %1281 = vrot.lane.b32.xlu0 %v1270, 127
      %v1282 = vpop.permute.xlu0 %1281
      %1283 = vrot.lane.b32.xlu0 %v1271, 127
      %v1284 = vpop.permute.xlu0 %1283
      %1285 = vrot.lane.b32.xlu0 %v1272, 127
      %v1286 = vpop.permute.xlu0 %1285
      %1287 = vrot.lane.b32.xlu0 %v1273, 127
      %v1288 = vpop.permute.xlu0 %1287
      %1289 = vrot.lane.b32.xlu0 %v1274, 127
      %v1290 = vpop.permute.xlu0 %1289
      %v1291 = vrot.slane %v1276, 4
      %v1292 = vrot.slane %v1278, 4
      %v1293 = vrot.slane %v1280, 4
      %v1294 = vrot.slane %v1282, 4
      %v1295 = vrot.slane %v1284, 4
      %v1296 = vrot.slane %v1286, 4
      %v1297 = vrot.slane %v1288, 4
      %v1298 = vrot.slane %v1290, 4
      %v1299 = vsel %vm371, %v1291, %v1292
      %v1300 = vsel %vm537, %v1276, %v1299
      %v1301 = vsel %vm371, %v1293, %v1294
      %v1302 = vsel %vm537, %v1280, %v1301
      %v1303 = vsel %vm371, %v1295, %v1296
      %v1304 = vsel %vm537, %v1284, %v1303
      %v1305 = vsel %vm371, %v1297, %v1298
      %v1306 = vsel %vm537, %v1288, %v1305
      %1311 = vst [vmem:[#allocation4 + $0xa0] sm:$0xff] %v1300
      %1312 = vst [vmem:[#allocation4 + $0xa8] sm:$0xff] %v1302
      %1313 = vst [vmem:[#allocation4 + $0xb0] sm:$0xff] %v1304
      %1314 = vst [vmem:[#allocation4 + $0xb8] sm:$0xff] %v1306
      %v1315 = vld [vmem:[#allocation2 + $0x8] sm:$0xff]
      %v1316 = vld [vmem:[#allocation2 + $0x10] sm:$0xff]
      %v1317 = vld [vmem:[#allocation2 + $0x18] sm:$0xff]
      %v1318 = vld [vmem:[#allocation2 + $0x28] sm:$0xff]
      %v1319 = vld [vmem:[#allocation2 + $0x30] sm:$0xff]
      %v1320 = vld [vmem:[#allocation2 + $0x38] sm:$0xff]
      %v1321 = vld [vmem:[#allocation2 + $0x48] sm:$0xff]
      %v1322 = vld [vmem:[#allocation2 + $0x50] sm:$0xff]
      %v1323 = vld [vmem:[#allocation2 + $0x58] sm:$0xff]
      %v1324 = vld [vmem:[#allocation2 + $0x68] sm:$0xff]
      %v1325 = vld [vmem:[#allocation2 + $0x70] sm:$0xff]
      %v1326 = vld [vmem:[#allocation2 + $0x78] sm:$0xff]
      %v1327 = vmul.f32 %v1315, %v545
      %v1328 = vmul.f32 %v1316, %v549
      %v1329 = vmul.f32 %v1317, %v547
      %v1330 = vmul.f32 %v1318, %v545
      %v1331 = vmul.f32 %v1319, %v549
      %v1332 = vmul.f32 %v1320, %v547
      %v1333 = vmul.f32 %v1321, %v545
      %v1334 = vmul.f32 %v1322, %v549
      %v1335 = vmul.f32 %v1323, %v547
      %v1336 = vmul.f32 %v1324, %v545
      %v1337 = vmul.f32 %v1325, %v549
      %v1338 = vmul.f32 %v1326, %v547
      %v1339 = vpack.c.bf16 %v1330, %v1327
      %v1340 = vpack.c.bf16 %v1331, %v1328
      %v1341 = vpack.c.bf16 %v1332, %v1329
      %v1342 = vpack.c.bf16 %v1336, %v1333
      %v1343 = vpack.c.bf16 %v1337, %v1334
      %v1344 = vpack.c.bf16 %v1338, %v1335
      %v1351 = vunpack.c.l.b16 %v1339
      %v1352 = vunpack.c.l.b16 %v1340
      %v1353 = vunpack.c.l.b16 %v1341
      %v1354 = vunpack.c.h.b16 %v1339
      %v1355 = vunpack.c.h.b16 %v1340
      %v1356 = vunpack.c.h.b16 %v1341
      %v1357 = vunpack.c.l.b16 %v1342
      %v1358 = vunpack.c.l.b16 %v1343
      %v1359 = vunpack.c.l.b16 %v1344
      %v1360 = vunpack.c.h.b16 %v1342
      %v1361 = vunpack.c.h.b16 %v1343
      %v1362 = vunpack.c.h.b16 %v1344
      %v1363 = vpack.c.b16 %v1352, %v1351
      %v1364 = vpack.c.b16 %v1353, %v1353
      %v1365 = vpack.c.b16 %v1355, %v1354
      %v1366 = vpack.c.b16 %v1356, %v1356
      %v1367 = vpack.c.b16 %v1358, %v1357
      %v1368 = vpack.c.b16 %v1359, %v1359
      %v1369 = vpack.c.b16 %v1361, %v1360
      %v1370 = vpack.c.b16 %v1362, %v1362
      %1371 = vrot.lane.b32.xlu0 %v1363, 113
      %v1372 = vpop.permute.xlu0 %1371
      %1373 = vrot.lane.b32.xlu0 %v1364, 113
      %v1374 = vpop.permute.xlu0 %1373
      %1375 = vrot.lane.b32.xlu0 %v1365, 113
      %v1376 = vpop.permute.xlu0 %1375
      %1377 = vrot.lane.b32.xlu0 %v1366, 113
      %v1378 = vpop.permute.xlu0 %1377
      %1379 = vrot.lane.b32.xlu0 %v1367, 113
      %v1380 = vpop.permute.xlu0 %1379
      %1381 = vrot.lane.b32.xlu0 %v1368, 113
      %v1382 = vpop.permute.xlu0 %1381
      %1383 = vrot.lane.b32.xlu0 %v1369, 113
      %v1384 = vpop.permute.xlu0 %1383
      %1385 = vrot.lane.b32.xlu0 %v1370, 113
      %v1386 = vpop.permute.xlu0 %1385
      %v1387 = vrot.slane %v1372, 4
      %v1388 = vrot.slane %v1374, 4
      %v1389 = vrot.slane %v1376, 4
      %v1390 = vrot.slane %v1378, 4
      %v1391 = vrot.slane %v1380, 4
      %v1392 = vrot.slane %v1382, 4
      %v1393 = vrot.slane %v1384, 4
      %v1394 = vrot.slane %v1386, 4
      %v1395 = vsel %vm371, %v1387, %v1388
      %v1396 = vsel %vm576, %v1372, %v1395
      %v1397 = vsel %vm371, %v1389, %v1390
      %v1398 = vsel %vm576, %v1376, %v1397
      %v1399 = vsel %vm371, %v1391, %v1392
      %v1400 = vsel %vm576, %v1380, %v1399
      %v1401 = vsel %vm371, %v1393, %v1394
      %v1402 = vsel %vm576, %v1384, %v1401
      %1407 = vst [vmem:[#allocation4 + $0xc0] sm:$0xff] %v1396
      %1408 = vst [vmem:[#allocation4 + $0xc8] sm:$0xff] %v1398
      %1409 = vst [vmem:[#allocation4 + $0xd0] sm:$0xff] %v1400
      %1410 = vst [vmem:[#allocation4 + $0xd8] sm:$0xff] %v1402
      %v1411 = vld [vmem:[#allocation2 + $0x8] sm:$0xff]
      %v1412 = vld [vmem:[#allocation2 + $0x10] sm:$0xff]
      %v1413 = vld [vmem:[#allocation2 + $0x18] sm:$0xff]
      %v1414 = vld [vmem:[#allocation2 + $0x28] sm:$0xff]
      %v1415 = vld [vmem:[#allocation2 + $0x30] sm:$0xff]
      %v1416 = vld [vmem:[#allocation2 + $0x38] sm:$0xff]
      %v1417 = vld [vmem:[#allocation2 + $0x48] sm:$0xff]
      %v1418 = vld [vmem:[#allocation2 + $0x50] sm:$0xff]
      %v1419 = vld [vmem:[#allocation2 + $0x58] sm:$0xff]
      %v1420 = vld [vmem:[#allocation2 + $0x68] sm:$0xff]
      %v1421 = vld [vmem:[#allocation2 + $0x70] sm:$0xff]
      %v1422 = vld [vmem:[#allocation2 + $0x78] sm:$0xff]
      %v1423 = vpack.c.bf16 %v1414, %v1411
      %v1424 = vpack.c.bf16 %v1415, %v1412
      %v1425 = vpack.c.bf16 %v1416, %v1413
      %v1426 = vpack.c.bf16 %v1420, %v1417
      %v1427 = vpack.c.bf16 %v1421, %v1418
      %v1428 = vpack.c.bf16 %v1422, %v1419
      %v1435 = vunpack.c.l.b16 %v1423
      %v1436 = vunpack.c.l.b16 %v1424
      %v1437 = vunpack.c.l.b16 %v1425
      %v1438 = vunpack.c.h.b16 %v1423
      %v1439 = vunpack.c.h.b16 %v1424
      %v1440 = vunpack.c.h.b16 %v1425
      %v1441 = vunpack.c.l.b16 %v1426
      %v1442 = vunpack.c.l.b16 %v1427
      %v1443 = vunpack.c.l.b16 %v1428
      %v1444 = vunpack.c.h.b16 %v1426
      %v1445 = vunpack.c.h.b16 %v1427
      %v1446 = vunpack.c.h.b16 %v1428
      %v1447 = vpack.c.b16 %v1436, %v1435
      %v1448 = vpack.c.b16 %v1437, %v1437
      %v1449 = vpack.c.b16 %v1439, %v1438
      %v1450 = vpack.c.b16 %v1440, %v1440
      %v1451 = vpack.c.b16 %v1442, %v1441
      %v1452 = vpack.c.b16 %v1443, %v1443
      %v1453 = vpack.c.b16 %v1445, %v1444
      %v1454 = vpack.c.b16 %v1446, %v1446
      %1455 = vrot.lane.b32.xlu0 %v1447, 112
      %v1456 = vpop.permute.xlu0 %1455
      %1457 = vrot.lane.b32.xlu0 %v1448, 112
      %v1458 = vpop.permute.xlu0 %1457
      %1459 = vrot.lane.b32.xlu0 %v1449, 112
      %v1460 = vpop.permute.xlu0 %1459
      %1461 = vrot.lane.b32.xlu0 %v1450, 112
      %v1462 = vpop.permute.xlu0 %1461
      %1463 = vrot.lane.b32.xlu0 %v1451, 112
      %v1464 = vpop.permute.xlu0 %1463
      %1465 = vrot.lane.b32.xlu0 %v1452, 112
      %v1466 = vpop.permute.xlu0 %1465
      %1467 = vrot.lane.b32.xlu0 %v1453, 112
      %v1468 = vpop.permute.xlu0 %1467
      %1469 = vrot.lane.b32.xlu0 %v1454, 112
      %v1470 = vpop.permute.xlu0 %1469
      %v1471 = vrot.slane %v1456, 4
      %v1472 = vrot.slane %v1458, 4
      %v1473 = vrot.slane %v1460, 4
      %v1474 = vrot.slane %v1462, 4
      %v1475 = vrot.slane %v1464, 4
      %v1476 = vrot.slane %v1466, 4
      %v1477 = vrot.slane %v1468, 4
      %v1478 = vrot.slane %v1470, 4
      %v1479 = vsel %vm371, %v1471, %v1472
      %v1480 = vsel %vm603, %v1456, %v1479
      %v1481 = vsel %vm371, %v1473, %v1474
      %v1482 = vsel %vm603, %v1460, %v1481
      %v1483 = vsel %vm371, %v1475, %v1476
      %v1484 = vsel %vm603, %v1464, %v1483
      %v1485 = vsel %vm371, %v1477, %v1478
      %v1486 = vsel %vm603, %v1468, %v1485
      %1491 = vst [vmem:[#allocation4 + $0xe0] sm:$0xff] %v1480
      %1492 = vst [vmem:[#allocation4 + $0xe8] sm:$0xff] %v1482
      %1493 = vst [vmem:[#allocation4 + $0xf0] sm:$0xff] %v1484
      %1494 = vst [vmem:[#allocation4 + $0xf8] sm:$0xff] %v1486
      %v1495 = vld [vmem:[#allocation2 + $0x8] sm:$0xff]
      %v1496 = vld [vmem:[#allocation2 + $0x10] sm:$0xff]
      %v1497 = vld [vmem:[#allocation2 + $0x18] sm:$0xff]
      %v1498 = vld [vmem:[#allocation2 + $0x28] sm:$0xff]
      %v1499 = vld [vmem:[#allocation2 + $0x30] sm:$0xff]
      %v1500 = vld [vmem:[#allocation2 + $0x38] sm:$0xff]
      %v1501 = vld [vmem:[#allocation2 + $0x48] sm:$0xff]
      %v1502 = vld [vmem:[#allocation2 + $0x50] sm:$0xff]
      %v1503 = vld [vmem:[#allocation2 + $0x58] sm:$0xff]
      %v1504 = vld [vmem:[#allocation2 + $0x68] sm:$0xff]
      %v1505 = vld [vmem:[#allocation2 + $0x70] sm:$0xff]
      %v1506 = vld [vmem:[#allocation2 + $0x78] sm:$0xff]
      %v1507 = vmul.f32 %v1495, %v611
      %v1508 = vmul.f32 %v1496, %v615
      %v1509 = vmul.f32 %v1497, %v613
      %v1510 = vmul.f32 %v1498, %v611
      %v1511 = vmul.f32 %v1499, %v615
      %v1512 = vmul.f32 %v1500, %v613
      %v1513 = vmul.f32 %v1501, %v611
      %v1514 = vmul.f32 %v1502, %v615
      %v1515 = vmul.f32 %v1503, %v613
      %v1516 = vmul.f32 %v1504, %v611
      %v1517 = vmul.f32 %v1505, %v615
      %v1518 = vmul.f32 %v1506, %v613
      %v1519 = vpack.c.bf16 %v1510, %v1507
      %v1520 = vpack.c.bf16 %v1511, %v1508
      %v1521 = vpack.c.bf16 %v1512, %v1509
      %v1522 = vpack.c.bf16 %v1516, %v1513
      %v1523 = vpack.c.bf16 %v1517, %v1514
      %v1524 = vpack.c.bf16 %v1518, %v1515
      %v1531 = vunpack.c.l.b16 %v1519
      %v1532 = vunpack.c.l.b16 %v1520
      %v1533 = vunpack.c.l.b16 %v1521
      %v1534 = vunpack.c.h.b16 %v1519
      %v1535 = vunpack.c.h.b16 %v1520
      %v1536 = vunpack.c.h.b16 %v1521
      %v1537 = vunpack.c.l.b16 %v1522
      %v1538 = vunpack.c.l.b16 %v1523
      %v1539 = vunpack.c.l.b16 %v1524
      %v1540 = vunpack.c.h.b16 %v1522
      %v1541 = vunpack.c.h.b16 %v1523
      %v1542 = vunpack.c.h.b16 %v1524
      %v1543 = vpack.c.b16 %v1532, %v1531
      %v1544 = vpack.c.b16 %v1533, %v1533
      %v1545 = vpack.c.b16 %v1535, %v1534
      %v1546 = vpack.c.b16 %v1536, %v1536
      %v1547 = vpack.c.b16 %v1538, %v1537
      %v1548 = vpack.c.b16 %v1539, %v1539
      %v1549 = vpack.c.b16 %v1541, %v1540
      %v1550 = vpack.c.b16 %v1542, %v1542
      %1551 = vrot.lane.b32.xlu0 %v1543, 111
      %v1552 = vpop.permute.xlu0 %1551
      %1553 = vrot.lane.b32.xlu0 %v1544, 111
      %v1554 = vpop.permute.xlu0 %1553
      %1555 = vrot.lane.b32.xlu0 %v1545, 111
      %v1556 = vpop.permute.xlu0 %1555
      %1557 = vrot.lane.b32.xlu0 %v1546, 111
      %v1558 = vpop.permute.xlu0 %1557
      %1559 = vrot.lane.b32.xlu0 %v1547, 111
      %v1560 = vpop.permute.xlu0 %1559
      %1561 = vrot.lane.b32.xlu0 %v1548, 111
      %v1562 = vpop.permute.xlu0 %1561
      %1563 = vrot.lane.b32.xlu0 %v1549, 111
      %v1564 = vpop.permute.xlu0 %1563
      %1565 = vrot.lane.b32.xlu0 %v1550, 111
      %v1566 = vpop.permute.xlu0 %1565
      %v1567 = vrot.slane %v1552, 4
      %v1568 = vrot.slane %v1554, 4
      %v1569 = vrot.slane %v1556, 4
      %v1570 = vrot.slane %v1558, 4
      %v1571 = vrot.slane %v1560, 4
      %v1572 = vrot.slane %v1562, 4
      %v1573 = vrot.slane %v1564, 4
      %v1574 = vrot.slane %v1566, 4
      %v1575 = vsel %vm371, %v1567, %v1568
      %v1576 = vsel %vm640, %v1552, %v1575
      %v1577 = vsel %vm371, %v1569, %v1570
      %v1578 = vsel %vm640, %v1556, %v1577
      %v1579 = vsel %vm371, %v1571, %v1572
      %v1580 = vsel %vm640, %v1560, %v1579
      %v1581 = vsel %vm371, %v1573, %v1574
      %v1582 = vsel %vm640, %v1564, %v1581
      %1587 = vst [vmem:[#allocation4 + $0x100] sm:$0xff] %v1576
      %1588 = vst [vmem:[#allocation4 + $0x108] sm:$0xff] %v1578
      %1589 = vst [vmem:[#allocation4 + $0x110] sm:$0xff] %v1580
      %1590 = vst [vmem:[#allocation4 + $0x118] sm:$0xff] %v1582
      %v1591 = vld [vmem:[%s4] sm:$0xff]
      %v1592 = vld [vmem:[%s4 + $0x8] sm:$0xf]
      %v1593 = vld [vmem:[%s4 + $0xc] sm:$0xff]
      %v1594 = vld [vmem:[%s4 + $0x14] sm:$0xf]
      %v1595 = vld [vmem:[%s4 + $0x18] sm:$0xff]
      %v1596 = vld [vmem:[%s4 + $0x20] sm:$0xf]
      %v1597 = vld [vmem:[%s4 + $0x24] sm:$0xff]
      %v1598 = vld [vmem:[%s4 + $0x2c] sm:$0xf]
      %v1599 = vld [vmem:[#allocation4] sm:$0xff]
      %v1600 = vld [vmem:[#allocation4 + $0x8] sm:$0xff]
      %v1601 = vld [vmem:[#allocation4 + $0x10] sm:$0xff]
      %v1602 = vld [vmem:[#allocation4 + $0x18] sm:$0xff]
      %v1603 = vld [vmem:[#allocation4 + $0x20] sm:$0xff]
      %v1604 = vld [vmem:[#allocation4 + $0x28] sm:$0xff]
      %v1605 = vld [vmem:[#allocation4 + $0x30] sm:$0xff]
      %v1606 = vld [vmem:[#allocation4 + $0x38] sm:$0xff]
      %v1607 = vld [vmem:[#allocation4 + $0x40] sm:$0xff]
      %v1608 = vld [vmem:[#allocation4 + $0x48] sm:$0xff]
      %v1609 = vld [vmem:[#allocation4 + $0x50] sm:$0xff]
      %v1610 = vld [vmem:[#allocation4 + $0x58] sm:$0xff]
      %v1611 = vld [vmem:[#allocation4 + $0x60] sm:$0xff]
      %v1612 = vld [vmem:[#allocation4 + $0x68] sm:$0xff]
      %v1613 = vld [vmem:[#allocation4 + $0x70] sm:$0xff]
      %v1614 = vld [vmem:[#allocation4 + $0x78] sm:$0xff]
      %v1615 = vld [vmem:[#allocation4 + $0x80] sm:$0xff]
      %v1616 = vld [vmem:[#allocation4 + $0x88] sm:$0xff]
      %v1617 = vld [vmem:[#allocation4 + $0x90] sm:$0xff]
      %v1618 = vld [vmem:[#allocation4 + $0x98] sm:$0xff]
      %v1619 = vld [vmem:[#allocation4 + $0xa0] sm:$0xff]
      %v1620 = vld [vmem:[#allocation4 + $0xa8] sm:$0xff]
      %v1621 = vld [vmem:[#allocation4 + $0xb0] sm:$0xff]
      %v1622 = vld [vmem:[#allocation4 + $0xb8] sm:$0xff]
      %v1623 = vld [vmem:[#allocation4 + $0xc0] sm:$0xff]
      %v1624 = vld [vmem:[#allocation4 + $0xc8] sm:$0xff]
      %v1625 = vld [vmem:[#allocation4 + $0xd0] sm:$0xff]
      %v1626 = vld [vmem:[#allocation4 + $0xd8] sm:$0xff]
      %v1627 = vld [vmem:[#allocation4 + $0xe0] sm:$0xff]
      %v1628 = vld [vmem:[#allocation4 + $0xe8] sm:$0xff]
      %v1629 = vld [vmem:[#allocation4 + $0xf0] sm:$0xff]
      %v1630 = vld [vmem:[#allocation4 + $0xf8] sm:$0xff]
      %v1631 = vld [vmem:[#allocation4 + $0x100] sm:$0xff]
      %v1632 = vld [vmem:[#allocation4 + $0x108] sm:$0xff]
      %v1633 = vld [vmem:[#allocation4 + $0x110] sm:$0xff]
      %v1634 = vld [vmem:[#allocation4 + $0x118] sm:$0xff]
      %1635 = vset.pattern.permute.xlu0 2
      %1636 = vperm.xlu0 %1635, %v303
      %v1637 = vpop.permute.xlu0 %1636
      %1639 = vset.pattern.permute.xlu0 2
      %1640 = vperm.xlu0 %1639, %v304
      %v1641 = vpop.permute.xlu0 %1640
      %1643 = vset.pattern.permute.xlu0 2
      %1644 = vperm.xlu0 %1643, %v305
      %v1645 = vpop.permute.xlu0 %1644
      %1647 = vset.pattern.permute.xlu0 2
      %1648 = vperm.xlu0 %1647, %v306
      %v1649 = vpop.permute.xlu0 %1648
      %v1659 = vunpack.c.l.b16 %v1591
      %v1660 = vunpack.c.h.b16 %v1591
      %v1661 = vunpack.c.l.b16 %v1592
      %v1662 = vunpack.c.l.b16 %v1593
      %v1663 = vunpack.c.h.b16 %v1593
      %v1664 = vunpack.c.l.b16 %v1594
      %v1665 = vunpack.c.l.b16 %v1595
      %v1666 = vunpack.c.h.b16 %v1595
      %v1667 = vunpack.c.l.b16 %v1596
      %v1668 = vunpack.c.l.b16 %v1597
      %v1669 = vunpack.c.h.b16 %v1597
      %v1670 = vunpack.c.l.b16 %v1598
      %v1671 = vpack.c.b16 %v1662, %v1659
      %v1672 = vpack.c.b16 %v1663, %v1660
      %v1673 = vpack.c.b16 %v1664, %v1661
      %v1674 = vpack.c.b16 %v1668, %v1665
      %v1675 = vpack.c.b16 %v1669, %v1666
      %v1676 = vpack.c.b16 %v1670, %v1667
      %v1717 = vunpack.c.l.b16 %v1599
      %v1718 = vunpack.c.h.b16 %v1599
      %v1719 = vunpack.c.l.b16 %v1600
      %v1720 = vunpack.c.h.b16 %v1600
      %v1721 = vunpack.c.l.b16 %v1601
      %v1722 = vunpack.c.h.b16 %v1601
      %v1723 = vunpack.c.l.b16 %v1602
      %v1724 = vunpack.c.h.b16 %v1602
      %v1725 = vunpack.c.l.b16 %v1603
      %v1726 = vunpack.c.h.b16 %v1603
      %v1727 = vunpack.c.l.b16 %v1604
      %v1728 = vunpack.c.h.b16 %v1604
      %v1729 = vunpack.c.l.b16 %v1605
      %v1730 = vunpack.c.h.b16 %v1605
      %v1731 = vunpack.c.l.b16 %v1606
      %v1732 = vunpack.c.h.b16 %v1606
      %v1733 = vunpack.c.l.b16 %v1607
      %v1734 = vunpack.c.h.b16 %v1607
      %v1735 = vunpack.c.l.b16 %v1608
      %v1736 = vunpack.c.h.b16 %v1608
      %v1737 = vunpack.c.l.b16 %v1609
      %v1738 = vunpack.c.h.b16 %v1609
      %v1739 = vunpack.c.l.b16 %v1610
      %v1740 = vunpack.c.h.b16 %v1610
      %v1741 = vunpack.c.l.b16 %v1611
      %v1742 = vunpack.c.h.b16 %v1611
      %v1743 = vunpack.c.l.b16 %v1612
      %v1744 = vunpack.c.h.b16 %v1612
      %v1745 = vunpack.c.l.b16 %v1613
      %v1746 = vunpack.c.h.b16 %v1613
      %v1747 = vunpack.c.l.b16 %v1614
      %v1748 = vunpack.c.h.b16 %v1614
      %v1749 = vunpack.c.l.b16 %v1615
      %v1750 = vunpack.c.h.b16 %v1615
      %v1751 = vunpack.c.l.b16 %v1616
      %v1752 = vunpack.c.h.b16 %v1616
      %v1753 = vunpack.c.l.b16 %v1617
      %v1754 = vunpack.c.h.b16 %v1617
      %v1755 = vunpack.c.l.b16 %v1618
      %v1756 = vunpack.c.h.b16 %v1618
      %v1757 = vunpack.c.l.b16 %v1619
      %v1758 = vunpack.c.h.b16 %v1619
      %v1759 = vunpack.c.l.b16 %v1620
      %v1760 = vunpack.c.h.b16 %v1620
      %v1761 = vunpack.c.l.b16 %v1621
      %v1762 = vunpack.c.h.b16 %v1621
      %v1763 = vunpack.c.l.b16 %v1622
      %v1764 = vunpack.c.h.b16 %v1622
      %v1765 = vunpack.c.l.b16 %v1623
      %v1766 = vunpack.c.h.b16 %v1623
      %v1767 = vunpack.c.l.b16 %v1624
      %v1768 = vunpack.c.h.b16 %v1624
      %v1769 = vunpack.c.l.b16 %v1625
      %v1770 = vunpack.c.h.b16 %v1625
      %v1771 = vunpack.c.l.b16 %v1626
      %v1772 = vunpack.c.h.b16 %v1626
      %v1773 = vunpack.c.l.b16 %v1627
      %v1774 = vunpack.c.h.b16 %v1627
      %v1775 = vunpack.c.l.b16 %v1628
      %v1776 = vunpack.c.h.b16 %v1628
      %v1777 = vunpack.c.l.b16 %v1629
      %v1778 = vunpack.c.h.b16 %v1629
      %v1779 = vunpack.c.l.b16 %v1630
      %v1780 = vunpack.c.h.b16 %v1630
      %v1781 = vunpack.c.l.b16 %v1631
      %v1782 = vunpack.c.h.b16 %v1631
      %v1783 = vunpack.c.l.b16 %v1632
      %v1784 = vunpack.c.h.b16 %v1632
      %v1785 = vunpack.c.l.b16 %v1633
      %v1786 = vunpack.c.h.b16 %v1633
      %v1787 = vunpack.c.l.b16 %v1634
      %v1788 = vunpack.c.h.b16 %v1634
      %v1789 = vpack.c.b16 %v1719, %v1717
      %v1790 = vpack.c.b16 %v1720, %v1718
      %v1791 = vpack.c.b16 %v1723, %v1721
      %v1792 = vpack.c.b16 %v1724, %v1722
      %v1793 = vpack.c.b16 %v1727, %v1725
      %v1794 = vpack.c.b16 %v1728, %v1726
      %v1795 = vpack.c.b16 %v1731, %v1729
      %v1796 = vpack.c.b16 %v1732, %v1730
      %v1797 = vpack.c.b16 %v1735, %v1733
      %v1798 = vpack.c.b16 %v1736, %v1734
      %v1799 = vpack.c.b16 %v1739, %v1737
      %v1800 = vpack.c.b16 %v1740, %v1738
      %v1801 = vpack.c.b16 %v1743, %v1741
      %v1802 = vpack.c.b16 %v1744, %v1742
      %v1803 = vpack.c.b16 %v1747, %v1745
      %v1804 = vpack.c.b16 %v1748, %v1746
      %v1805 = vpack.c.b16 %v1751, %v1749
      %v1806 = vpack.c.b16 %v1752, %v1750
      %v1807 = vpack.c.b16 %v1755, %v1753
      %v1808 = vpack.c.b16 %v1756, %v1754
      %v1809 = vpack.c.b16 %v1759, %v1757
      %v1810 = vpack.c.b16 %v1760, %v1758
      %v1811 = vpack.c.b16 %v1763, %v1761
      %v1812 = vpack.c.b16 %v1764, %v1762
      %v1813 = vpack.c.b16 %v1767, %v1765
      %v1814 = vpack.c.b16 %v1768, %v1766
      %v1815 = vpack.c.b16 %v1771, %v1769
      %v1816 = vpack.c.b16 %v1772, %v1770
      %v1817 = vpack.c.b16 %v1775, %v1773
      %v1818 = vpack.c.b16 %v1776, %v1774
      %v1819 = vpack.c.b16 %v1779, %v1777
      %v1820 = vpack.c.b16 %v1780, %v1778
      %v1821 = vpack.c.b16 %v1783, %v1781
      %v1822 = vpack.c.b16 %v1784, %v1782
      %v1823 = vpack.c.b16 %v1787, %v1785
      %v1824 = vpack.c.b16 %v1788, %v1786
      %vm1861 = vcmask 261120
      %v1863 = vsel %vm1861, %v1673, 0
      %v1866 = vsel %vm1861, %v1676, 0
      %1868 = vmatprep.subr.bf16.mxu0 %v1804
      %1869 = vmatpush1.bf16.msra.mxu0 %v1803
      %1870 = vmatprep.subr.bf16.mxu0 %v1802
      %1871 = vmatpush1.bf16.msra.mxu0 %v1801
      %1872 = vmatprep.subr.bf16.mxu0 %v1800
      %1873 = vmatpush1.bf16.msra.mxu0 %v1799
      %1874 = vmatprep.subr.bf16.mxu0 %v1798
      %1875 = vmatpush1.bf16.msra.mxu0 %v1797
      %1876 = vmatprep.subr.bf16.mxu0 %v1796
      %1877 = vmatpush1.bf16.msra.mxu0 %v1795
      %1878 = vmatprep.subr.bf16.mxu0 %v1794
      %1879 = vmatpush1.bf16.msra.mxu0 %v1793
      %1880 = vmatprep.subr.bf16.mxu0 %v1792
      %1881 = vmatpush1.bf16.msra.mxu0 %v1791
      %1882 = vmatprep.subr.bf16.mxu0 %v1790
      %1883 = vmatpush1.bf16.msra.mxu0 %v1789
      %1884 = vmatprep.subr.bf16.mxu0 %v1820
      %1885 = vmatpush2.bf16.msra.mxu0 %v1819
      %1886 = vmatprep.subr.bf16.mxu0 %v1818
      %1887 = vmatpush2.bf16.msra.mxu0 %v1817
      %1888 = vmatprep.subr.bf16.mxu0 %v1816
      %1889 = vmatpush2.bf16.msra.mxu0 %v1815
      %1890 = vmatprep.subr.bf16.mxu0 %v1814
      %1891 = vmatpush2.bf16.msra.mxu0 %v1813
      %1892 = vmatprep.subr.bf16.mxu0 %v1812
      %1893 = vmatpush2.bf16.msra.mxu0 %v1811
      %1894 = vmatprep.subr.bf16.mxu0 %v1810
      %1895 = vmatpush2.bf16.msra.mxu0 %v1809
      %1896 = vmatprep.subr.bf16.mxu0 %v1808
      %1897 = vmatpush2.bf16.msra.mxu0 %v1807
      %1898 = vmatprep.subr.bf16.mxu0 %v1806
      %1899 = vmatpush2.bf16.msra.mxu0 %v1805
      %1900 = vmatprep.mubr.bf16.mxu0 %v1672
      %1901 = vmatmul.mubr.bf16.gmra.mxu0 %v1671
      %v1902 = vpop.f32.mrf.mxu0
      %v1903 = vadd.f32 %v1637, %v1902
      %v1904 = vpop.f32.mrf.mxu0
      %v1905 = vadd.f32 %v1637, %v1904
      %v1906 = vpop.f32.mrf.mxu0
      %v1907 = vadd.f32 %v1641, %v1906
      %v1908 = vpop.f32.mrf.mxu0
      %v1909 = vadd.f32 %v1641, %v1908
      %1910 = vmatprep.mubr.bf16.mxu0 %v1675
      %1911 = vmatmul.mubr.bf16.gmra.mxu0 %v1674
      %v1912 = vpop.f32.mrf.mxu0
      %v1913 = vadd.f32 %v1645, %v1912
      %v1914 = vpop.f32.mrf.mxu0
      %v1915 = vadd.f32 %v1645, %v1914
      %v1916 = vpop.f32.mrf.mxu0
      %v1917 = vadd.f32 %v1649, %v1916
      %v1918 = vpop.f32.mrf.mxu0
      %v1919 = vadd.f32 %v1649, %v1918
      %1920 = vdwg.mxu0
      %1921 = vmatprep.subr.bf16.mxu0 0
      %1922 = vmatpush1.bf16.msra.mxu0 0
      %1923 = vmatprep.subr.bf16.mxu0 0
      %1924 = vmatpush1.bf16.msra.mxu0 0
      %1925 = vmatprep.subr.bf16.mxu0 0
      %1926 = vmatpush1.bf16.msra.mxu0 0
      %1927 = vmatprep.subr.bf16.mxu0 0
      %1928 = vmatpush1.bf16.msra.mxu0 0
      %1929 = vmatprep.subr.bf16.mxu0 0
      %1930 = vmatpush1.bf16.msra.mxu0 0
      %1931 = vmatprep.subr.bf16.mxu0 0
      %1932 = vmatpush1.bf16.msra.mxu0 0
      %1933 = vmatprep.subr.bf16.mxu0 %v1824
      %1934 = vmatpush1.bf16.msra.mxu0 %v1823
      %1935 = vmatprep.subr.bf16.mxu0 %v1822
      %1936 = vmatpush1.bf16.msra.mxu0 %v1821
      %1937 = vmatprep.subr.bf16.mxu0 0
      %1938 = vmatpush2.bf16.msra.mxu0 0
      %1939 = vmatprep.subr.bf16.mxu0 0
      %1940 = vmatpush2.bf16.msra.mxu0 0
      %1941 = vmatprep.subr.bf16.mxu0 0
      %1942 = vmatpush2.bf16.msra.mxu0 0
      %1943 = vmatprep.subr.bf16.mxu0 0
      %1944 = vmatpush2.bf16.msra.mxu0 0
      %1945 = vmatprep.subr.bf16.mxu0 0
      %1946 = vmatpush2.bf16.msra.mxu0 0
      %1947 = vmatprep.subr.bf16.mxu0 0
      %1948 = vmatpush2.bf16.msra.mxu0 0
      %1949 = vmatprep.subr.bf16.mxu0 0
      %1950 = vmatpush2.bf16.msra.mxu0 0
      %1951 = vmatprep.subr.bf16.mxu0 0
      %1952 = vmatpush2.bf16.msra.mxu0 0
      %1953 = vmatprep.mubr.bf16.mxu0 0
      %1954 = vmatmul.mubr.bf16.gmra.mxu0 %v1863
      %v1955 = vpop.f32.mrf.mxu0
      %v1956 = vadd.f32 %v1903, %v1955
      %v1957 = vpop.f32.mrf.mxu0
      %v1958 = vadd.f32 %v1905, %v1957
      %v1959 = vpop.f32.mrf.mxu0
      %v1960 = vadd.f32 %v1907, %v1959
      %v1961 = vpop.f32.mrf.mxu0
      %v1962 = vadd.f32 %v1909, %v1961
      %1963 = vmatprep.mubr.bf16.mxu0 0
      %1964 = vmatmul.mubr.bf16.gmra.mxu0 %v1866
      %v1965 = vpop.f32.mrf.mxu0
      %v1966 = vadd.f32 %v1913, %v1965
      %v1967 = vpop.f32.mrf.mxu0
      %v1968 = vadd.f32 %v1915, %v1967
      %v1969 = vpop.f32.mrf.mxu0
      %v1970 = vadd.f32 %v1917, %v1969
      %v1971 = vpop.f32.mrf.mxu0
      %v1972 = vadd.f32 %v1919, %v1971
      %1973 = vdwg.mxu0
      %vm1974 = vcmp.ge.f32.partialorder %v1956, 0.0
      %vm1975 = vcmp.ge.f32.partialorder %v1958, 0.0
      %vm1976 = vcmp.ge.f32.partialorder %v1960, 0.0
      %vm1977 = vcmp.ge.f32.partialorder %v1962, 0.0
      %vm1978 = vcmp.ge.f32.partialorder %v1966, 0.0
      %vm1979 = vcmp.ge.f32.partialorder %v1968, 0.0
      %vm1980 = vcmp.ge.f32.partialorder %v1970, 0.0
      %vm1981 = vcmp.ge.f32.partialorder %v1972, 0.0
      %1982 = vset.pattern.permute.xlu0 3
      %1983 = vperm.xlu0 %1982, %v303
      %v1984 = vpop.permute.xlu0 %1983
      %1986 = vset.pattern.permute.xlu0 3
      %1987 = vperm.xlu0 %1986, %v304
      %v1988 = vpop.permute.xlu0 %1987
      %1990 = vset.pattern.permute.xlu0 3
      %1991 = vperm.xlu0 %1990, %v305
      %v1992 = vpop.permute.xlu0 %1991
      %1994 = vset.pattern.permute.xlu0 3
      %1995 = vperm.xlu0 %1994, %v306
      %v1996 = vpop.permute.xlu0 %1995
      %v1998 = vmul.f32 %v1956, %v1984
      %v1999 = vmul.f32 %v1958, %v1984
      %v2000 = vmul.f32 %v1960, %v1988
      %v2001 = vmul.f32 %v1962, %v1988
      %v2002 = vmul.f32 %v1966, %v1992
      %v2003 = vmul.f32 %v1968, %v1992
      %v2004 = vmul.f32 %v1970, %v1996
      %v2005 = vmul.f32 %v1972, %v1996
      %v2006 = vsel %vm1974, %v1956, %v1998
      %v2007 = vsel %vm1975, %v1958, %v1999
      %v2008 = vsel %vm1976, %v1960, %v2000
      %v2009 = vsel %vm1977, %v1962, %v2001
      %v2010 = vsel %vm1978, %v1966, %v2002
      %v2011 = vsel %vm1979, %v1968, %v2003
      %v2012 = vsel %vm1980, %v1970, %v2004
      %v2013 = vsel %vm1981, %v1972, %v2005
      %v2014 = vld [vmem:[%s5] sm:$0xf]
      %v2015 = vld [vmem:[%s5 + $0x4] sm:$0xf]
      %v2016 = vpack.c.bf16 %v2008, %v2006
      %v2017 = vpack.c.bf16 %v2009, %v2007
      %v2018 = vpack.c.bf16 %v2012, %v2010
      %v2019 = vpack.c.bf16 %v2013, %v2011
      %v2022 = vunpack.c.l.b16 %v2014
      %v2023 = vunpack.c.l.b16 %v2015
      %v2024 = vpack.c.b16 %v2023, %v2022
      %v2026 = vsel %vm1861, %v2024, 0
      %2028 = vmatprep.subr.bf16.mxu0 0
      %2029 = vmatpush1.bf16.msra.mxu0 0
      %2030 = vmatprep.subr.bf16.mxu0 0
      %2031 = vmatpush1.bf16.msra.mxu0 0
      %2032 = vmatprep.subr.bf16.mxu0 0
      %2033 = vmatpush1.bf16.msra.mxu0 0
      %2034 = vmatprep.subr.bf16.mxu0 0
      %2035 = vmatpush1.bf16.msra.mxu0 0
      %2036 = vmatprep.subr.bf16.mxu0 0
      %2037 = vmatpush1.bf16.msra.mxu0 0
      %2038 = vmatprep.subr.bf16.mxu0 0
      %2039 = vmatpush1.bf16.msra.mxu0 0
      %2040 = vmatprep.subr.bf16.mxu0 %v2019
      %2041 = vmatpush1.bf16.msra.mxu0 %v2018
      %2042 = vmatprep.subr.bf16.mxu0 %v2017
      %2043 = vmatpush1.bf16.msra.mxu0 %v2016
      %2044 = vmatprep.subr.bf16.mxu0 0
      %2045 = vmatpush2.bf16.msra.mxu0 0
      %2046 = vmatprep.subr.bf16.mxu0 0
      %2047 = vmatpush2.bf16.msra.mxu0 0
      %2048 = vmatprep.subr.bf16.mxu0 0
      %2049 = vmatpush2.bf16.msra.mxu0 0
      %2050 = vmatprep.subr.bf16.mxu0 0
      %2051 = vmatpush2.bf16.msra.mxu0 0
      %2052 = vmatprep.subr.bf16.mxu0 0
      %2053 = vmatpush2.bf16.msra.mxu0 0
      %2054 = vmatprep.subr.bf16.mxu0 0
      %2055 = vmatpush2.bf16.msra.mxu0 0
      %2056 = vmatprep.subr.bf16.mxu0 0
      %2057 = vmatpush2.bf16.msra.mxu0 0
      %2058 = vmatprep.subr.bf16.mxu0 0
      %2059 = vmatpush2.bf16.msra.mxu0 0
      %2060 = vmatprep.mubr.bf16.mxu0 0
      %2061 = vmatmul.mubr.bf16.gmra.mxu0 %v2026
      %v2062 = vpop.f32.mrf.mxu0
      %v2063 = vadd.f32 0.0, %v2062
      %v2064 = vpop.f32.mrf.mxu0
      %v2065 = vadd.f32 0.0, %v2064
      %v2066 = vpop.f32.mrf.mxu0
      %v2067 = vadd.f32 0.0, %v2066
      %v2068 = vpop.f32.mrf.mxu0
      %v2069 = vadd.f32 0.0, %v2068
      %2070 = vdwg.mxu0
      %2071 = vst [vmem:[#allocation2 + $0x8] sm:$0xff] %v2063
      %2072 = vst [vmem:[#allocation2 + $0x10] sm:$0xff] %v2065
      %2073 = vst [vmem:[#allocation2 + $0x28] sm:$0x1] %v2067
      %2074 = vst [vmem:[#allocation2 + $0x30] sm:$0x1] %v2069
      %v2075 = vld [vmem:[#allocation2] ss:$8 sm:$0x7]
      %2076 = vrot.lane.b32.xlu0 %v300, 111
      %v2077 = vpop.permute.xlu0 %2076
      %v2078 = vrot.slane %v2077, 7
      %v2079 = vsel %vm346, %v2078, %v2077
      %v2081 = vmul.f32 %v2075, %v2079
      %s2082 = scalar_lea.vmem [#allocation2], 1
      %v2083 = vld [vmem:[%s2082] ss:$8 sm:$0x7]
      %2085 = vrot.lane.b32.xlu0 %v2083, 127
      %v2086 = vpop.permute.xlu0 %2085
      %v2087 = vrot.slane %v2086, 1
      %v2088 = vsel %vm459, %v2086, %v2087
      %v2090 = vadd.f32 %v2081, %v2088
      %s2091 = scalar_lea.vmem [#allocation2], 2
      %v2092 = vld [vmem:[%s2091] ss:$8 sm:$0x7]
      %2093 = vrot.lane.b32.xlu0 %v302, 113
      %v2094 = vpop.permute.xlu0 %2093
      %v2095 = vrot.slane %v2094, 7
      %v2096 = vsel %vm420, %v2095, %v2094
      %v2098 = vmul.f32 %v2092, %v2096
      %2100 = vrot.lane.b32.xlu0 %v2098, 126
      %v2101 = vpop.permute.xlu0 %2100
      %v2102 = vrot.slane %v2101, 1
      %vm2103 = vcmask 1031168
      %v2104 = vsel %vm2103, %v2101, %v2102
      %v2106 = vadd.f32 %v2090, %v2104
      %s2107 = scalar_lea.vmem [#allocation2], 3
      %v2108 = vld [vmem:[%s2107] ss:$8 sm:$0x7]
      %2109 = vrot.lane.b32.xlu0 %v300, 127
      %v2110 = vpop.permute.xlu0 %2109
      %v2111 = vrot.slane %v2110, 7
      %v2112 = vsel %vm459, %v2111, %v2110
      %v2114 = vmul.f32 %v2108, %v2112
      %2116 = vrot.lane.b32.xlu0 %v2114, 112
      %v2117 = vpop.permute.xlu0 %2116
      %v2118 = vrot.slane %v2117, 1
      %vm2119 = vcmask 916480
      %v2120 = vsel %vm2119, %v2117, %v2118
      %v2122 = vadd.f32 %v2106, %v2120
      %s2123 = scalar_lea.vmem [#allocation2], 12
      %v2124 = vld [vmem:[%s2123] ss:$8 sm:$0x3]
      %2126 = vrot.lane.b32.xlu0 %v2124, 111
      %v2127 = vpop.permute.xlu0 %2126
      %v2128 = vrot.slane %v2127, 7
      %v2129 = vsel %vm346, %v2128, %v2127
      %v2131 = vadd.f32 %v2122, %v2129
      %s2132 = scalar_lea.vmem [#allocation2], 13
      %v2133 = vld [vmem:[%s2132] ss:$8 sm:$0x7]
      %2134 = vrot.lane.b32.xlu0 %v302, 1
      %v2135 = vpop.permute.xlu0 %2134
      %v2136 = vrot.slane %v2135, 7
      %v2137 = vsel %vm509, %v2136, %v2135
      %v2139 = vmul.f32 %v2133, %v2137
      %2141 = vrot.lane.b32.xlu0 %v2139, 110
      %v2142 = vpop.permute.xlu0 %2141
      %v2143 = vrot.slane %v2142, 7
      %vm2144 = vcmask 900096
      %v2145 = vsel %vm2144, %v2143, %v2142
      %v2147 = vadd.f32 %v2131, %v2145
      %s2148 = scalar_lea.vmem [#allocation2], 14
      %v2149 = vld [vmem:[%s2148] ss:$8 sm:$0x7]
      %2150 = vrot.lane.b32.xlu0 %v300, 15
      %v2151 = vpop.permute.xlu0 %2150
      %v2152 = vrot.slane %v2151, 7
      %v2153 = vsel %vm548, %v2152, %v2151
      %v2155 = vmul.f32 %v2149, %v2153
      %2157 = vrot.lane.b32.xlu0 %v2155, 96
      %v2158 = vpop.permute.xlu0 %2157
      %v2159 = vrot.slane %v2158, 7
      %vm2160 = vcmask 785408
      %v2161 = vsel %vm2160, %v2159, %v2158
      %v2163 = vadd.f32 %v2147, %v2161
      %s2164 = scalar_lea.vmem [#allocation2], 15
      %v2165 = vld [vmem:[%s2164] ss:$8 sm:$0x7]
      %2167 = vrot.lane.b32.xlu0 %v2165, 95
      %v2168 = vpop.permute.xlu0 %2167
      %v2169 = vrot.slane %v2168, 7
      %vm2170 = vcmask 777216
      %v2171 = vsel %vm2170, %v2169, %v2168
      %v2173 = vadd.f32 %v2163, %v2171
      %s2174 = scalar_lea.vmem [#allocation2], 40
      %v2175 = vld [vmem:[%s2174] ss:$8 sm:$0x7]
      %2176 = vrot.lane.b32.xlu0 %v302, 17
      %v2177 = vpop.permute.xlu0 %2176
      %v2178 = vrot.slane %v2177, 7
      %v2179 = vsel %vm614, %v2178, %v2177
      %v2181 = vmul.f32 %v2175, %v2179
      %2183 = vrot.lane.b32.xlu0 %v2181, 94
      %v2184 = vpop.permute.xlu0 %2183
      %v2185 = vrot.slane %v2184, 7
      %vm2186 = vcmask 769024
      %v2187 = vsel %vm2186, %v2185, %v2184
      %v2189 = vadd.f32 %v2173, %v2187
      %2191 = vset.pattern.permute.xlu0 4
      %2192 = vperm.xlu0 %2191, %v307
      %v2193 = vpop.permute.xlu0 %2192
      %v2194 = vlaneseq
      %v2195 = vshrl.u32 %v2194, 7
      %v2196 = vsub.s32 0, %v2195
      %v2197 = vrot.slane %v2193, %v2196
      %v2199 = vadd.f32 %v2189, %v2197
      %v2200 = vld [vmem:[%s282] sm:$0x3]
      %2202 = vrot.lane.b32.xlu0 %v2199, 17
      %v2203 = vpop.permute.xlu0 %2202
      %v2204 = vrot.slane %v2203, 1
      %v2205 = vsel %vm614, %v2203, %v2204
      %v2207 = vadd.f32 %v2200, %v2205
      %2208 = vst.msk [vmem:[%s290] sm:$0x3] %vm312, %v2207
      %p2209 = scmp.lt.s32.totalorder %s18, 1
      %s2210 = scalar_select %p2209, %s18, 1
      %s2211 = smul.addr %s2210, 2
      %s2212 = scalar_lea.vmem %s7, %s2211
      // Predicated region
      $region49: #{_forward_impl.15} parent=47 // pred_check
        %p2213 = pneg %p193
      $region50: #{_forward_impl.15} parent=47 // pred_check_branch
        %2215 = sbr.rel (%p2213) target = $region52
      $region51: #{_forward_impl.15} parent=47 // pred_region
        _
      $region52: #{_forward_impl.15} parent=47 // pred_fallthru
        _
    $region48: #{_forward_impl.15} parent=5 // pred_fallthru
      _
    %p2216 = scmp.le.s32.totalorder 2, %s13
    // Predicated region
    $region53: #{_forward_impl.15} parent=5 // pred_check
      %p2217 = pneg %p2216
    $region54: #{_forward_impl.15} parent=5 // pred_check_branch
      %2219 = sbr.rel (%p2217) target = $region56
    $region55: #{_forward_impl.15} parent=5 // pred_region
      %s2220 = ssub.s32 %s13, 2
      // Predicated region
      $region57: #{_forward_impl.15} parent=55 // pred_check
        %p2221 = pneg %p199
      $region58: #{_forward_impl.15} parent=55 // pred_check_branch
        %2223 = sbr.rel (%p2221) target = $region60
      $region59: #{_forward_impl.15} parent=55 // pred_region
        %p2224 = scmp.lt.s32.totalorder %s19, 1
        %s2225 = scalar_select %p2224, %s19, 1
        %s2226 = smul.addr %s2225, 2
        %s2227 = scalar_lea.vmem %s7, %s2226
      $region60: #{_forward_impl.15} parent=55 // pred_fallthru
        _
    $region56: #{_forward_impl.15} parent=5 // pred_fallthru
      _
  $region6: #{_forward_impl.15} parent=0 // loop_footer
    %s17 = sadd.s32 1, %s13
  $region7: #{_forward_impl.15} parent=0 // loop_footer_branch
    %12 = sbr.rel target = $region3
  $region8: #{_forward_impl.15} parent=0 // loop_exit
    _

</llo_original>
